<compile_context>
chip_gen: v7x
topology: tpu7x:2x2x1
jax: 0.10.0
libtpu: 0.0.40
codegen_flags: <defaults>
</compile_context>

<pallas_src>
import functools

import jax
import jax.numpy as jnp
from jax import lax
from jax.experimental import pallas as pl
from jax.experimental.pallas import tpu as pltpu


# ----------------------------------------------------------------------------
# Single fused kernel: BiLSTM recurrence + additive attention + hidden Linear
# + decoder Linear + softmaxes.  All state resident in vregs / VMEM.
# ----------------------------------------------------------------------------
def _fused_kernel(x_ref, wih_ref, b_ref, whh_ref,
                  whf_ref, whb_ref, wzf_ref, wzb_ref, batt_ref, v_ref,
                  whidf_ref, whidb_ref, bhid_ref, wdec_ref, bdec_ref,
                  att_ref, hlin_ref, out_ref, *, T, B, H):
    f32 = jnp.float32
    bf16 = jnp.bfloat16
    G = 4 * H

    # ---- Hoisted input projection (both directions, both time orders) in one
    #      matmul; bias added once.  Row t*B+b of x_ref is [x_t | x_{T-1-t}],
    #      so columns [:4H] are the forward gate pre-activations at time t and
    #      [4H:] the backward ones at time T-1-t (block-diagonal W_ih).
    xg = (jnp.dot(x_ref[...], wih_ref[...], preferred_element_type=f32)
          + b_ref[...])                                    # (T*B, 8H) f32
    xg3 = xg.reshape(T, B, 2 * G)   # ONE relayout; leading-axis indexing below

    # Hoisted weight loads (stay in vregs across the unrolled loop).
    whh = whh_ref[...]              # (2H, 8H) block-diagonal, bf16
    whf = whf_ref[...]              # (H, V) attention proj, forward half
    whb = whb_ref[...]              # (H, V) attention proj, backward half

    h_f = jnp.zeros((B, H), f32)
    c_f = jnp.zeros((B, H), f32)
    h_b = jnp.zeros((B, H), f32)
    c_b = jnp.zeros((B, H), f32)

    hs_f = [None] * T               # per-(aligned)-time hidden states, in vregs
    hs_b = [None] * T
    mhf = [None] * T                # attention projections h @ Wh, per direction
    mhb = [None] * T

    # Fully unrolled recurrence (T small & static).  ONE block-diagonal
    # h_cat @ W_hh MXU launch per step covers both directions.
    for t in range(T):
        tb = T - 1 - t
        hcat = jnp.concatenate([h_f, h_b], axis=1)         # (B, 2H)
        gates = xg3[t] + jnp.dot(hcat.astype(bf16), whh,
                                 preferred_element_type=f32)   # (B, 8H)
        # Full-vreg EUP launches (not per-gate slices before the nonlinearity).
        sg = jax.nn.sigmoid(gates)
        tg = jnp.tanh(gates)

        # forward direction, PyTorch gate order i, f, g, o
        c_f = sg[:, H:2 * H] * c_f + sg[:, 0:H] * tg[:, 2 * H:3 * H]
        h_f = sg[:, 3 * H:4 * H] * jnp.tanh(c_f)
        # backward direction (corresponds to aligned time tb)
        c_b = (sg[:, G + H:G + 2 * H] * c_b
               + sg[:, G:G + H] * tg[:, G + 2 * H:G + 3 * H])
        h_b = sg[:, G + 3 * H:G + 4 * H] * jnp.tanh(c_b)

        hs_f[t] = h_f
        hs_b[tb] = h_b
        # Tiny attention projections interleaved with the serial recurrence
        # (the MXU is otherwise idle while the gate epilogue runs).
        mhf[t] = jnp.dot(h_f.astype(bf16), whf, preferred_element_type=f32)
        mhb[tb] = jnp.dot(h_b.astype(bf16), whb, preferred_element_type=f32)

    # ---- Additive-attention head: streaming softmax over the sequence axis.
    #      Everything stays (B, *) and lane-resident; no cross-sublane reduce.
    z_f = hs_f[T - 1]
    z_b = hs_b[T - 1]                                       # z = h[-1], split
    mz = (jnp.dot(z_f.astype(bf16), wzf_ref[...], preferred_element_type=f32)
          + jnp.dot(z_b.astype(bf16), wzb_ref[...], preferred_element_type=f32)
          + batt_ref[...])                                  # (B, V)
    vv = v_ref[...]                                         # (1, V)

    e = [jnp.sum(jnp.tanh(mhf[s] + mhb[s] + mz) * vv, axis=-1, keepdims=True)
         for s in range(T)]                                 # T x (B, 1)
    e_max = e[0]
    for s in range(1, T):
        e_max = jnp.maximum(e_max, e[s])
    w = [jnp.exp(e[s] - e_max) for s in range(T)]
    denom = w[0]
    for s in range(1, T):
        denom = denom + w[s]
    inv = 1.0 / denom                                       # (B, 1)

    ctx_f = w[0] * hs_f[0]
    ctx_b = w[0] * hs_b[0]
    for s in range(1, T):
        ctx_f = ctx_f + w[s] * hs_f[s]
        ctx_b = ctx_b + w[s] * hs_b[s]
    ctx_f = ctx_f * inv                                     # (B, H)
    ctx_b = ctx_b * inv                                     # H = (attn * h).sum(0)

    # Attention weights emitted lane-dense as (B, T); wrapper transposes.
    att_ref[...] = jnp.concatenate(w, axis=1) * inv

    # dropout (eval mode) -> identity
    Hlin = (jnp.dot(ctx_f.astype(bf16), whidf_ref[...], preferred_element_type=f32)
            + jnp.dot(ctx_b.astype(bf16), whidb_ref[...], preferred_element_type=f32)
            + bhid_ref[...])                                # hidden_layer (B, 2H)
    hlin_ref[...] = Hlin

    logits = (jnp.dot(Hlin.astype(bf16), wdec_ref[...], preferred_element_type=f32)
              + bdec_ref[...])                              # decoder (B, L)
    lmax = jnp.max(logits, axis=1, keepdims=True)
    pnum = jnp.exp(logits - lmax)
    out_ref[...] = pnum / jnp.sum(pnum, axis=1, keepdims=True)   # softmax(., 1)


def bilstm_source_net_forward(text_input, p):
    f32, bf16 = jnp.float32, jnp.bfloat16
    x = p["emb"][text_input]                  # embedding gather (plain-JAX glue)
    T, B, E = x.shape
    H = p["whh_f"].shape[0]
    G = 4 * H
    L = p["Wdec"].shape[1]

    # Forward stream and time-reversed backward stream concatenated on the
    # feature axis -> a single hoisted input-projection matmul in the kernel.
    x_pair = (jnp.concatenate([x, x[::-1]], axis=-1)
              .reshape(T * B, 2 * E).astype(bf16))

    # Block-diagonal weights (XLA glue, done once — free).
    wih_bd = jnp.zeros((2 * E, 2 * G), f32)
    wih_bd = (wih_bd.at[:E, :G].set(p["wih_f"])
                     .at[E:, G:].set(p["wih_b"]).astype(bf16))
    whh_bd = jnp.zeros((2 * H, 2 * G), f32)
    whh_bd = (whh_bd.at[:H, :G].set(p["whh_f"])
                     .at[H:, G:].set(p["whh_b"]).astype(bf16))
    b_cat = jnp.concatenate([p["b_f"], p["b_b"]], axis=1)   # (1, 8H) f32

    # Direction-split head weights (avoids the lane-sparse 2H concat in-kernel).
    wh_f, wh_b = p["Wh"][:H].astype(bf16), p["Wh"][H:].astype(bf16)
    wz_f, wz_b = p["Wz"][:H].astype(bf16), p["Wz"][H:].astype(bf16)
    whid_f, whid_b = p["Whid"][:H].astype(bf16), p["Whid"][H:].astype(bf16)
    wdec = p["Wdec"].astype(bf16)

    vmem = pl.BlockSpec(memory_space=pltpu.MemorySpace.VMEM)
    kernel = functools.partial(_fused_kernel, T=T, B=B, H=H)
    att_bt, Hlin, out = pl.pallas_call(
        kernel,
        out_shape=(jax.ShapeDtypeStruct((B, T), f32),
                   jax.ShapeDtypeStruct((B, 2 * H), f32),
                   jax.ShapeDtypeStruct((B, L), f32)),
        in_specs=[vmem] * 15,
        out_specs=(vmem, vmem, vmem),
    )(x_pair, wih_bd, b_cat, whh_bd,
      wh_f, wh_b, wz_f, wz_b, p["batt"], p["vvec"],
      whid_f, whid_b, p["bhid"], wdec, p["bdec"])
    # Module/reference convention: attention over the sequence axis, (T, B).
    return att_bt.T, Hlin, out


# ----------------------------------------------------------------------------
# Plain-JAX reference (f32, HIGHEST precision) for correctness checking.
# ----------------------------------------------------------------------------
def reference_forward(text_input, p, H):
    prec = lax.Precision.HIGHEST
    x = p["emb"][text_input]

    def lstm_dir(x_seq, wih, whh, b):
        B = x_seq.shape[1]

        def step(carry, x_t):
            h, c = carry
            gates = (jnp.dot(x_t, wih, precision=prec)
                     + jnp.dot(h, whh, precision=prec) + b)
            i = jax.nn.sigmoid(gates[:, 0 * H:1 * H])
            f = jax.nn.sigmoid(gates[:, 1 * H:2 * H])
            g = jnp.tanh(gates[:, 2 * H:3 * H])
            o = jax.nn.sigmoid(gates[:, 3 * H:4 * H])
            c = f * c + i * g
            h = o * jnp.tanh(c)
            return (h, c), h

        init = (jnp.zeros((B, H), jnp.float32), jnp.zeros((B, H), jnp.float32))
        _, hs = lax.scan(step, init, x_seq)
        return hs

    hf = lstm_dir(x, p["wih_f"], p["whh_f"], p["b_f"])
    hb = lstm_dir(x[::-1], p["wih_b"], p["whh_b"], p["b_b"])[::-1]
    h = jnp.concatenate([hf, hb], axis=-1)
    z = h[-1]

    m = jnp.tanh(jnp.einsum("tbd,dv->tbv", h, p["Wh"], precision=prec)
                 + jnp.dot(z, p["Wz"], precision=prec)[None] + p["batt"][None])
    e = jnp.sum(m * p["vvec"][None], axis=-1)
    attn = jax.nn.softmax(e, axis=0)
    ctx = jnp.sum(attn[:, :, None] * h, axis=0)
    Hlin = jnp.dot(ctx, p["Whid"], precision=prec) + p["bhid"]
    out = jax.nn.softmax(jnp.dot(Hlin, p["Wdec"], precision=prec) + p["bdec"], axis=1)
    return attn, Hlin, out


if __name__ == "__main__":
    # Small shapes consistent with the module
    T, B = 8, 2                 # seq_len, batch
    E, H, V, L = 32, 32, 16, 4  # embedding_dim, hidden_dim, v_dim, label_size
    VOCAB = 50

    key = jax.random.PRNGKey(0)
    ks = jax.random.split(key, 16)

    def rnd(k, shape, scale=0.1):
        return (scale * jax.random.normal(k, shape)).astype(jnp.float32)

    params = {
        "emb":   rnd(ks[0], (VOCAB, E), 1.0),       # pretrained_vec
        # LSTM (forward dir): combined bias b = b_ih + b_hh, PyTorch gate order i,f,g,o
        "wih_f": rnd(ks[1], (E, 4 * H)),
        "whh_f": rnd(ks[2], (H, 4 * H)),
        "b_f":   rnd(ks[3], (1, 4 * H)),
        # LSTM (backward dir)
        "wih_b": rnd(ks[4], (E, 4 * H)),
        "whh_b": rnd(ks[5], (H, 4 * H)),
        "b_b":   rnd(ks[6], (1, 4 * H)),
        # SelfAttention(hidden_dim, v_dim) — additive attention params
        "Wh":    rnd(ks[7], (2 * H, V)),
        "Wz":    rnd(ks[8], (2 * H, V)),
        "batt":  rnd(ks[9], (1, V)),
        "vvec":  rnd(ks[10], (1, V)),
        # hidden_layer / decoder
        "Whid":  rnd(ks[11], (2 * H, 2 * H)),
        "bhid":  rnd(ks[12], (1, 2 * H)),
        "Wdec":  rnd(ks[13], (2 * H, L)),
        "bdec":  rnd(ks[14], (1, L)),
    }

    text_input = jax.random.randint(ks[15], (T, B), 0, VOCAB, dtype=jnp.int32)

    attn, Hlin, out = jax.block_until_ready(
        bilstm_source_net_forward(text_input, params))

    # Sanity check vs. plain-JAX (f32 HIGHEST) reference.  The kernel
    # deliberately runs the MXU in bf16 (perf review), so use ~1e-2 tolerance.
    r_attn, r_H, r_out = reference_forward(text_input, params, H)
    assert jnp.allclose(attn, r_attn, rtol=1e-2, atol=1e-2)
    assert jnp.allclose(Hlin, r_H, rtol=1e-2, atol=1e-2)
    assert jnp.allclose(out, r_out, rtol=1e-2, atol=1e-2)
    assert jnp.allclose(jnp.sum(out, axis=1), 1.0, atol=1e-3)
    assert jnp.allclose(jnp.sum(attn, axis=0), 1.0, atol=1e-3)

    print("KERNEL_OK")
</pallas_src>

<mosaic_0001>
module attributes {stable_mosaic.version = 11 : i64} {
  func.func @_fused_kernel(%arg0: memref<16x64xbf16, #tpu.memory_space<vmem>>, %arg1: memref<64x256xbf16, #tpu.memory_space<vmem>>, %arg2: memref<1x256xf32, #tpu.memory_space<vmem>>, %arg3: memref<64x256xbf16, #tpu.memory_space<vmem>>, %arg4: memref<32x16xbf16, #tpu.memory_space<vmem>>, %arg5: memref<32x16xbf16, #tpu.memory_space<vmem>>, %arg6: memref<32x16xbf16, #tpu.memory_space<vmem>>, %arg7: memref<32x16xbf16, #tpu.memory_space<vmem>>, %arg8: memref<1x16xf32, #tpu.memory_space<vmem>>, %arg9: memref<1x16xf32, #tpu.memory_space<vmem>>, %arg10: memref<32x64xbf16, #tpu.memory_space<vmem>>, %arg11: memref<32x64xbf16, #tpu.memory_space<vmem>>, %arg12: memref<1x64xf32, #tpu.memory_space<vmem>>, %arg13: memref<64x4xbf16, #tpu.memory_space<vmem>>, %arg14: memref<1x4xf32, #tpu.memory_space<vmem>>, %arg15: memref<2x8xf32, #tpu.memory_space<vmem>>, %arg16: memref<2x64xf32, #tpu.memory_space<vmem>>, %arg17: memref<2x4xf32, #tpu.memory_space<vmem>>) attributes {dimension_semantics = [], scalar_prefetch = 0 : i64, scratch_operands = 0 : i64, tpu.core_type = #tpu.core_type<tc>} {
    %c0 = arith.constant 0 : index
    %c0_0 = arith.constant 0 : index
    %0 = vector.load %arg0[%c0, %c0_0] : memref<16x64xbf16, #tpu.memory_space<vmem>>, vector<16x64xbf16>
    %c0_1 = arith.constant 0 : index
    %c0_2 = arith.constant 0 : index
    %1 = vector.load %arg1[%c0_1, %c0_2] : memref<64x256xbf16, #tpu.memory_space<vmem>>, vector<64x256xbf16>
    %cst = arith.constant dense<0.000000e+00> : vector<16x256xf32>
    %2 = tpu.matmul %0, %1, %cst {dimension_numbers = #tpu.dot_dimension_numbers<[1], [0], [0], [1], [0, 0, 1, 1], [], []>} : vector<16x64xbf16>, vector<64x256xbf16>, vector<16x256xf32> -> vector<16x256xf32>
    %c0_3 = arith.constant 0 : index
    %c0_4 = arith.constant 0 : index
    %3 = vector.load %arg2[%c0_3, %c0_4] : memref<1x256xf32, #tpu.memory_space<vmem>>, vector<1x256xf32>
    %4 = vector.broadcast %3 : vector<1x256xf32> to vector<16x256xf32>
    %5 = arith.addf %2, %4 : vector<16x256xf32>
    %6 = vector.shape_cast %5 : vector<16x256xf32> to vector<8x2x256xf32>
    %c0_5 = arith.constant 0 : index
    %c0_6 = arith.constant 0 : index
    %7 = vector.load %arg3[%c0_5, %c0_6] : memref<64x256xbf16, #tpu.memory_space<vmem>>, vector<64x256xbf16>
    %c0_7 = arith.constant 0 : index
    %c0_8 = arith.constant 0 : index
    %8 = vector.load %arg4[%c0_7, %c0_8] : memref<32x16xbf16, #tpu.memory_space<vmem>>, vector<32x16xbf16>
    %c0_9 = arith.constant 0 : index
    %c0_10 = arith.constant 0 : index
    %9 = vector.load %arg5[%c0_9, %c0_10] : memref<32x16xbf16, #tpu.memory_space<vmem>>, vector<32x16xbf16>
    %cst_11 = arith.constant 0.000000e+00 : f32
    %10 = vector.broadcast %cst_11 : f32 to vector<2x32xf32>
    %cst_12 = arith.constant 0.000000e+00 : f32
    %11 = vector.broadcast %cst_12 : f32 to vector<2x32xf32>
    %cst_13 = arith.constant 0.000000e+00 : f32
    %12 = vector.broadcast %cst_13 : f32 to vector<2x32xf32>
    %cst_14 = arith.constant 0.000000e+00 : f32
    %13 = vector.broadcast %cst_14 : f32 to vector<2x32xf32>
    %14 = tpu.concatenate %10, %12 in 1 : vector<2x32xf32>, vector<2x32xf32> -> vector<2x64xf32>
    %15 = vector.extract_strided_slice %6 {offsets = [0, 0, 0], sizes = [1, 2, 256], strides = [1, 1, 1]} : vector<8x2x256xf32> to vector<1x2x256xf32>
    %16 = vector.shape_cast %15 : vector<1x2x256xf32> to vector<2x256xf32>
    %17 = arith.truncf %14 : vector<2x64xf32> to vector<2x64xbf16>
    %cst_15 = arith.constant dense<0.000000e+00> : vector<2x256xf32>
    %18 = tpu.matmul %17, %7, %cst_15 {dimension_numbers = #tpu.dot_dimension_numbers<[1], [0], [0], [1], [0, 0, 1, 1], [], []>} : vector<2x64xbf16>, vector<64x256xbf16>, vector<2x256xf32> -> vector<2x256xf32>
    %19 = arith.addf %16, %18 : vector<2x256xf32>
    %20 = arith.negf %19 : vector<2x256xf32>
    %21 = math.exp %20 : vector<2x256xf32>
    %cst_16 = arith.constant 1.000000e+00 : f32
    %22 = vector.broadcast %cst_16 : f32 to vector<2x256xf32>
    %23 = arith.addf %22, %21 : vector<2x256xf32>
    %24 = arith.divf %22, %23 : vector<2x256xf32>
    %25 = math.tanh %19 : vector<2x256xf32>
    %26 = vector.extract_strided_slice %24 {offsets = [0, 32], sizes = [2, 32], strides = [1, 1]} : vector<2x256xf32> to vector<2x32xf32>
    %27 = arith.mulf %26, %11 : vector<2x32xf32>
    %28 = vector.extract_strided_slice %24 {offsets = [0, 0], sizes = [2, 32], strides = [1, 1]} : vector<2x256xf32> to vector<2x32xf32>
    %29 = vector.extract_strided_slice %25 {offsets = [0, 64], sizes = [2, 32], strides = [1, 1]} : vector<2x256xf32> to vector<2x32xf32>
    %30 = arith.mulf %28, %29 : vector<2x32xf32>
    %31 = arith.addf %27, %30 : vector<2x32xf32>
    %32 = vector.extract_strided_slice %24 {offsets = [0, 96], sizes = [2, 32], strides = [1, 1]} : vector<2x256xf32> to vector<2x32xf32>
    %33 = math.tanh %31 : vector<2x32xf32>
    %34 = arith.mulf %32, %33 : vector<2x32xf32>
    %35 = vector.extract_strided_slice %24 {offsets = [0, 160], sizes = [2, 32], strides = [1, 1]} : vector<2x256xf32> to vector<2x32xf32>
    %36 = arith.mulf %35, %13 : vector<2x32xf32>
    %37 = vector.extract_strided_slice %24 {offsets = [0, 128], sizes = [2, 32], strides = [1, 1]} : vector<2x256xf32> to vector<2x32xf32>
    %38 = vector.extract_strided_slice %25 {offsets = [0, 192], sizes = [2, 32], strides = [1, 1]} : vector<2x256xf32> to vector<2x32xf32>
    %39 = arith.mulf %37, %38 : vector<2x32xf32>
    %40 = arith.addf %36, %39 : vector<2x32xf32>
    %41 = vector.extract_strided_slice %24 {offsets = [0, 224], sizes = [2, 32], strides = [1, 1]} : vector<2x256xf32> to vector<2x32xf32>
    %42 = math.tanh %40 : vector<2x32xf32>
    %43 = arith.mulf %41, %42 : vector<2x32xf32>
    %44 = arith.truncf %34 : vector<2x32xf32> to vector<2x32xbf16>
    %cst_17 = arith.constant dense<0.000000e+00> : vector<2x16xf32>
    %45 = tpu.matmul %44, %8, %cst_17 {dimension_numbers = #tpu.dot_dimension_numbers<[1], [0], [0], [1], [0, 0, 1, 1], [], []>} : vector<2x32xbf16>, vector<32x16xbf16>, vector<2x16xf32> -> vector<2x16xf32>
    %46 = arith.truncf %43 : vector<2x32xf32> to vector<2x32xbf16>
    %cst_18 = arith.constant dense<0.000000e+00> : vector<2x16xf32>
    %47 = tpu.matmul %46, %9, %cst_18 {dimension_numbers = #tpu.dot_dimension_numbers<[1], [0], [0], [1], [0, 0, 1, 1], [], []>} : vector<2x32xbf16>, vector<32x16xbf16>, vector<2x16xf32> -> vector<2x16xf32>
    %48 = tpu.concatenate %34, %43 in 1 : vector<2x32xf32>, vector<2x32xf32> -> vector<2x64xf32>
    %49 = vector.extract_strided_slice %6 {offsets = [1, 0, 0], sizes = [1, 2, 256], strides = [1, 1, 1]} : vector<8x2x256xf32> to vector<1x2x256xf32>
    %50 = vector.shape_cast %49 : vector<1x2x256xf32> to vector<2x256xf32>
    %51 = arith.truncf %48 : vector<2x64xf32> to vector<2x64xbf16>
    %cst_19 = arith.constant dense<0.000000e+00> : vector<2x256xf32>
    %52 = tpu.matmul %51, %7, %cst_19 {dimension_numbers = #tpu.dot_dimension_numbers<[1], [0], [0], [1], [0, 0, 1, 1], [], []>} : vector<2x64xbf16>, vector<64x256xbf16>, vector<2x256xf32> -> vector<2x256xf32>
    %53 = arith.addf %50, %52 : vector<2x256xf32>
    %54 = arith.negf %53 : vector<2x256xf32>
    %55 = math.exp %54 : vector<2x256xf32>
    %cst_20 = arith.constant 1.000000e+00 : f32
    %56 = vector.broadcast %cst_20 : f32 to vector<2x256xf32>
    %57 = arith.addf %56, %55 : vector<2x256xf32>
    %58 = arith.divf %56, %57 : vector<2x256xf32>
    %59 = math.tanh %53 : vector<2x256xf32>
    %60 = vector.extract_strided_slice %58 {offsets = [0, 32], sizes = [2, 32], strides = [1, 1]} : vector<2x256xf32> to vector<2x32xf32>
    %61 = arith.mulf %60, %31 : vector<2x32xf32>
    %62 = vector.extract_strided_slice %58 {offsets = [0, 0], sizes = [2, 32], strides = [1, 1]} : vector<2x256xf32> to vector<2x32xf32>
    %63 = vector.extract_strided_slice %59 {offsets = [0, 64], sizes = [2, 32], strides = [1, 1]} : vector<2x256xf32> to vector<2x32xf32>
    %64 = arith.mulf %62, %63 : vector<2x32xf32>
    %65 = arith.addf %61, %64 : vector<2x32xf32>
    %66 = vector.extract_strided_slice %58 {offsets = [0, 96], sizes = [2, 32], strides = [1, 1]} : vector<2x256xf32> to vector<2x32xf32>
    %67 = math.tanh %65 : vector<2x32xf32>
    %68 = arith.mulf %66, %67 : vector<2x32xf32>
    %69 = vector.extract_strided_slice %58 {offsets = [0, 160], sizes = [2, 32], strides = [1, 1]} : vector<2x256xf32> to vector<2x32xf32>
    %70 = arith.mulf %69, %40 : vector<2x32xf32>
    %71 = vector.extract_strided_slice %58 {offsets = [0, 128], sizes = [2, 32], strides = [1, 1]} : vector<2x256xf32> to vector<2x32xf32>
    %72 = vector.extract_strided_slice %59 {offsets = [0, 192], sizes = [2, 32], strides = [1, 1]} : vector<2x256xf32> to vector<2x32xf32>
    %73 = arith.mulf %71, %72 : vector<2x32xf32>
    %74 = arith.addf %70, %73 : vector<2x32xf32>
    %75 = vector.extract_strided_slice %58 {offsets = [0, 224], sizes = [2, 32], strides = [1, 1]} : vector<2x256xf32> to vector<2x32xf32>
    %76 = math.tanh %74 : vector<2x32xf32>
    %77 = arith.mulf %75, %76 : vector<2x32xf32>
    %78 = arith.truncf %68 : vector<2x32xf32> to vector<2x32xbf16>
    %cst_21 = arith.constant dense<0.000000e+00> : vector<2x16xf32>
    %79 = tpu.matmul %78, %8, %cst_21 {dimension_numbers = #tpu.dot_dimension_numbers<[1], [0], [0], [1], [0, 0, 1, 1], [], []>} : vector<2x32xbf16>, vector<32x16xbf16>, vector<2x16xf32> -> vector<2x16xf32>
    %80 = arith.truncf %77 : vector<2x32xf32> to vector<2x32xbf16>
    %cst_22 = arith.constant dense<0.000000e+00> : vector<2x16xf32>
    %81 = tpu.matmul %80, %9, %cst_22 {dimension_numbers = #tpu.dot_dimension_numbers<[1], [0], [0], [1], [0, 0, 1, 1], [], []>} : vector<2x32xbf16>, vector<32x16xbf16>, vector<2x16xf32> -> vector<2x16xf32>
    %82 = tpu.concatenate %68, %77 in 1 : vector<2x32xf32>, vector<2x32xf32> -> vector<2x64xf32>
    %83 = vector.extract_strided_slice %6 {offsets = [2, 0, 0], sizes = [1, 2, 256], strides = [1, 1, 1]} : vector<8x2x256xf32> to vector<1x2x256xf32>
    %84 = vector.shape_cast %83 : vector<1x2x256xf32> to vector<2x256xf32>
    %85 = arith.truncf %82 : vector<2x64xf32> to vector<2x64xbf16>
    %cst_23 = arith.constant dense<0.000000e+00> : vector<2x256xf32>
    %86 = tpu.matmul %85, %7, %cst_23 {dimension_numbers = #tpu.dot_dimension_numbers<[1], [0], [0], [1], [0, 0, 1, 1], [], []>} : vector<2x64xbf16>, vector<64x256xbf16>, vector<2x256xf32> -> vector<2x256xf32>
    %87 = arith.addf %84, %86 : vector<2x256xf32>
    %88 = arith.negf %87 : vector<2x256xf32>
    %89 = math.exp %88 : vector<2x256xf32>
    %cst_24 = arith.constant 1.000000e+00 : f32
    %90 = vector.broadcast %cst_24 : f32 to vector<2x256xf32>
    %91 = arith.addf %90, %89 : vector<2x256xf32>
    %92 = arith.divf %90, %91 : vector<2x256xf32>
    %93 = math.tanh %87 : vector<2x256xf32>
    %94 = vector.extract_strided_slice %92 {offsets = [0, 32], sizes = [2, 32], strides = [1, 1]} : vector<2x256xf32> to vector<2x32xf32>
    %95 = arith.mulf %94, %65 : vector<2x32xf32>
    %96 = vector.extract_strided_slice %92 {offsets = [0, 0], sizes = [2, 32], strides = [1, 1]} : vector<2x256xf32> to vector<2x32xf32>
    %97 = vector.extract_strided_slice %93 {offsets = [0, 64], sizes = [2, 32], strides = [1, 1]} : vector<2x256xf32> to vector<2x32xf32>
    %98 = arith.mulf %96, %97 : vector<2x32xf32>
    %99 = arith.addf %95, %98 : vector<2x32xf32>
    %100 = vector.extract_strided_slice %92 {offsets = [0, 96], sizes = [2, 32], strides = [1, 1]} : vector<2x256xf32> to vector<2x32xf32>
    %101 = math.tanh %99 : vector<2x32xf32>
    %102 = arith.mulf %100, %101 : vector<2x32xf32>
    %103 = vector.extract_strided_slice %92 {offsets = [0, 160], sizes = [2, 32], strides = [1, 1]} : vector<2x256xf32> to vector<2x32xf32>
    %104 = arith.mulf %103, %74 : vector<2x32xf32>
    %105 = vector.extract_strided_slice %92 {offsets = [0, 128], sizes = [2, 32], strides = [1, 1]} : vector<2x256xf32> to vector<2x32xf32>
    %106 = vector.extract_strided_slice %93 {offsets = [0, 192], sizes = [2, 32], strides = [1, 1]} : vector<2x256xf32> to vector<2x32xf32>
    %107 = arith.mulf %105, %106 : vector<2x32xf32>
    %108 = arith.addf %104, %107 : vector<2x32xf32>
    %109 = vector.extract_strided_slice %92 {offsets = [0, 224], sizes = [2, 32], strides = [1, 1]} : vector<2x256xf32> to vector<2x32xf32>
    %110 = math.tanh %108 : vector<2x32xf32>
    %111 = arith.mulf %109, %110 : vector<2x32xf32>
    %112 = arith.truncf %102 : vector<2x32xf32> to vector<2x32xbf16>
    %cst_25 = arith.constant dense<0.000000e+00> : vector<2x16xf32>
    %113 = tpu.matmul %112, %8, %cst_25 {dimension_numbers = #tpu.dot_dimension_numbers<[1], [0], [0], [1], [0, 0, 1, 1], [], []>} : vector<2x32xbf16>, vector<32x16xbf16>, vector<2x16xf32> -> vector<2x16xf32>
    %114 = arith.truncf %111 : vector<2x32xf32> to vector<2x32xbf16>
    %cst_26 = arith.constant dense<0.000000e+00> : vector<2x16xf32>
    %115 = tpu.matmul %114, %9, %cst_26 {dimension_numbers = #tpu.dot_dimension_numbers<[1], [0], [0], [1], [0, 0, 1, 1], [], []>} : vector<2x32xbf16>, vector<32x16xbf16>, vector<2x16xf32> -> vector<2x16xf32>
    %116 = tpu.concatenate %102, %111 in 1 : vector<2x32xf32>, vector<2x32xf32> -> vector<2x64xf32>
    %117 = vector.extract_strided_slice %6 {offsets = [3, 0, 0], sizes = [1, 2, 256], strides = [1, 1, 1]} : vector<8x2x256xf32> to vector<1x2x256xf32>
    %118 = vector.shape_cast %117 : vector<1x2x256xf32> to vector<2x256xf32>
    %119 = arith.truncf %116 : vector<2x64xf32> to vector<2x64xbf16>
    %cst_27 = arith.constant dense<0.000000e+00> : vector<2x256xf32>
    %120 = tpu.matmul %119, %7, %cst_27 {dimension_numbers = #tpu.dot_dimension_numbers<[1], [0], [0], [1], [0, 0, 1, 1], [], []>} : vector<2x64xbf16>, vector<64x256xbf16>, vector<2x256xf32> -> vector<2x256xf32>
    %121 = arith.addf %118, %120 : vector<2x256xf32>
    %122 = arith.negf %121 : vector<2x256xf32>
    %123 = math.exp %122 : vector<2x256xf32>
    %cst_28 = arith.constant 1.000000e+00 : f32
    %124 = vector.broadcast %cst_28 : f32 to vector<2x256xf32>
    %125 = arith.addf %124, %123 : vector<2x256xf32>
    %126 = arith.divf %124, %125 : vector<2x256xf32>
    %127 = math.tanh %121 : vector<2x256xf32>
    %128 = vector.extract_strided_slice %126 {offsets = [0, 32], sizes = [2, 32], strides = [1, 1]} : vector<2x256xf32> to vector<2x32xf32>
    %129 = arith.mulf %128, %99 : vector<2x32xf32>
    %130 = vector.extract_strided_slice %126 {offsets = [0, 0], sizes = [2, 32], strides = [1, 1]} : vector<2x256xf32> to vector<2x32xf32>
    %131 = vector.extract_strided_slice %127 {offsets = [0, 64], sizes = [2, 32], strides = [1, 1]} : vector<2x256xf32> to vector<2x32xf32>
    %132 = arith.mulf %130, %131 : vector<2x32xf32>
    %133 = arith.addf %129, %132 : vector<2x32xf32>
    %134 = vector.extract_strided_slice %126 {offsets = [0, 96], sizes = [2, 32], strides = [1, 1]} : vector<2x256xf32> to vector<2x32xf32>
    %135 = math.tanh %133 : vector<2x32xf32>
    %136 = arith.mulf %134, %135 : vector<2x32xf32>
    %137 = vector.extract_strided_slice %126 {offsets = [0, 160], sizes = [2, 32], strides = [1, 1]} : vector<2x256xf32> to vector<2x32xf32>
    %138 = arith.mulf %137, %108 : vector<2x32xf32>
    %139 = vector.extract_strided_slice %126 {offsets = [0, 128], sizes = [2, 32], strides = [1, 1]} : vector<2x256xf32> to vector<2x32xf32>
    %140 = vector.extract_strided_slice %127 {offsets = [0, 192], sizes = [2, 32], strides = [1, 1]} : vector<2x256xf32> to vector<2x32xf32>
    %141 = arith.mulf %139, %140 : vector<2x32xf32>
    %142 = arith.addf %138, %141 : vector<2x32xf32>
    %143 = vector.extract_strided_slice %126 {offsets = [0, 224], sizes = [2, 32], strides = [1, 1]} : vector<2x256xf32> to vector<2x32xf32>
    %144 = math.tanh %142 : vector<2x32xf32>
    %145 = arith.mulf %143, %144 : vector<2x32xf32>
    %146 = arith.truncf %136 : vector<2x32xf32> to vector<2x32xbf16>
    %cst_29 = arith.constant dense<0.000000e+00> : vector<2x16xf32>
    %147 = tpu.matmul %146, %8, %cst_29 {dimension_numbers = #tpu.dot_dimension_numbers<[1], [0], [0], [1], [0, 0, 1, 1], [], []>} : vector<2x32xbf16>, vector<32x16xbf16>, vector<2x16xf32> -> vector<2x16xf32>
    %148 = arith.truncf %145 : vector<2x32xf32> to vector<2x32xbf16>
    %cst_30 = arith.constant dense<0.000000e+00> : vector<2x16xf32>
    %149 = tpu.matmul %148, %9, %cst_30 {dimension_numbers = #tpu.dot_dimension_numbers<[1], [0], [0], [1], [0, 0, 1, 1], [], []>} : vector<2x32xbf16>, vector<32x16xbf16>, vector<2x16xf32> -> vector<2x16xf32>
    %150 = tpu.concatenate %136, %145 in 1 : vector<2x32xf32>, vector<2x32xf32> -> vector<2x64xf32>
    %151 = vector.extract_strided_slice %6 {offsets = [4, 0, 0], sizes = [1, 2, 256], strides = [1, 1, 1]} : vector<8x2x256xf32> to vector<1x2x256xf32>
    %152 = vector.shape_cast %151 : vector<1x2x256xf32> to vector<2x256xf32>
    %153 = arith.truncf %150 : vector<2x64xf32> to vector<2x64xbf16>
    %cst_31 = arith.constant dense<0.000000e+00> : vector<2x256xf32>
    %154 = tpu.matmul %153, %7, %cst_31 {dimension_numbers = #tpu.dot_dimension_numbers<[1], [0], [0], [1], [0, 0, 1, 1], [], []>} : vector<2x64xbf16>, vector<64x256xbf16>, vector<2x256xf32> -> vector<2x256xf32>
    %155 = arith.addf %152, %154 : vector<2x256xf32>
    %156 = arith.negf %155 : vector<2x256xf32>
    %157 = math.exp %156 : vector<2x256xf32>
    %cst_32 = arith.constant 1.000000e+00 : f32
    %158 = vector.broadcast %cst_32 : f32 to vector<2x256xf32>
    %159 = arith.addf %158, %157 : vector<2x256xf32>
    %160 = arith.divf %158, %159 : vector<2x256xf32>
    %161 = math.tanh %155 : vector<2x256xf32>
    %162 = vector.extract_strided_slice %160 {offsets = [0, 32], sizes = [2, 32], strides = [1, 1]} : vector<2x256xf32> to vector<2x32xf32>
    %163 = arith.mulf %162, %133 : vector<2x32xf32>
    %164 = vector.extract_strided_slice %160 {offsets = [0, 0], sizes = [2, 32], strides = [1, 1]} : vector<2x256xf32> to vector<2x32xf32>
    %165 = vector.extract_strided_slice %161 {offsets = [0, 64], sizes = [2, 32], strides = [1, 1]} : vector<2x256xf32> to vector<2x32xf32>
    %166 = arith.mulf %164, %165 : vector<2x32xf32>
    %167 = arith.addf %163, %166 : vector<2x32xf32>
    %168 = vector.extract_strided_slice %160 {offsets = [0, 96], sizes = [2, 32], strides = [1, 1]} : vector<2x256xf32> to vector<2x32xf32>
    %169 = math.tanh %167 : vector<2x32xf32>
    %170 = arith.mulf %168, %169 : vector<2x32xf32>
    %171 = vector.extract_strided_slice %160 {offsets = [0, 160], sizes = [2, 32], strides = [1, 1]} : vector<2x256xf32> to vector<2x32xf32>
    %172 = arith.mulf %171, %142 : vector<2x32xf32>
    %173 = vector.extract_strided_slice %160 {offsets = [0, 128], sizes = [2, 32], strides = [1, 1]} : vector<2x256xf32> to vector<2x32xf32>
    %174 = vector.extract_strided_slice %161 {offsets = [0, 192], sizes = [2, 32], strides = [1, 1]} : vector<2x256xf32> to vector<2x32xf32>
    %175 = arith.mulf %173, %174 : vector<2x32xf32>
    %176 = arith.addf %172, %175 : vector<2x32xf32>
    %177 = vector.extract_strided_slice %160 {offsets = [0, 224], sizes = [2, 32], strides = [1, 1]} : vector<2x256xf32> to vector<2x32xf32>
    %178 = math.tanh %176 : vector<2x32xf32>
    %179 = arith.mulf %177, %178 : vector<2x32xf32>
    %180 = arith.truncf %170 : vector<2x32xf32> to vector<2x32xbf16>
    %cst_33 = arith.constant dense<0.000000e+00> : vector<2x16xf32>
    %181 = tpu.matmul %180, %8, %cst_33 {dimension_numbers = #tpu.dot_dimension_numbers<[1], [0], [0], [1], [0, 0, 1, 1], [], []>} : vector<2x32xbf16>, vector<32x16xbf16>, vector<2x16xf32> -> vector<2x16xf32>
    %182 = arith.truncf %179 : vector<2x32xf32> to vector<2x32xbf16>
    %cst_34 = arith.constant dense<0.000000e+00> : vector<2x16xf32>
    %183 = tpu.matmul %182, %9, %cst_34 {dimension_numbers = #tpu.dot_dimension_numbers<[1], [0], [0], [1], [0, 0, 1, 1], [], []>} : vector<2x32xbf16>, vector<32x16xbf16>, vector<2x16xf32> -> vector<2x16xf32>
    %184 = tpu.concatenate %170, %179 in 1 : vector<2x32xf32>, vector<2x32xf32> -> vector<2x64xf32>
    %185 = vector.extract_strided_slice %6 {offsets = [5, 0, 0], sizes = [1, 2, 256], strides = [1, 1, 1]} : vector<8x2x256xf32> to vector<1x2x256xf32>
    %186 = vector.shape_cast %185 : vector<1x2x256xf32> to vector<2x256xf32>
    %187 = arith.truncf %184 : vector<2x64xf32> to vector<2x64xbf16>
    %cst_35 = arith.constant dense<0.000000e+00> : vector<2x256xf32>
    %188 = tpu.matmul %187, %7, %cst_35 {dimension_numbers = #tpu.dot_dimension_numbers<[1], [0], [0], [1], [0, 0, 1, 1], [], []>} : vector<2x64xbf16>, vector<64x256xbf16>, vector<2x256xf32> -> vector<2x256xf32>
    %189 = arith.addf %186, %188 : vector<2x256xf32>
    %190 = arith.negf %189 : vector<2x256xf32>
    %191 = math.exp %190 : vector<2x256xf32>
    %cst_36 = arith.constant 1.000000e+00 : f32
    %192 = vector.broadcast %cst_36 : f32 to vector<2x256xf32>
    %193 = arith.addf %192, %191 : vector<2x256xf32>
    %194 = arith.divf %192, %193 : vector<2x256xf32>
    %195 = math.tanh %189 : vector<2x256xf32>
    %196 = vector.extract_strided_slice %194 {offsets = [0, 32], sizes = [2, 32], strides = [1, 1]} : vector<2x256xf32> to vector<2x32xf32>
    %197 = arith.mulf %196, %167 : vector<2x32xf32>
    %198 = vector.extract_strided_slice %194 {offsets = [0, 0], sizes = [2, 32], strides = [1, 1]} : vector<2x256xf32> to vector<2x32xf32>
    %199 = vector.extract_strided_slice %195 {offsets = [0, 64], sizes = [2, 32], strides = [1, 1]} : vector<2x256xf32> to vector<2x32xf32>
    %200 = arith.mulf %198, %199 : vector<2x32xf32>
    %201 = arith.addf %197, %200 : vector<2x32xf32>
    %202 = vector.extract_strided_slice %194 {offsets = [0, 96], sizes = [2, 32], strides = [1, 1]} : vector<2x256xf32> to vector<2x32xf32>
    %203 = math.tanh %201 : vector<2x32xf32>
    %204 = arith.mulf %202, %203 : vector<2x32xf32>
    %205 = vector.extract_strided_slice %194 {offsets = [0, 160], sizes = [2, 32], strides = [1, 1]} : vector<2x256xf32> to vector<2x32xf32>
    %206 = arith.mulf %205, %176 : vector<2x32xf32>
    %207 = vector.extract_strided_slice %194 {offsets = [0, 128], sizes = [2, 32], strides = [1, 1]} : vector<2x256xf32> to vector<2x32xf32>
    %208 = vector.extract_strided_slice %195 {offsets = [0, 192], sizes = [2, 32], strides = [1, 1]} : vector<2x256xf32> to vector<2x32xf32>
    %209 = arith.mulf %207, %208 : vector<2x32xf32>
    %210 = arith.addf %206, %209 : vector<2x32xf32>
    %211 = vector.extract_strided_slice %194 {offsets = [0, 224], sizes = [2, 32], strides = [1, 1]} : vector<2x256xf32> to vector<2x32xf32>
    %212 = math.tanh %210 : vector<2x32xf32>
    %213 = arith.mulf %211, %212 : vector<2x32xf32>
    %214 = arith.truncf %204 : vector<2x32xf32> to vector<2x32xbf16>
    %cst_37 = arith.constant dense<0.000000e+00> : vector<2x16xf32>
    %215 = tpu.matmul %214, %8, %cst_37 {dimension_numbers = #tpu.dot_dimension_numbers<[1], [0], [0], [1], [0, 0, 1, 1], [], []>} : vector<2x32xbf16>, vector<32x16xbf16>, vector<2x16xf32> -> vector<2x16xf32>
    %216 = arith.truncf %213 : vector<2x32xf32> to vector<2x32xbf16>
    %cst_38 = arith.constant dense<0.000000e+00> : vector<2x16xf32>
    %217 = tpu.matmul %216, %9, %cst_38 {dimension_numbers = #tpu.dot_dimension_numbers<[1], [0], [0], [1], [0, 0, 1, 1], [], []>} : vector<2x32xbf16>, vector<32x16xbf16>, vector<2x16xf32> -> vector<2x16xf32>
    %218 = tpu.concatenate %204, %213 in 1 : vector<2x32xf32>, vector<2x32xf32> -> vector<2x64xf32>
    %219 = vector.extract_strided_slice %6 {offsets = [6, 0, 0], sizes = [1, 2, 256], strides = [1, 1, 1]} : vector<8x2x256xf32> to vector<1x2x256xf32>
    %220 = vector.shape_cast %219 : vector<1x2x256xf32> to vector<2x256xf32>
    %221 = arith.truncf %218 : vector<2x64xf32> to vector<2x64xbf16>
    %cst_39 = arith.constant dense<0.000000e+00> : vector<2x256xf32>
    %222 = tpu.matmul %221, %7, %cst_39 {dimension_numbers = #tpu.dot_dimension_numbers<[1], [0], [0], [1], [0, 0, 1, 1], [], []>} : vector<2x64xbf16>, vector<64x256xbf16>, vector<2x256xf32> -> vector<2x256xf32>
    %223 = arith.addf %220, %222 : vector<2x256xf32>
    %224 = arith.negf %223 : vector<2x256xf32>
    %225 = math.exp %224 : vector<2x256xf32>
    %cst_40 = arith.constant 1.000000e+00 : f32
    %226 = vector.broadcast %cst_40 : f32 to vector<2x256xf32>
    %227 = arith.addf %226, %225 : vector<2x256xf32>
    %228 = arith.divf %226, %227 : vector<2x256xf32>
    %229 = math.tanh %223 : vector<2x256xf32>
    %230 = vector.extract_strided_slice %228 {offsets = [0, 32], sizes = [2, 32], strides = [1, 1]} : vector<2x256xf32> to vector<2x32xf32>
    %231 = arith.mulf %230, %201 : vector<2x32xf32>
    %232 = vector.extract_strided_slice %228 {offsets = [0, 0], sizes = [2, 32], strides = [1, 1]} : vector<2x256xf32> to vector<2x32xf32>
    %233 = vector.extract_strided_slice %229 {offsets = [0, 64], sizes = [2, 32], strides = [1, 1]} : vector<2x256xf32> to vector<2x32xf32>
    %234 = arith.mulf %232, %233 : vector<2x32xf32>
    %235 = arith.addf %231, %234 : vector<2x32xf32>
    %236 = vector.extract_strided_slice %228 {offsets = [0, 96], sizes = [2, 32], strides = [1, 1]} : vector<2x256xf32> to vector<2x32xf32>
    %237 = math.tanh %235 : vector<2x32xf32>
    %238 = arith.mulf %236, %237 : vector<2x32xf32>
    %239 = vector.extract_strided_slice %228 {offsets = [0, 160], sizes = [2, 32], strides = [1, 1]} : vector<2x256xf32> to vector<2x32xf32>
    %240 = arith.mulf %239, %210 : vector<2x32xf32>
    %241 = vector.extract_strided_slice %228 {offsets = [0, 128], sizes = [2, 32], strides = [1, 1]} : vector<2x256xf32> to vector<2x32xf32>
    %242 = vector.extract_strided_slice %229 {offsets = [0, 192], sizes = [2, 32], strides = [1, 1]} : vector<2x256xf32> to vector<2x32xf32>
    %243 = arith.mulf %241, %242 : vector<2x32xf32>
    %244 = arith.addf %240, %243 : vector<2x32xf32>
    %245 = vector.extract_strided_slice %228 {offsets = [0, 224], sizes = [2, 32], strides = [1, 1]} : vector<2x256xf32> to vector<2x32xf32>
    %246 = math.tanh %244 : vector<2x32xf32>
    %247 = arith.mulf %245, %246 : vector<2x32xf32>
    %248 = arith.truncf %238 : vector<2x32xf32> to vector<2x32xbf16>
    %cst_41 = arith.constant dense<0.000000e+00> : vector<2x16xf32>
    %249 = tpu.matmul %248, %8, %cst_41 {dimension_numbers = #tpu.dot_dimension_numbers<[1], [0], [0], [1], [0, 0, 1, 1], [], []>} : vector<2x32xbf16>, vector<32x16xbf16>, vector<2x16xf32> -> vector<2x16xf32>
    %250 = arith.truncf %247 : vector<2x32xf32> to vector<2x32xbf16>
    %cst_42 = arith.constant dense<0.000000e+00> : vector<2x16xf32>
    %251 = tpu.matmul %250, %9, %cst_42 {dimension_numbers = #tpu.dot_dimension_numbers<[1], [0], [0], [1], [0, 0, 1, 1], [], []>} : vector<2x32xbf16>, vector<32x16xbf16>, vector<2x16xf32> -> vector<2x16xf32>
    %252 = tpu.concatenate %238, %247 in 1 : vector<2x32xf32>, vector<2x32xf32> -> vector<2x64xf32>
    %253 = vector.extract_strided_slice %6 {offsets = [7, 0, 0], sizes = [1, 2, 256], strides = [1, 1, 1]} : vector<8x2x256xf32> to vector<1x2x256xf32>
    %254 = vector.shape_cast %253 : vector<1x2x256xf32> to vector<2x256xf32>
    %255 = arith.truncf %252 : vector<2x64xf32> to vector<2x64xbf16>
    %cst_43 = arith.constant dense<0.000000e+00> : vector<2x256xf32>
    %256 = tpu.matmul %255, %7, %cst_43 {dimension_numbers = #tpu.dot_dimension_numbers<[1], [0], [0], [1], [0, 0, 1, 1], [], []>} : vector<2x64xbf16>, vector<64x256xbf16>, vector<2x256xf32> -> vector<2x256xf32>
    %257 = arith.addf %254, %256 : vector<2x256xf32>
    %258 = arith.negf %257 : vector<2x256xf32>
    %259 = math.exp %258 : vector<2x256xf32>
    %cst_44 = arith.constant 1.000000e+00 : f32
    %260 = vector.broadcast %cst_44 : f32 to vector<2x256xf32>
    %261 = arith.addf %260, %259 : vector<2x256xf32>
    %262 = arith.divf %260, %261 : vector<2x256xf32>
    %263 = math.tanh %257 : vector<2x256xf32>
    %264 = vector.extract_strided_slice %262 {offsets = [0, 32], sizes = [2, 32], strides = [1, 1]} : vector<2x256xf32> to vector<2x32xf32>
    %265 = arith.mulf %264, %235 : vector<2x32xf32>
    %266 = vector.extract_strided_slice %262 {offsets = [0, 0], sizes = [2, 32], strides = [1, 1]} : vector<2x256xf32> to vector<2x32xf32>
    %267 = vector.extract_strided_slice %263 {offsets = [0, 64], sizes = [2, 32], strides = [1, 1]} : vector<2x256xf32> to vector<2x32xf32>
    %268 = arith.mulf %266, %267 : vector<2x32xf32>
    %269 = arith.addf %265, %268 : vector<2x32xf32>
    %270 = vector.extract_strided_slice %262 {offsets = [0, 96], sizes = [2, 32], strides = [1, 1]} : vector<2x256xf32> to vector<2x32xf32>
    %271 = math.tanh %269 : vector<2x32xf32>
    %272 = arith.mulf %270, %271 : vector<2x32xf32>
    %273 = vector.extract_strided_slice %262 {offsets = [0, 160], sizes = [2, 32], strides = [1, 1]} : vector<2x256xf32> to vector<2x32xf32>
    %274 = arith.mulf %273, %244 : vector<2x32xf32>
    %275 = vector.extract_strided_slice %262 {offsets = [0, 128], sizes = [2, 32], strides = [1, 1]} : vector<2x256xf32> to vector<2x32xf32>
    %276 = vector.extract_strided_slice %263 {offsets = [0, 192], sizes = [2, 32], strides = [1, 1]} : vector<2x256xf32> to vector<2x32xf32>
    %277 = arith.mulf %275, %276 : vector<2x32xf32>
    %278 = arith.addf %274, %277 : vector<2x32xf32>
    %279 = vector.extract_strided_slice %262 {offsets = [0, 224], sizes = [2, 32], strides = [1, 1]} : vector<2x256xf32> to vector<2x32xf32>
    %280 = math.tanh %278 : vector<2x32xf32>
    %281 = arith.mulf %279, %280 : vector<2x32xf32>
    %282 = arith.truncf %272 : vector<2x32xf32> to vector<2x32xbf16>
    %cst_45 = arith.constant dense<0.000000e+00> : vector<2x16xf32>
    %283 = tpu.matmul %282, %8, %cst_45 {dimension_numbers = #tpu.dot_dimension_numbers<[1], [0], [0], [1], [0, 0, 1, 1], [], []>} : vector<2x32xbf16>, vector<32x16xbf16>, vector<2x16xf32> -> vector<2x16xf32>
    %284 = arith.truncf %281 : vector<2x32xf32> to vector<2x32xbf16>
    %cst_46 = arith.constant dense<0.000000e+00> : vector<2x16xf32>
    %285 = tpu.matmul %284, %9, %cst_46 {dimension_numbers = #tpu.dot_dimension_numbers<[1], [0], [0], [1], [0, 0, 1, 1], [], []>} : vector<2x32xbf16>, vector<32x16xbf16>, vector<2x16xf32> -> vector<2x16xf32>
    %286 = arith.truncf %272 : vector<2x32xf32> to vector<2x32xbf16>
    %c0_47 = arith.constant 0 : index
    %c0_48 = arith.constant 0 : index
    %287 = vector.load %arg6[%c0_47, %c0_48] : memref<32x16xbf16, #tpu.memory_space<vmem>>, vector<32x16xbf16>
    %cst_49 = arith.constant dense<0.000000e+00> : vector<2x16xf32>
    %288 = tpu.matmul %286, %287, %cst_49 {dimension_numbers = #tpu.dot_dimension_numbers<[1], [0], [0], [1], [0, 0, 1, 1], [], []>} : vector<2x32xbf16>, vector<32x16xbf16>, vector<2x16xf32> -> vector<2x16xf32>
    %289 = arith.truncf %43 : vector<2x32xf32> to vector<2x32xbf16>
    %c0_50 = arith.constant 0 : index
    %c0_51 = arith.constant 0 : index
    %290 = vector.load %arg7[%c0_50, %c0_51] : memref<32x16xbf16, #tpu.memory_space<vmem>>, vector<32x16xbf16>
    %cst_52 = arith.constant dense<0.000000e+00> : vector<2x16xf32>
    %291 = tpu.matmul %289, %290, %cst_52 {dimension_numbers = #tpu.dot_dimension_numbers<[1], [0], [0], [1], [0, 0, 1, 1], [], []>} : vector<2x32xbf16>, vector<32x16xbf16>, vector<2x16xf32> -> vector<2x16xf32>
    %292 = arith.addf %288, %291 : vector<2x16xf32>
    %c0_53 = arith.constant 0 : index
    %c0_54 = arith.constant 0 : index
    %293 = vector.load %arg8[%c0_53, %c0_54] : memref<1x16xf32, #tpu.memory_space<vmem>>, vector<1x16xf32>
    %294 = vector.broadcast %293 : vector<1x16xf32> to vector<2x16xf32>
    %295 = arith.addf %292, %294 : vector<2x16xf32>
    %c0_55 = arith.constant 0 : index
    %c0_56 = arith.constant 0 : index
    %296 = vector.load %arg9[%c0_55, %c0_56] : memref<1x16xf32, #tpu.memory_space<vmem>>, vector<1x16xf32>
    %297 = arith.addf %45, %285 : vector<2x16xf32>
    %298 = arith.addf %297, %295 : vector<2x16xf32>
    %299 = math.tanh %298 : vector<2x16xf32>
    %300 = vector.broadcast %296 : vector<1x16xf32> to vector<2x16xf32>
    %301 = arith.mulf %299, %300 : vector<2x16xf32>
    %cst_57 = arith.constant dense<0.000000e+00> : vector<2xf32>
    %302 = vector.multi_reduction <add>, %301, %cst_57 [1] : vector<2x16xf32> to vector<2xf32>
    %303 = vector.shape_cast %302 : vector<2xf32> to vector<2x1xf32>
    %304 = arith.addf %79, %251 : vector<2x16xf32>
    %305 = arith.addf %304, %295 : vector<2x16xf32>
    %306 = math.tanh %305 : vector<2x16xf32>
    %307 = vector.broadcast %296 : vector<1x16xf32> to vector<2x16xf32>
    %308 = arith.mulf %306, %307 : vector<2x16xf32>
    %cst_58 = arith.constant dense<0.000000e+00> : vector<2xf32>
    %309 = vector.multi_reduction <add>, %308, %cst_58 [1] : vector<2x16xf32> to vector<2xf32>
    %310 = vector.shape_cast %309 : vector<2xf32> to vector<2x1xf32>
    %311 = arith.addf %113, %217 : vector<2x16xf32>
    %312 = arith.addf %311, %295 : vector<2x16xf32>
    %313 = math.tanh %312 : vector<2x16xf32>
    %314 = vector.broadcast %296 : vector<1x16xf32> to vector<2x16xf32>
    %315 = arith.mulf %313, %314 : vector<2x16xf32>
    %cst_59 = arith.constant dense<0.000000e+00> : vector<2xf32>
    %316 = vector.multi_reduction <add>, %315, %cst_59 [1] : vector<2x16xf32> to vector<2xf32>
    %317 = vector.shape_cast %316 : vector<2xf32> to vector<2x1xf32>
    %318 = arith.addf %147, %183 : vector<2x16xf32>
    %319 = arith.addf %318, %295 : vector<2x16xf32>
    %320 = math.tanh %319 : vector<2x16xf32>
    %321 = vector.broadcast %296 : vector<1x16xf32> to vector<2x16xf32>
    %322 = arith.mulf %320, %321 : vector<2x16xf32>
    %cst_60 = arith.constant dense<0.000000e+00> : vector<2xf32>
    %323 = vector.multi_reduction <add>, %322, %cst_60 [1] : vector<2x16xf32> to vector<2xf32>
    %324 = vector.shape_cast %323 : vector<2xf32> to vector<2x1xf32>
    %325 = arith.addf %181, %149 : vector<2x16xf32>
    %326 = arith.addf %325, %295 : vector<2x16xf32>
    %327 = math.tanh %326 : vector<2x16xf32>
    %328 = vector.broadcast %296 : vector<1x16xf32> to vector<2x16xf32>
    %329 = arith.mulf %327, %328 : vector<2x16xf32>
    %cst_61 = arith.constant dense<0.000000e+00> : vector<2xf32>
    %330 = vector.multi_reduction <add>, %329, %cst_61 [1] : vector<2x16xf32> to vector<2xf32>
    %331 = vector.shape_cast %330 : vector<2xf32> to vector<2x1xf32>
    %332 = arith.addf %215, %115 : vector<2x16xf32>
    %333 = arith.addf %332, %295 : vector<2x16xf32>
    %334 = math.tanh %333 : vector<2x16xf32>
    %335 = vector.broadcast %296 : vector<1x16xf32> to vector<2x16xf32>
    %336 = arith.mulf %334, %335 : vector<2x16xf32>
    %cst_62 = arith.constant dense<0.000000e+00> : vector<2xf32>
    %337 = vector.multi_reduction <add>, %336, %cst_62 [1] : vector<2x16xf32> to vector<2xf32>
    %338 = vector.shape_cast %337 : vector<2xf32> to vector<2x1xf32>
    %339 = arith.addf %249, %81 : vector<2x16xf32>
    %340 = arith.addf %339, %295 : vector<2x16xf32>
    %341 = math.tanh %340 : vector<2x16xf32>
    %342 = vector.broadcast %296 : vector<1x16xf32> to vector<2x16xf32>
    %343 = arith.mulf %341, %342 : vector<2x16xf32>
    %cst_63 = arith.constant dense<0.000000e+00> : vector<2xf32>
    %344 = vector.multi_reduction <add>, %343, %cst_63 [1] : vector<2x16xf32> to vector<2xf32>
    %345 = vector.shape_cast %344 : vector<2xf32> to vector<2x1xf32>
    %346 = arith.addf %283, %47 : vector<2x16xf32>
    %347 = arith.addf %346, %295 : vector<2x16xf32>
    %348 = math.tanh %347 : vector<2x16xf32>
    %349 = vector.broadcast %296 : vector<1x16xf32> to vector<2x16xf32>
    %350 = arith.mulf %348, %349 : vector<2x16xf32>
    %cst_64 = arith.constant dense<0.000000e+00> : vector<2xf32>
    %351 = vector.multi_reduction <add>, %350, %cst_64 [1] : vector<2x16xf32> to vector<2xf32>
    %352 = vector.shape_cast %351 : vector<2xf32> to vector<2x1xf32>
    %353 = arith.maximumf %303, %310 : vector<2x1xf32>
    %354 = arith.maximumf %353, %317 : vector<2x1xf32>
    %355 = arith.maximumf %354, %324 : vector<2x1xf32>
    %356 = arith.maximumf %355, %331 : vector<2x1xf32>
    %357 = arith.maximumf %356, %338 : vector<2x1xf32>
    %358 = arith.maximumf %357, %345 : vector<2x1xf32>
    %359 = arith.maximumf %358, %352 : vector<2x1xf32>
    %360 = arith.subf %303, %359 : vector<2x1xf32>
    %361 = math.exp %360 : vector<2x1xf32>
    %362 = arith.subf %310, %359 : vector<2x1xf32>
    %363 = math.exp %362 : vector<2x1xf32>
    %364 = arith.subf %317, %359 : vector<2x1xf32>
    %365 = math.exp %364 : vector<2x1xf32>
    %366 = arith.subf %324, %359 : vector<2x1xf32>
    %367 = math.exp %366 : vector<2x1xf32>
    %368 = arith.subf %331, %359 : vector<2x1xf32>
    %369 = math.exp %368 : vector<2x1xf32>
    %370 = arith.subf %338, %359 : vector<2x1xf32>
    %371 = math.exp %370 : vector<2x1xf32>
    %372 = arith.subf %345, %359 : vector<2x1xf32>
    %373 = math.exp %372 : vector<2x1xf32>
    %374 = arith.subf %352, %359 : vector<2x1xf32>
    %375 = math.exp %374 : vector<2x1xf32>
    %376 = arith.addf %361, %363 : vector<2x1xf32>
    %377 = arith.addf %376, %365 : vector<2x1xf32>
    %378 = arith.addf %377, %367 : vector<2x1xf32>
    %379 = arith.addf %378, %369 : vector<2x1xf32>
    %380 = arith.addf %379, %371 : vector<2x1xf32>
    %381 = arith.addf %380, %373 : vector<2x1xf32>
    %382 = arith.addf %381, %375 : vector<2x1xf32>
    %cst_65 = arith.constant 1.000000e+00 : f32
    %383 = vector.broadcast %cst_65 : f32 to vector<2x1xf32>
    %384 = arith.divf %383, %382 : vector<2x1xf32>
    %385 = vector.broadcast %361 : vector<2x1xf32> to vector<2x32xf32>
    %386 = arith.mulf %385, %34 : vector<2x32xf32>
    %387 = vector.broadcast %361 : vector<2x1xf32> to vector<2x32xf32>
    %388 = arith.mulf %387, %281 : vector<2x32xf32>
    %389 = vector.broadcast %363 : vector<2x1xf32> to vector<2x32xf32>
    %390 = arith.mulf %389, %68 : vector<2x32xf32>
    %391 = arith.addf %386, %390 : vector<2x32xf32>
    %392 = vector.broadcast %363 : vector<2x1xf32> to vector<2x32xf32>
    %393 = arith.mulf %392, %247 : vector<2x32xf32>
    %394 = arith.addf %388, %393 : vector<2x32xf32>
    %395 = vector.broadcast %365 : vector<2x1xf32> to vector<2x32xf32>
    %396 = arith.mulf %395, %102 : vector<2x32xf32>
    %397 = arith.addf %391, %396 : vector<2x32xf32>
    %398 = vector.broadcast %365 : vector<2x1xf32> to vector<2x32xf32>
    %399 = arith.mulf %398, %213 : vector<2x32xf32>
    %400 = arith.addf %394, %399 : vector<2x32xf32>
    %401 = vector.broadcast %367 : vector<2x1xf32> to vector<2x32xf32>
    %402 = arith.mulf %401, %136 : vector<2x32xf32>
    %403 = arith.addf %397, %402 : vector<2x32xf32>
    %404 = vector.broadcast %367 : vector<2x1xf32> to vector<2x32xf32>
    %405 = arith.mulf %404, %179 : vector<2x32xf32>
    %406 = arith.addf %400, %405 : vector<2x32xf32>
    %407 = vector.broadcast %369 : vector<2x1xf32> to vector<2x32xf32>
    %408 = arith.mulf %407, %170 : vector<2x32xf32>
    %409 = arith.addf %403, %408 : vector<2x32xf32>
    %410 = vector.broadcast %369 : vector<2x1xf32> to vector<2x32xf32>
    %411 = arith.mulf %410, %145 : vector<2x32xf32>
    %412 = arith.addf %406, %411 : vector<2x32xf32>
    %413 = vector.broadcast %371 : vector<2x1xf32> to vector<2x32xf32>
    %414 = arith.mulf %413, %204 : vector<2x32xf32>
    %415 = arith.addf %409, %414 : vector<2x32xf32>
    %416 = vector.broadcast %371 : vector<2x1xf32> to vector<2x32xf32>
    %417 = arith.mulf %416, %111 : vector<2x32xf32>
    %418 = arith.addf %412, %417 : vector<2x32xf32>
    %419 = vector.broadcast %373 : vector<2x1xf32> to vector<2x32xf32>
    %420 = arith.mulf %419, %238 : vector<2x32xf32>
    %421 = arith.addf %415, %420 : vector<2x32xf32>
    %422 = vector.broadcast %373 : vector<2x1xf32> to vector<2x32xf32>
    %423 = arith.mulf %422, %77 : vector<2x32xf32>
    %424 = arith.addf %418, %423 : vector<2x32xf32>
    %425 = vector.broadcast %375 : vector<2x1xf32> to vector<2x32xf32>
    %426 = arith.mulf %425, %272 : vector<2x32xf32>
    %427 = arith.addf %421, %426 : vector<2x32xf32>
    %428 = vector.broadcast %375 : vector<2x1xf32> to vector<2x32xf32>
    %429 = arith.mulf %428, %43 : vector<2x32xf32>
    %430 = arith.addf %424, %429 : vector<2x32xf32>
    %431 = vector.broadcast %384 : vector<2x1xf32> to vector<2x32xf32>
    %432 = arith.mulf %427, %431 : vector<2x32xf32>
    %433 = vector.broadcast %384 : vector<2x1xf32> to vector<2x32xf32>
    %434 = arith.mulf %430, %433 : vector<2x32xf32>
    %435 = tpu.concatenate %361, %363, %365, %367, %369, %371, %373, %375 in 1 : vector<2x1xf32>, vector<2x1xf32>, vector<2x1xf32>, vector<2x1xf32>, vector<2x1xf32>, vector<2x1xf32>, vector<2x1xf32>, vector<2x1xf32> -> vector<2x8xf32>
    %436 = vector.broadcast %384 : vector<2x1xf32> to vector<2x8xf32>
    %437 = arith.mulf %435, %436 : vector<2x8xf32>
    %c0_66 = arith.constant 0 : index
    %c0_67 = arith.constant 0 : index
    %438 = vector.load %arg15[%c0_66, %c0_67] : memref<2x8xf32, #tpu.memory_space<vmem>>, vector<2x8xf32>
    tpu.vector_store %arg15[%c0_66, %c0_67], %437 {strides = array<i32>} : memref<2x8xf32, #tpu.memory_space<vmem>>, vector<2x8xf32>,
    %439 = arith.truncf %432 : vector<2x32xf32> to vector<2x32xbf16>
    %c0_68 = arith.constant 0 : index
    %c0_69 = arith.constant 0 : index
    %440 = vector.load %arg10[%c0_68, %c0_69] : memref<32x64xbf16, #tpu.memory_space<vmem>>, vector<32x64xbf16>
    %cst_70 = arith.constant dense<0.000000e+00> : vector<2x64xf32>
    %441 = tpu.matmul %439, %440, %cst_70 {dimension_numbers = #tpu.dot_dimension_numbers<[1], [0], [0], [1], [0, 0, 1, 1], [], []>} : vector<2x32xbf16>, vector<32x64xbf16>, vector<2x64xf32> -> vector<2x64xf32>
    %442 = arith.truncf %434 : vector<2x32xf32> to vector<2x32xbf16>
    %c0_71 = arith.constant 0 : index
    %c0_72 = arith.constant 0 : index
    %443 = vector.load %arg11[%c0_71, %c0_72] : memref<32x64xbf16, #tpu.memory_space<vmem>>, vector<32x64xbf16>
    %cst_73 = arith.constant dense<0.000000e+00> : vector<2x64xf32>
    %444 = tpu.matmul %442, %443, %cst_73 {dimension_numbers = #tpu.dot_dimension_numbers<[1], [0], [0], [1], [0, 0, 1, 1], [], []>} : vector<2x32xbf16>, vector<32x64xbf16>, vector<2x64xf32> -> vector<2x64xf32>
    %445 = arith.addf %441, %444 : vector<2x64xf32>
    %c0_74 = arith.constant 0 : index
    %c0_75 = arith.constant 0 : index
    %446 = vector.load %arg12[%c0_74, %c0_75] : memref<1x64xf32, #tpu.memory_space<vmem>>, vector<1x64xf32>
    %447 = vector.broadcast %446 : vector<1x64xf32> to vector<2x64xf32>
    %448 = arith.addf %445, %447 : vector<2x64xf32>
    %c0_76 = arith.constant 0 : index
    %c0_77 = arith.constant 0 : index
    %449 = vector.load %arg16[%c0_76, %c0_77] : memref<2x64xf32, #tpu.memory_space<vmem>>, vector<2x64xf32>
    tpu.vector_store %arg16[%c0_76, %c0_77], %448 {strides = array<i32>} : memref<2x64xf32, #tpu.memory_space<vmem>>, vector<2x64xf32>,
    %450 = arith.truncf %448 : vector<2x64xf32> to vector<2x64xbf16>
    %c0_78 = arith.constant 0 : index
    %c0_79 = arith.constant 0 : index
    %451 = vector.load %arg13[%c0_78, %c0_79] : memref<64x4xbf16, #tpu.memory_space<vmem>>, vector<64x4xbf16>
    %cst_80 = arith.constant dense<0.000000e+00> : vector<2x4xf32>
    %452 = tpu.matmul %450, %451, %cst_80 {dimension_numbers = #tpu.dot_dimension_numbers<[1], [0], [0], [1], [0, 0, 1, 1], [], []>} : vector<2x64xbf16>, vector<64x4xbf16>, vector<2x4xf32> -> vector<2x4xf32>
    %c0_81 = arith.constant 0 : index
    %c0_82 = arith.constant 0 : index
    %453 = vector.load %arg14[%c0_81, %c0_82] : memref<1x4xf32, #tpu.memory_space<vmem>>, vector<1x4xf32>
    %454 = vector.broadcast %453 : vector<1x4xf32> to vector<2x4xf32>
    %455 = arith.addf %452, %454 : vector<2x4xf32>
    %cst_83 = arith.constant dense<0xFF800000> : vector<2xf32>
    %456 = vector.multi_reduction <maximumf>, %455, %cst_83 [1] : vector<2x4xf32> to vector<2xf32>
    %457 = vector.shape_cast %456 : vector<2xf32> to vector<2x1xf32>
    %458 = vector.broadcast %457 : vector<2x1xf32> to vector<2x4xf32>
    %459 = arith.subf %455, %458 : vector<2x4xf32>
    %460 = math.exp %459 : vector<2x4xf32>
    %cst_84 = arith.constant dense<0.000000e+00> : vector<2xf32>
    %461 = vector.multi_reduction <add>, %460, %cst_84 [1] : vector<2x4xf32> to vector<2xf32>
    %462 = vector.shape_cast %461 : vector<2xf32> to vector<2x1xf32>
    %463 = vector.broadcast %462 : vector<2x1xf32> to vector<2x4xf32>
    %464 = arith.divf %460, %463 : vector<2x4xf32>
    %c0_85 = arith.constant 0 : index
    %c0_86 = arith.constant 0 : index
    %465 = vector.load %arg17[%c0_85, %c0_86] : memref<2x4xf32, #tpu.memory_space<vmem>>, vector<2x4xf32>
    tpu.vector_store %arg17[%c0_85, %c0_86], %464 {strides = array<i32>} : memref<2x4xf32, #tpu.memory_space<vmem>>, vector<2x4xf32>,
    return
  }
}

</mosaic_0001>

<llo_original>
// kernel: tpu_custom_call.1
$region0: #{tpu_custom_call.1}
  #allocation0 [shape = 'u32[]', space=smem, size = 0x4, offset = 0x4, fixed_abs, tag = 'smem constant byte address 0x4 - core index']
  #allocation1 [shape = 'u32[144,128]{1,0:T(1,128)}', space=vmem, size = 0x12000, scoped, tag = 'internal scratch']
  %s0 = inlined_call_operand.hbm [shape: bf16[16,64], index: 0, kind: input, shape index: {}]
  %s1 = inlined_call_operand.vmem [shape: bf16[64,256], index: 1, kind: input, shape index: {}]
  %s2 = inlined_call_operand.hbm [shape: f32[1,256], index: 2, kind: input, shape index: {}]
  %s3 = inlined_call_operand.vmem [shape: bf16[64,256], index: 3, kind: input, shape index: {}]
  %s4 = inlined_call_operand.vmem [shape: bf16[32,16], index: 4, kind: input, shape index: {}]
  %s5 = inlined_call_operand.vmem [shape: bf16[32,16], index: 5, kind: input, shape index: {}]
  %s6 = inlined_call_operand.vmem [shape: bf16[32,16], index: 6, kind: input, shape index: {}]
  %s7 = inlined_call_operand.vmem [shape: bf16[32,16], index: 7, kind: input, shape index: {}]
  %s8 = inlined_call_operand.hbm [shape: f32[1,16], index: 8, kind: input, shape index: {}]
  %s9 = inlined_call_operand.vmem [shape: f32[1,16], index: 9, kind: input, shape index: {}]
  %s10 = inlined_call_operand.vmem [shape: bf16[32,64], index: 10, kind: input, shape index: {}]
  %s11 = inlined_call_operand.vmem [shape: bf16[32,64], index: 11, kind: input, shape index: {}]
  %s12 = inlined_call_operand.vmem [shape: f32[1,64], index: 12, kind: input, shape index: {}]
  %s13 = inlined_call_operand.vmem [shape: bf16[64,4], index: 13, kind: input, shape index: {}]
  %s14 = inlined_call_operand.vmem [shape: f32[1,4], index: 14, kind: input, shape index: {}]
  %s15 = inlined_call_operand.hbm [shape: f32[2,8], index: 15, kind: output, shape index: {0}]
  %s16 = inlined_call_operand.hbm [shape: f32[2,64], index: 16, kind: output, shape index: {1}]
  %s17 = inlined_call_operand.hbm [shape: f32[2,4], index: 17, kind: output, shape index: {2}]
  %18 = xla_tuple %s15, %s16, %s17
  %s19 = sld [smem:[#allocation0]]
  $region98: #{tpu_custom_call.1} parent=0
    _
  %s21 = ssub.s32 1, %s19
  %s22 = scalar_select 0, %s21, %s19
  $region1: #{tpu_custom_call.1} parent=0
    #allocation2 [shape = 'u8[4096]{0}', space=vmem, size = 0x1000, scoped, tag = 'input window, operand 0, single buffered']
    #allocation3 [shape = 's32[1]{0}', space=sflag, size = 0x4, scoped, tag = 'scoped memory for tpu_custom_call.1']
    #allocation4 [shape = 's32[1]{0}', space=sflag, size = 0x4, scoped, tag = 'scoped memory for tpu_custom_call.1']
    #allocation5 [shape = 'u8[1024]{0}', space=vmem, size = 0x400, scoped, tag = 'input window, operand 2, single buffered']
    #allocation6 [shape = 's32[1]{0}', space=sflag, size = 0x4, scoped, tag = 'scoped memory for tpu_custom_call.1']
    #allocation7 [shape = 'u8[512]{0}', space=vmem, size = 0x400, scoped, tag = 'input window, operand 8, single buffered']
    #allocation8 [shape = 'u8[1024]{0}', space=vmem, size = 0x400, scoped, tag = 'output window, operand 0, single buffered']
    #allocation9 [shape = 'u8[1024]{0}', space=vmem, size = 0x400, scoped, tag = 'output window, operand 1, single buffered']
    #allocation10 [shape = 's32[1]{0}', space=sflag, size = 0x4, scoped, tag = 'scoped memory for tpu_custom_call.1']
    #allocation11 [shape = 'u8[1024]{0}', space=vmem, size = 0x400, scoped, tag = 'output window, operand 2, single buffered']
    %23 = vsyncpa [#allocation3], 0
    %24 = vsyncpa [#allocation6], 0
    %25 = vsyncpa [#allocation4], 0
    %26 = vsyncpa [#allocation10], 0
    // Predicated region
    $region2: #{tpu_custom_call.1} parent=1 // pred_check
      _
    $region3: #{tpu_custom_call.1} parent=1 // pred_check_branch
      %28 = sbr.rel (0) target = $region5
    $region4: #{tpu_custom_call.1} parent=1 // pred_region
      %s30 = ssub.s32 128, 128
      %31 = vsyncadd [#allocation3], %s30
      %s32 = sshll.u32 [#allocation2], 4
      %s33 = int_to_ptr.vmem [resolvable:$true] %s32
      %38 = dma.hbm_to_vmem [thread:$0]  %s0, 128, %s33, [#allocation3], 64, 64, 4
    $region5: #{tpu_custom_call.1} parent=1 // pred_fallthru
      _
    // Predicated region
    $region6: #{tpu_custom_call.1} parent=1 // pred_check
      _
    $region7: #{tpu_custom_call.1} parent=1 // pred_check_branch
      %40 = sbr.rel (0) target = $region9
    $region8: #{tpu_custom_call.1} parent=1 // pred_region
      _
    $region9: #{tpu_custom_call.1} parent=1 // pred_fallthru
      _
    // Predicated region
    $region10: #{tpu_custom_call.1} parent=1 // pred_check
      _
    $region11: #{tpu_custom_call.1} parent=1 // pred_check_branch
      %42 = sbr.rel (0) target = $region13
    $region12: #{tpu_custom_call.1} parent=1 // pred_region
      %s44 = ssub.s32 32, 32
      %45 = vsyncadd [#allocation6], %s44
      %s47 = sshll.u32 [#allocation5], 4
      %s48 = int_to_ptr.vmem [resolvable:$true] %s47
      %50 = dma.hbm_to_vmem [thread:$0]  %s2, 32, %s48, [#allocation6]
    $region13: #{tpu_custom_call.1} parent=1 // pred_fallthru
      _
    // Predicated region
    $region14: #{tpu_custom_call.1} parent=1 // pred_check
      _
    $region15: #{tpu_custom_call.1} parent=1 // pred_check_branch
      %52 = sbr.rel (0) target = $region17
    $region16: #{tpu_custom_call.1} parent=1 // pred_region
      _
    $region17: #{tpu_custom_call.1} parent=1 // pred_fallthru
      _
    // Predicated region
    $region18: #{tpu_custom_call.1} parent=1 // pred_check
      _
    $region19: #{tpu_custom_call.1} parent=1 // pred_check_branch
      %54 = sbr.rel (0) target = $region21
    $region20: #{tpu_custom_call.1} parent=1 // pred_region
      _
    $region21: #{tpu_custom_call.1} parent=1 // pred_fallthru
      _
    // Predicated region
    $region22: #{tpu_custom_call.1} parent=1 // pred_check
      _
    $region23: #{tpu_custom_call.1} parent=1 // pred_check_branch
      %56 = sbr.rel (0) target = $region25
    $region24: #{tpu_custom_call.1} parent=1 // pred_region
      _
    $region25: #{tpu_custom_call.1} parent=1 // pred_fallthru
      _
    // Predicated region
    $region26: #{tpu_custom_call.1} parent=1 // pred_check
      _
    $region27: #{tpu_custom_call.1} parent=1 // pred_check_branch
      %58 = sbr.rel (0) target = $region29
    $region28: #{tpu_custom_call.1} parent=1 // pred_region
      _
    $region29: #{tpu_custom_call.1} parent=1 // pred_fallthru
      _
    // Predicated region
    $region30: #{tpu_custom_call.1} parent=1 // pred_check
      _
    $region31: #{tpu_custom_call.1} parent=1 // pred_check_branch
      %60 = sbr.rel (0) target = $region33
    $region32: #{tpu_custom_call.1} parent=1 // pred_region
      _
    $region33: #{tpu_custom_call.1} parent=1 // pred_fallthru
      _
    // Predicated region
    $region34: #{tpu_custom_call.1} parent=1 // pred_check
      _
    $region35: #{tpu_custom_call.1} parent=1 // pred_check_branch
      %62 = sbr.rel (0) target = $region37
    $region36: #{tpu_custom_call.1} parent=1 // pred_region
      %s64 = ssub.s32 16, 16
      %65 = vsyncadd [#allocation6], %s64
      %s67 = sshll.u32 [#allocation7], 4
      %s68 = int_to_ptr.vmem [resolvable:$true] %s67
      %70 = dma.hbm_to_vmem [thread:$0]  %s8, 16, %s68, [#allocation6]
    $region37: #{tpu_custom_call.1} parent=1 // pred_fallthru
      _
    // Predicated region
    $region38: #{tpu_custom_call.1} parent=1 // pred_check
      _
    $region39: #{tpu_custom_call.1} parent=1 // pred_check_branch
      %72 = sbr.rel (0) target = $region41
    $region40: #{tpu_custom_call.1} parent=1 // pred_region
      _
    $region41: #{tpu_custom_call.1} parent=1 // pred_fallthru
      _
    // Predicated region
    $region42: #{tpu_custom_call.1} parent=1 // pred_check
      _
    $region43: #{tpu_custom_call.1} parent=1 // pred_check_branch
      %74 = sbr.rel (0) target = $region45
    $region44: #{tpu_custom_call.1} parent=1 // pred_region
      _
    $region45: #{tpu_custom_call.1} parent=1 // pred_fallthru
      _
    // Predicated region
    $region46: #{tpu_custom_call.1} parent=1 // pred_check
      _
    $region47: #{tpu_custom_call.1} parent=1 // pred_check_branch
      %76 = sbr.rel (0) target = $region49
    $region48: #{tpu_custom_call.1} parent=1 // pred_region
      _
    $region49: #{tpu_custom_call.1} parent=1 // pred_fallthru
      _
    // Predicated region
    $region50: #{tpu_custom_call.1} parent=1 // pred_check
      _
    $region51: #{tpu_custom_call.1} parent=1 // pred_check_branch
      %78 = sbr.rel (0) target = $region53
    $region52: #{tpu_custom_call.1} parent=1 // pred_region
      _
    $region53: #{tpu_custom_call.1} parent=1 // pred_fallthru
      _
    // Predicated region
    $region54: #{tpu_custom_call.1} parent=1 // pred_check
      _
    $region55: #{tpu_custom_call.1} parent=1 // pred_check_branch
      %80 = sbr.rel (0) target = $region57
    $region56: #{tpu_custom_call.1} parent=1 // pred_region
      _
    $region57: #{tpu_custom_call.1} parent=1 // pred_fallthru
      _
    // Predicated region
    $region58: #{tpu_custom_call.1} parent=1 // pred_check
      _
    $region59: #{tpu_custom_call.1} parent=1 // pred_check_branch
      %82 = sbr.rel (0) target = $region61
    $region60: #{tpu_custom_call.1} parent=1 // pred_region
      _
    $region61: #{tpu_custom_call.1} parent=1 // pred_fallthru
      _
    // Predicated region
    $region62: #{tpu_custom_call.1} parent=1 // pred_check
      _
    $region63: #{tpu_custom_call.1} parent=1 // pred_check_branch
      %84 = sbr.rel (0) target = $region65
    $region64: #{tpu_custom_call.1} parent=1 // pred_region
      %85 = dma.done [#allocation3], 128
    $region65: #{tpu_custom_call.1} parent=1 // pred_fallthru
      _
    // Predicated region
    $region66: #{tpu_custom_call.1} parent=1 // pred_check
      _
    $region67: #{tpu_custom_call.1} parent=1 // pred_check_branch
      %87 = sbr.rel (0) target = $region69
    $region68: #{tpu_custom_call.1} parent=1 // pred_region
      %88 = dma.done [#allocation6], 32
    $region69: #{tpu_custom_call.1} parent=1 // pred_fallthru
      _
    // Predicated region
    $region70: #{tpu_custom_call.1} parent=1 // pred_check
      _
    $region71: #{tpu_custom_call.1} parent=1 // pred_check_branch
      %90 = sbr.rel (0) target = $region73
    $region72: #{tpu_custom_call.1} parent=1 // pred_region
      %91 = dma.done [#allocation6], 16
    $region73: #{tpu_custom_call.1} parent=1 // pred_fallthru
      _
    %v93 = vld [vmem:[#allocation2] sm:$0xf]
    %v94 = vld [vmem:[#allocation2 + $0x4] sm:$0xf]
    %v95 = vld [vmem:[%s1] sm:$0xff]
    %v96 = vld [vmem:[%s1 + $0x8] sm:$0xff]
    %v97 = vld [vmem:[%s1 + $0x10] sm:$0xff]
    %v98 = vld [vmem:[%s1 + $0x18] sm:$0xff]
    %v99 = vld [vmem:[%s1 + $0x20] sm:$0xff]
    %v100 = vld [vmem:[%s1 + $0x28] sm:$0xff]
    %v101 = vld [vmem:[%s1 + $0x30] sm:$0xff]
    %v102 = vld [vmem:[%s1 + $0x38] sm:$0xff]
    %v103 = vld [vmem:[#allocation5] sm:$0x3]
    %v105 = vlaneseq
    %v106 = vshrl.u32 %v105, 7
    %v107 = vsub.s32 0, %v106
    %v108 = vrot.slane %v103, %v107
    %v109 = vlaneseq
    %v110 = vshrl.u32 %v109, 7
    %v111 = vsub.s32 1, %v110
    %v112 = vrot.slane %v103, %v111
    %v117 = vunpack.c.l.b16 %v93
    %v118 = vunpack.c.l.b16 %v94
    %v119 = vpack.c.b16 %v118, %v117
    %v128 = vunpack.c.l.b16 %v95
    %v129 = vunpack.c.h.b16 %v95
    %v130 = vunpack.c.l.b16 %v96
    %v131 = vunpack.c.h.b16 %v96
    %v132 = vunpack.c.l.b16 %v97
    %v133 = vunpack.c.h.b16 %v97
    %v134 = vunpack.c.l.b16 %v98
    %v135 = vunpack.c.h.b16 %v98
    %v136 = vunpack.c.l.b16 %v99
    %v137 = vunpack.c.h.b16 %v99
    %v138 = vunpack.c.l.b16 %v100
    %v139 = vunpack.c.h.b16 %v100
    %v140 = vunpack.c.l.b16 %v101
    %v141 = vunpack.c.h.b16 %v101
    %v142 = vunpack.c.l.b16 %v102
    %v143 = vunpack.c.h.b16 %v102
    %v144 = vpack.c.b16 %v130, %v128
    %v145 = vpack.c.b16 %v131, %v129
    %v146 = vpack.c.b16 %v134, %v132
    %v147 = vpack.c.b16 %v135, %v133
    %v148 = vpack.c.b16 %v138, %v136
    %v149 = vpack.c.b16 %v139, %v137
    %v150 = vpack.c.b16 %v142, %v140
    %v151 = vpack.c.b16 %v143, %v141
    %vm160 = vcmask 523264
    %v162 = vsel %vm160, %v119, 0
    %164 = vmatprep.subr.bf16.mxu0 %v145
    %165 = vmatpush1.bf16.msra.mxu0 %v144
    %166 = vmatprep.subr.bf16.mxu0 %v147
    %167 = vmatpush1.bf16.msra.mxu0 %v146
    %168 = vmatprep.subr.bf16.mxu0 %v149
    %169 = vmatpush1.bf16.msra.mxu0 %v148
    %170 = vmatprep.subr.bf16.mxu0 %v151
    %171 = vmatpush1.bf16.msra.mxu0 %v150
    %172 = vmatprep.subr.bf16.mxu0 0
    %173 = vmatpush1.bf16.msra.mxu0 0
    %174 = vmatprep.subr.bf16.mxu0 0
    %175 = vmatpush1.bf16.msra.mxu0 0
    %176 = vmatprep.subr.bf16.mxu0 0
    %177 = vmatpush1.bf16.msra.mxu0 0
    %178 = vmatprep.subr.bf16.mxu0 0
    %179 = vmatpush1.bf16.msra.mxu0 0
    %180 = vmatprep.subr.bf16.mxu0 0
    %181 = vmatpush1.bf16.msra.mxu0 0
    %182 = vmatprep.subr.bf16.mxu0 0
    %183 = vmatpush1.bf16.msra.mxu0 0
    %184 = vmatprep.subr.bf16.mxu0 0
    %185 = vmatpush1.bf16.msra.mxu0 0
    %186 = vmatprep.subr.bf16.mxu0 0
    %187 = vmatpush1.bf16.msra.mxu0 0
    %188 = vmatprep.subr.bf16.mxu0 0
    %189 = vmatpush1.bf16.msra.mxu0 0
    %190 = vmatprep.subr.bf16.mxu0 0
    %191 = vmatpush1.bf16.msra.mxu0 0
    %192 = vmatprep.subr.bf16.mxu0 0
    %193 = vmatpush1.bf16.msra.mxu0 0
    %194 = vmatprep.subr.bf16.mxu0 0
    %195 = vmatpush1.bf16.msra.mxu0 0
    %196 = vmatprep.mubr.bf16.mxu0 0
    %197 = vmatmul.mubr.bf16.gmra.mrb[0].mxu0 %v162
    %v198 = vpop.f32.mrb[0].mxu0
    %v199 = vadd.f32 %v108, %v198
    %v200 = vpop.f32.mrb[0].mxu0
    %v201 = vadd.f32 %v112, %v200
    %v202 = vpop.f32.mrb[0].mxu0
    %v203 = vadd.f32 %v108, %v202
    %v204 = vpop.f32.mrb[0].mxu0
    %v205 = vadd.f32 %v112, %v204
    %206 = vdwg.mxu0
    %v211 = vcombine.low %v199, %v201
    %v212 = vcombine.high %v199, %v201
    %v214 = vunpack.c.l.s4 1983009808
    %v215 = vunpack.c.0.s8 %v214
    %v216 = vlaneseq
    %v217 = vshrl.u32 %v216, 7
    %v218 = vsub.s32 %v215, %v217
    %v219 = vrot.slane %v211, %v218
    %v221 = vunpack.c.l.s4 1983009808
    %v222 = vunpack.c.0.s8 %v221
    %v223 = vlaneseq
    %v224 = vshrl.u32 %v223, 7
    %v225 = vsub.s32 %v222, %v224
    %v226 = vrot.slane %v212, %v225
    %v227 = vcombine.high %v219, %v219
    %v228 = vcombine.high %v226, %v226
    %v229 = vcombine.low %v203, %v205
    %v230 = vcombine.high %v203, %v205
    %v232 = vunpack.c.l.s4 1983009808
    %v233 = vunpack.c.0.s8 %v232
    %v234 = vlaneseq
    %v235 = vshrl.u32 %v234, 7
    %v236 = vsub.s32 %v233, %v235
    %v237 = vrot.slane %v229, %v236
    %v239 = vunpack.c.l.s4 1983009808
    %v240 = vunpack.c.0.s8 %v239
    %v241 = vlaneseq
    %v242 = vshrl.u32 %v241, 7
    %v243 = vsub.s32 %v240, %v242
    %v244 = vrot.slane %v230, %v243
    %v245 = vcombine.high %v237, %v237
    %v246 = vcombine.high %v244, %v244
    %v255 = vld [vmem:[%s3] sm:$0xff]
    %v256 = vld [vmem:[%s3 + $0x8] sm:$0xff]
    %v257 = vld [vmem:[%s3 + $0x10] sm:$0xff]
    %v258 = vld [vmem:[%s3 + $0x18] sm:$0xff]
    %v259 = vld [vmem:[%s3 + $0x20] sm:$0xff]
    %v260 = vld [vmem:[%s3 + $0x28] sm:$0xff]
    %v261 = vld [vmem:[%s3 + $0x30] sm:$0xff]
    %v262 = vld [vmem:[%s3 + $0x38] sm:$0xff]
    %v263 = vld [vmem:[%s4] sm:$0xf]
    %v264 = vld [vmem:[%s4 + $0x4] sm:$0xf]
    %v265 = vld [vmem:[%s4 + $0x8] sm:$0xf]
    %v266 = vld [vmem:[%s4 + $0xc] sm:$0xf]
    %v267 = vld [vmem:[%s5] sm:$0xf]
    %v268 = vld [vmem:[%s5 + $0x4] sm:$0xf]
    %v269 = vld [vmem:[%s5 + $0x8] sm:$0xf]
    %v270 = vld [vmem:[%s5 + $0xc] sm:$0xf]
    %v271 = vpack.c.bf16 0.0, 0.0
    %v280 = vunpack.c.l.b16 %v255
    %v281 = vunpack.c.h.b16 %v255
    %v282 = vunpack.c.l.b16 %v256
    %v283 = vunpack.c.h.b16 %v256
    %v284 = vunpack.c.l.b16 %v257
    %v285 = vunpack.c.h.b16 %v257
    %v286 = vunpack.c.l.b16 %v258
    %v287 = vunpack.c.h.b16 %v258
    %v288 = vunpack.c.l.b16 %v259
    %v289 = vunpack.c.h.b16 %v259
    %v290 = vunpack.c.l.b16 %v260
    %v291 = vunpack.c.h.b16 %v260
    %v292 = vunpack.c.l.b16 %v261
    %v293 = vunpack.c.h.b16 %v261
    %v294 = vunpack.c.l.b16 %v262
    %v295 = vunpack.c.h.b16 %v262
    %v296 = vpack.c.b16 %v282, %v280
    %v297 = vpack.c.b16 %v283, %v281
    %v298 = vpack.c.b16 %v286, %v284
    %v299 = vpack.c.b16 %v287, %v285
    %v300 = vpack.c.b16 %v290, %v288
    %v301 = vpack.c.b16 %v291, %v289
    %v302 = vpack.c.b16 %v294, %v292
    %v303 = vpack.c.b16 %v295, %v293
    %v313 = vsel %vm160, %v271, 0
    %315 = vmatprep.subr.bf16.mxu0 %v297
    %316 = vmatpush1.bf16.msra.mxu0 %v296
    %317 = vmatprep.subr.bf16.mxu0 %v299
    %318 = vmatpush1.bf16.msra.mxu0 %v298
    %319 = vmatprep.subr.bf16.mxu0 %v301
    %320 = vmatpush1.bf16.msra.mxu0 %v300
    %321 = vmatprep.subr.bf16.mxu0 %v303
    %322 = vmatpush1.bf16.msra.mxu0 %v302
    %323 = vmatprep.subr.bf16.mxu0 0
    %324 = vmatpush1.bf16.msra.mxu0 0
    %325 = vmatprep.subr.bf16.mxu0 0
    %326 = vmatpush1.bf16.msra.mxu0 0
    %327 = vmatprep.subr.bf16.mxu0 0
    %328 = vmatpush1.bf16.msra.mxu0 0
    %329 = vmatprep.subr.bf16.mxu0 0
    %330 = vmatpush1.bf16.msra.mxu0 0
    %331 = vmatprep.subr.bf16.mxu0 0
    %332 = vmatpush1.bf16.msra.mxu0 0
    %333 = vmatprep.subr.bf16.mxu0 0
    %334 = vmatpush1.bf16.msra.mxu0 0
    %335 = vmatprep.subr.bf16.mxu0 0
    %336 = vmatpush1.bf16.msra.mxu0 0
    %337 = vmatprep.subr.bf16.mxu0 0
    %338 = vmatpush1.bf16.msra.mxu0 0
    %339 = vmatprep.subr.bf16.mxu0 0
    %340 = vmatpush1.bf16.msra.mxu0 0
    %341 = vmatprep.subr.bf16.mxu0 0
    %342 = vmatpush1.bf16.msra.mxu0 0
    %343 = vmatprep.subr.bf16.mxu0 0
    %344 = vmatpush1.bf16.msra.mxu0 0
    %345 = vmatprep.subr.bf16.mxu0 0
    %346 = vmatpush1.bf16.msra.mxu0 0
    %347 = vmatprep.mubr.bf16.mxu0 0
    %348 = vmatmul.mubr.bf16.gmra.mrb[0].mxu0 %v313
    %v349 = vpop.f32.mrb[0].mxu0
    %v350 = vadd.f32 0.0, %v349
    %v351 = vpop.f32.mrb[0].mxu0
    %v352 = vadd.f32 0.0, %v351
    %v353 = vpop.f32.mrb[0].mxu0
    %v354 = vpop.f32.mrb[0].mxu0
    %355 = vdwg.mxu0
    %v358 = vcombine.low %v350, %v352
    %v360 = vunpack.c.l.s4 1983009808
    %v361 = vunpack.c.0.s8 %v360
    %v362 = vlaneseq
    %v363 = vshrl.u32 %v362, 7
    %v364 = vsub.s32 %v361, %v363
    %v365 = vrot.slane %v358, %v364
    %v367 = vadd.f32 %v219, %v365
    %v368 = vxor.u32 %v367, 2147483648
    %v369 = vmul.f32 %v368, 1.442695
    %v370 = vpow.pop %v369
    %v371 = vadd.f32 %v370, 1.0
    %v372 = vrcp.pop %v371
    %v373 = vmul.f32 1.0, %v372
    %v374 = vtanh.pop %v367
    %v375 = vmul.f32 %v373, 0.0
    %377 = vrot.lane.b32.xlu0 %v374, 64
    %v378 = vpop.permute.xlu0 %377
    %v380 = vmul.f32 %v373, %v378
    %382 = vrot.lane.b32.xlu0 %v380, 32
    %v383 = vpop.permute.xlu0 %382
    %v385 = vadd.f32 %v375, %v383
    %v386 = vtanh.pop %v385
    %388 = vrot.lane.b32.xlu0 %v386, 64
    %v389 = vpop.permute.xlu0 %388
    %v391 = vmul.f32 %v373, %v389
    %393 = vrot.lane.b32.xlu0 %v373, 96
    %v394 = vpop.permute.xlu0 %393
    %v395 = vrot.slane %v394, 2
    %v397 = vmul.f32 %v395, 0.0
    %v398 = vrot.slane %v373, 2
    %v400 = vrot.slane %v378, 2
    %v402 = vmul.f32 %v398, %v400
    %v403 = vadd.f32 %v397, %v402
    %v404 = vtanh.pop %v403
    %405 = vrot.lane.b32.xlu0 %v373, 32
    %v406 = vpop.permute.xlu0 %405
    %v407 = vrot.slane %v406, 2
    %v409 = vmul.f32 %v407, %v404
    %v410 = vpack.c.bf16 %v391, %v391
    %v411 = vpack.c.bf16 %v409, %v409
    %v416 = vunpack.c.l.b16 %v267
    %v417 = vunpack.c.l.b16 %v268
    %v418 = vunpack.c.l.b16 %v269
    %v419 = vunpack.c.l.b16 %v270
    %v420 = vpack.c.b16 %v417, %v416
    %v421 = vpack.c.b16 %v419, %v418
    %vm424 = vcmask 261120
    %v426 = vsel %vm424, %v411, 0
    %428 = vmatprep.subr.bf16.mxu0 0
    %429 = vmatpush1.bf16.msra.mxu0 %v420
    %430 = vmatprep.subr.bf16.mxu0 0
    %431 = vmatpush1.bf16.msra.mxu0 %v421
    %432 = vmatprep.subr.bf16.mxu0 0
    %433 = vmatpush1.bf16.msra.mxu0 0
    %434 = vmatprep.subr.bf16.mxu0 0
    %435 = vmatpush1.bf16.msra.mxu0 0
    %436 = vmatprep.subr.bf16.mxu0 0
    %437 = vmatpush1.bf16.msra.mxu0 0
    %438 = vmatprep.subr.bf16.mxu0 0
    %439 = vmatpush1.bf16.msra.mxu0 0
    %440 = vmatprep.subr.bf16.mxu0 0
    %441 = vmatpush1.bf16.msra.mxu0 0
    %442 = vmatprep.subr.bf16.mxu0 0
    %443 = vmatpush1.bf16.msra.mxu0 0
    %444 = vmatprep.subr.bf16.mxu0 0
    %445 = vmatpush1.bf16.msra.mxu0 0
    %446 = vmatprep.subr.bf16.mxu0 0
    %447 = vmatpush1.bf16.msra.mxu0 0
    %448 = vmatprep.subr.bf16.mxu0 0
    %449 = vmatpush1.bf16.msra.mxu0 0
    %450 = vmatprep.subr.bf16.mxu0 0
    %451 = vmatpush1.bf16.msra.mxu0 0
    %452 = vmatprep.subr.bf16.mxu0 0
    %453 = vmatpush1.bf16.msra.mxu0 0
    %454 = vmatprep.subr.bf16.mxu0 0
    %455 = vmatpush1.bf16.msra.mxu0 0
    %456 = vmatprep.subr.bf16.mxu0 0
    %457 = vmatpush1.bf16.msra.mxu0 0
    %458 = vmatprep.subr.bf16.mxu0 0
    %459 = vmatpush1.bf16.msra.mxu0 0
    %460 = vmatprep.mubr.bf16.mxu0 0
    %461 = vmatmul.mubr.bf16.gmra.mrb[0].mxu0 %v426
    %v462 = vpop.f32.mrb[0].mxu0
    %v463 = vadd.f32 0.0, %v462
    %v464 = vpop.f32.mrb[0].mxu0
    %v465 = vpop.f32.mrb[0].mxu0
    %v466 = vpop.f32.mrb[0].mxu0
    %467 = vdwg.mxu0
    %v470 = vunpack.c.l.s4 1983009808
    %v471 = vunpack.c.0.s8 %v470
    %v472 = vlaneseq
    %v473 = vshrl.u32 %v472, 7
    %v474 = vsub.s32 %v471, %v473
    %v475 = vrot.slane %v391, %v474
    %476 = vrot.lane.b32.xlu0 %v475, 32
    %v477 = vpop.permute.xlu0 %476
    %v481 = vunpack.c.l.s4 1983009808
    %v482 = vunpack.c.0.s8 %v481
    %v483 = vlaneseq
    %v484 = vshrl.u32 %v483, 7
    %v485 = vsub.s32 %v482, %v484
    %v486 = vrot.slane %v409, %v485
    %487 = vrot.lane.b32.xlu0 %v486, 32
    %v488 = vpop.permute.xlu0 %487
    %v490 = vsel %vm424, %v477, %v488
    %v491 = vpack.c.bf16 %v490, %v490
    %v493 = vsel %vm160, %v491, 0
    %495 = vmatprep.subr.bf16.mxu0 %v297
    %496 = vmatpush1.bf16.msra.mxu0 %v296
    %497 = vmatprep.subr.bf16.mxu0 %v299
    %498 = vmatpush1.bf16.msra.mxu0 %v298
    %499 = vmatprep.subr.bf16.mxu0 %v301
    %500 = vmatpush1.bf16.msra.mxu0 %v300
    %501 = vmatprep.subr.bf16.mxu0 %v303
    %502 = vmatpush1.bf16.msra.mxu0 %v302
    %503 = vmatprep.subr.bf16.mxu0 0
    %504 = vmatpush1.bf16.msra.mxu0 0
    %505 = vmatprep.subr.bf16.mxu0 0
    %506 = vmatpush1.bf16.msra.mxu0 0
    %507 = vmatprep.subr.bf16.mxu0 0
    %508 = vmatpush1.bf16.msra.mxu0 0
    %509 = vmatprep.subr.bf16.mxu0 0
    %510 = vmatpush1.bf16.msra.mxu0 0
    %511 = vmatprep.subr.bf16.mxu0 0
    %512 = vmatpush1.bf16.msra.mxu0 0
    %513 = vmatprep.subr.bf16.mxu0 0
    %514 = vmatpush1.bf16.msra.mxu0 0
    %515 = vmatprep.subr.bf16.mxu0 0
    %516 = vmatpush1.bf16.msra.mxu0 0
    %517 = vmatprep.subr.bf16.mxu0 0
    %518 = vmatpush1.bf16.msra.mxu0 0
    %519 = vmatprep.subr.bf16.mxu0 0
    %520 = vmatpush1.bf16.msra.mxu0 0
    %521 = vmatprep.subr.bf16.mxu0 0
    %522 = vmatpush1.bf16.msra.mxu0 0
    %523 = vmatprep.subr.bf16.mxu0 0
    %524 = vmatpush1.bf16.msra.mxu0 0
    %525 = vmatprep.subr.bf16.mxu0 0
    %526 = vmatpush1.bf16.msra.mxu0 0
    %527 = vmatprep.mubr.bf16.mxu0 0
    %528 = vmatmul.mubr.bf16.gmra.mrb[0].mxu0 %v493
    %v529 = vpop.f32.mrb[0].mxu0
    %v530 = vadd.f32 0.0, %v529
    %v531 = vpop.f32.mrb[0].mxu0
    %v532 = vadd.f32 0.0, %v531
    %v533 = vpop.f32.mrb[0].mxu0
    %v534 = vpop.f32.mrb[0].mxu0
    %535 = vdwg.mxu0
    %v538 = vcombine.low %v530, %v532
    %v540 = vunpack.c.l.s4 1983009808
    %v541 = vunpack.c.0.s8 %v540
    %v542 = vlaneseq
    %v543 = vshrl.u32 %v542, 7
    %v544 = vsub.s32 %v541, %v543
    %v545 = vrot.slane %v538, %v544
    %v547 = vadd.f32 %v227, %v545
    %v548 = vxor.u32 %v547, 2147483648
    %v549 = vmul.f32 %v548, 1.442695
    %v550 = vpow.pop %v549
    %v551 = vadd.f32 %v550, 1.0
    %v552 = vrcp.pop %v551
    %v553 = vmul.f32 1.0, %v552
    %v554 = vtanh.pop %v547
    %v555 = vmul.f32 %v553, %v385
    %557 = vrot.lane.b32.xlu0 %v554, 64
    %v558 = vpop.permute.xlu0 %557
    %v560 = vmul.f32 %v553, %v558
    %562 = vrot.lane.b32.xlu0 %v560, 32
    %v563 = vpop.permute.xlu0 %562
    %v565 = vadd.f32 %v555, %v563
    %v566 = vtanh.pop %v565
    %568 = vrot.lane.b32.xlu0 %v566, 64
    %v569 = vpop.permute.xlu0 %568
    %v571 = vmul.f32 %v553, %v569
    %573 = vrot.lane.b32.xlu0 %v553, 96
    %v574 = vpop.permute.xlu0 %573
    %v575 = vrot.slane %v574, 2
    %v577 = vmul.f32 %v575, %v403
    %v578 = vrot.slane %v553, 2
    %v580 = vrot.slane %v558, 2
    %v582 = vmul.f32 %v578, %v580
    %v583 = vadd.f32 %v577, %v582
    %v584 = vtanh.pop %v583
    %585 = vrot.lane.b32.xlu0 %v553, 32
    %v586 = vpop.permute.xlu0 %585
    %v587 = vrot.slane %v586, 2
    %v589 = vmul.f32 %v587, %v584
    %v590 = vpack.c.bf16 %v571, %v571
    %v591 = vpack.c.bf16 %v589, %v589
    %v593 = vsel %vm424, %v591, 0
    %595 = vmatprep.subr.bf16.mxu0 0
    %596 = vmatpush1.bf16.msra.mxu0 %v420
    %597 = vmatprep.subr.bf16.mxu0 0
    %598 = vmatpush1.bf16.msra.mxu0 %v421
    %599 = vmatprep.subr.bf16.mxu0 0
    %600 = vmatpush1.bf16.msra.mxu0 0
    %601 = vmatprep.subr.bf16.mxu0 0
    %602 = vmatpush1.bf16.msra.mxu0 0
    %603 = vmatprep.subr.bf16.mxu0 0
    %604 = vmatpush1.bf16.msra.mxu0 0
    %605 = vmatprep.subr.bf16.mxu0 0
    %606 = vmatpush1.bf16.msra.mxu0 0
    %607 = vmatprep.subr.bf16.mxu0 0
    %608 = vmatpush1.bf16.msra.mxu0 0
    %609 = vmatprep.subr.bf16.mxu0 0
    %610 = vmatpush1.bf16.msra.mxu0 0
    %611 = vmatprep.subr.bf16.mxu0 0
    %612 = vmatpush1.bf16.msra.mxu0 0
    %613 = vmatprep.subr.bf16.mxu0 0
    %614 = vmatpush1.bf16.msra.mxu0 0
    %615 = vmatprep.subr.bf16.mxu0 0
    %616 = vmatpush1.bf16.msra.mxu0 0
    %617 = vmatprep.subr.bf16.mxu0 0
    %618 = vmatpush1.bf16.msra.mxu0 0
    %619 = vmatprep.subr.bf16.mxu0 0
    %620 = vmatpush1.bf16.msra.mxu0 0
    %621 = vmatprep.subr.bf16.mxu0 0
    %622 = vmatpush1.bf16.msra.mxu0 0
    %623 = vmatprep.subr.bf16.mxu0 0
    %624 = vmatpush1.bf16.msra.mxu0 0
    %625 = vmatprep.subr.bf16.mxu0 0
    %626 = vmatpush1.bf16.msra.mxu0 0
    %627 = vmatprep.mubr.bf16.mxu0 0
    %628 = vmatmul.mubr.bf16.gmra.mrb[0].mxu0 %v593
    %v629 = vpop.f32.mrb[0].mxu0
    %v630 = vadd.f32 0.0, %v629
    %v631 = vpop.f32.mrb[0].mxu0
    %v632 = vpop.f32.mrb[0].mxu0
    %v633 = vpop.f32.mrb[0].mxu0
    %634 = vdwg.mxu0
    %v637 = vunpack.c.l.s4 1983009808
    %v638 = vunpack.c.0.s8 %v637
    %v639 = vlaneseq
    %v640 = vshrl.u32 %v639, 7
    %v641 = vsub.s32 %v638, %v640
    %v642 = vrot.slane %v571, %v641
    %643 = vrot.lane.b32.xlu0 %v642, 32
    %v644 = vpop.permute.xlu0 %643
    %v648 = vunpack.c.l.s4 1983009808
    %v649 = vunpack.c.0.s8 %v648
    %v650 = vlaneseq
    %v651 = vshrl.u32 %v650, 7
    %v652 = vsub.s32 %v649, %v651
    %v653 = vrot.slane %v589, %v652
    %654 = vrot.lane.b32.xlu0 %v653, 32
    %v655 = vpop.permute.xlu0 %654
    %v657 = vsel %vm424, %v644, %v655
    %v658 = vpack.c.bf16 %v657, %v657
    %v660 = vsel %vm160, %v658, 0
    %662 = vmatprep.subr.bf16.mxu0 %v297
    %663 = vmatpush1.bf16.msra.mxu0 %v296
    %664 = vmatprep.subr.bf16.mxu0 %v299
    %665 = vmatpush1.bf16.msra.mxu0 %v298
    %666 = vmatprep.subr.bf16.mxu0 %v301
    %667 = vmatpush1.bf16.msra.mxu0 %v300
    %668 = vmatprep.subr.bf16.mxu0 %v303
    %669 = vmatpush1.bf16.msra.mxu0 %v302
    %670 = vmatprep.subr.bf16.mxu0 0
    %671 = vmatpush1.bf16.msra.mxu0 0
    %672 = vmatprep.subr.bf16.mxu0 0
    %673 = vmatpush1.bf16.msra.mxu0 0
    %674 = vmatprep.subr.bf16.mxu0 0
    %675 = vmatpush1.bf16.msra.mxu0 0
    %676 = vmatprep.subr.bf16.mxu0 0
    %677 = vmatpush1.bf16.msra.mxu0 0
    %678 = vmatprep.subr.bf16.mxu0 0
    %679 = vmatpush1.bf16.msra.mxu0 0
    %680 = vmatprep.subr.bf16.mxu0 0
    %681 = vmatpush1.bf16.msra.mxu0 0
    %682 = vmatprep.subr.bf16.mxu0 0
    %683 = vmatpush1.bf16.msra.mxu0 0
    %684 = vmatprep.subr.bf16.mxu0 0
    %685 = vmatpush1.bf16.msra.mxu0 0
    %686 = vmatprep.subr.bf16.mxu0 0
    %687 = vmatpush1.bf16.msra.mxu0 0
    %688 = vmatprep.subr.bf16.mxu0 0
    %689 = vmatpush1.bf16.msra.mxu0 0
    %690 = vmatprep.subr.bf16.mxu0 0
    %691 = vmatpush1.bf16.msra.mxu0 0
    %692 = vmatprep.subr.bf16.mxu0 0
    %693 = vmatpush1.bf16.msra.mxu0 0
    %694 = vmatprep.mubr.bf16.mxu0 0
    %695 = vmatmul.mubr.bf16.gmra.mrb[0].mxu0 %v660
    %v696 = vpop.f32.mrb[0].mxu0
    %v697 = vadd.f32 0.0, %v696
    %v698 = vpop.f32.mrb[0].mxu0
    %v699 = vadd.f32 0.0, %v698
    %v700 = vpop.f32.mrb[0].mxu0
    %v701 = vpop.f32.mrb[0].mxu0
    %702 = vdwg.mxu0
    %v705 = vcombine.low %v697, %v699
    %v707 = vunpack.c.l.s4 1983009808
    %v708 = vunpack.c.0.s8 %v707
    %v709 = vlaneseq
    %v710 = vshrl.u32 %v709, 7
    %v711 = vsub.s32 %v708, %v710
    %v712 = vrot.slane %v705, %v711
    %v714 = vadd.f32 %v226, %v712
    %v715 = vxor.u32 %v714, 2147483648
    %v716 = vmul.f32 %v715, 1.442695
    %v717 = vpow.pop %v716
    %v718 = vadd.f32 %v717, 1.0
    %v719 = vrcp.pop %v718
    %v720 = vmul.f32 1.0, %v719
    %v721 = vtanh.pop %v714
    %v722 = vmul.f32 %v720, %v565
    %724 = vrot.lane.b32.xlu0 %v721, 64
    %v725 = vpop.permute.xlu0 %724
    %v727 = vmul.f32 %v720, %v725
    %729 = vrot.lane.b32.xlu0 %v727, 32
    %v730 = vpop.permute.xlu0 %729
    %v732 = vadd.f32 %v722, %v730
    %v733 = vtanh.pop %v732
    %735 = vrot.lane.b32.xlu0 %v733, 64
    %v736 = vpop.permute.xlu0 %735
    %v738 = vmul.f32 %v720, %v736
    %740 = vrot.lane.b32.xlu0 %v720, 96
    %v741 = vpop.permute.xlu0 %740
    %v742 = vrot.slane %v741, 2
    %v744 = vmul.f32 %v742, %v583
    %v745 = vrot.slane %v720, 2
    %v747 = vrot.slane %v725, 2
    %v749 = vmul.f32 %v745, %v747
    %v750 = vadd.f32 %v744, %v749
    %v751 = vtanh.pop %v750
    %752 = vrot.lane.b32.xlu0 %v720, 32
    %v753 = vpop.permute.xlu0 %752
    %v754 = vrot.slane %v753, 2
    %v756 = vmul.f32 %v754, %v751
    %v757 = vpack.c.bf16 %v738, %v738
    %v758 = vpack.c.bf16 %v756, %v756
    %v760 = vsel %vm424, %v758, 0
    %762 = vmatprep.subr.bf16.mxu0 0
    %763 = vmatpush1.bf16.msra.mxu0 %v420
    %764 = vmatprep.subr.bf16.mxu0 0
    %765 = vmatpush1.bf16.msra.mxu0 %v421
    %766 = vmatprep.subr.bf16.mxu0 0
    %767 = vmatpush1.bf16.msra.mxu0 0
    %768 = vmatprep.subr.bf16.mxu0 0
    %769 = vmatpush1.bf16.msra.mxu0 0
    %770 = vmatprep.subr.bf16.mxu0 0
    %771 = vmatpush1.bf16.msra.mxu0 0
    %772 = vmatprep.subr.bf16.mxu0 0
    %773 = vmatpush1.bf16.msra.mxu0 0
    %774 = vmatprep.subr.bf16.mxu0 0
    %775 = vmatpush1.bf16.msra.mxu0 0
    %776 = vmatprep.subr.bf16.mxu0 0
    %777 = vmatpush1.bf16.msra.mxu0 0
    %778 = vmatprep.subr.bf16.mxu0 0
    %779 = vmatpush1.bf16.msra.mxu0 0
    %780 = vmatprep.subr.bf16.mxu0 0
    %781 = vmatpush1.bf16.msra.mxu0 0
    %782 = vmatprep.subr.bf16.mxu0 0
    %783 = vmatpush1.bf16.msra.mxu0 0
    %784 = vmatprep.subr.bf16.mxu0 0
    %785 = vmatpush1.bf16.msra.mxu0 0
    %786 = vmatprep.subr.bf16.mxu0 0
    %787 = vmatpush1.bf16.msra.mxu0 0
    %788 = vmatprep.subr.bf16.mxu0 0
    %789 = vmatpush1.bf16.msra.mxu0 0
    %790 = vmatprep.subr.bf16.mxu0 0
    %791 = vmatpush1.bf16.msra.mxu0 0
    %792 = vmatprep.subr.bf16.mxu0 0
    %793 = vmatpush1.bf16.msra.mxu0 0
    %794 = vmatprep.mubr.bf16.mxu0 0
    %795 = vmatmul.mubr.bf16.gmra.mrb[0].mxu0 %v760
    %v796 = vpop.f32.mrb[0].mxu0
    %v797 = vadd.f32 0.0, %v796
    %v798 = vpop.f32.mrb[0].mxu0
    %v799 = vpop.f32.mrb[0].mxu0
    %v800 = vpop.f32.mrb[0].mxu0
    %801 = vdwg.mxu0
    %v804 = vunpack.c.l.s4 1983009808
    %v805 = vunpack.c.0.s8 %v804
    %v806 = vlaneseq
    %v807 = vshrl.u32 %v806, 7
    %v808 = vsub.s32 %v805, %v807
    %v809 = vrot.slane %v738, %v808
    %810 = vrot.lane.b32.xlu0 %v809, 32
    %v811 = vpop.permute.xlu0 %810
    %v815 = vunpack.c.l.s4 1983009808
    %v816 = vunpack.c.0.s8 %v815
    %v817 = vlaneseq
    %v818 = vshrl.u32 %v817, 7
    %v819 = vsub.s32 %v816, %v818
    %v820 = vrot.slane %v756, %v819
    %821 = vrot.lane.b32.xlu0 %v820, 32
    %v822 = vpop.permute.xlu0 %821
    %v824 = vsel %vm424, %v811, %v822
    %v825 = vpack.c.bf16 %v824, %v824
    %v827 = vsel %vm160, %v825, 0
    %829 = vmatprep.subr.bf16.mxu0 %v297
    %830 = vmatpush1.bf16.msra.mxu0 %v296
    %831 = vmatprep.subr.bf16.mxu0 %v299
    %832 = vmatpush1.bf16.msra.mxu0 %v298
    %833 = vmatprep.subr.bf16.mxu0 %v301
    %834 = vmatpush1.bf16.msra.mxu0 %v300
    %835 = vmatprep.subr.bf16.mxu0 %v303
    %836 = vmatpush1.bf16.msra.mxu0 %v302
    %837 = vmatprep.subr.bf16.mxu0 0
    %838 = vmatpush1.bf16.msra.mxu0 0
    %839 = vmatprep.subr.bf16.mxu0 0
    %840 = vmatpush1.bf16.msra.mxu0 0
    %841 = vmatprep.subr.bf16.mxu0 0
    %842 = vmatpush1.bf16.msra.mxu0 0
    %843 = vmatprep.subr.bf16.mxu0 0
    %844 = vmatpush1.bf16.msra.mxu0 0
    %845 = vmatprep.subr.bf16.mxu0 0
    %846 = vmatpush1.bf16.msra.mxu0 0
    %847 = vmatprep.subr.bf16.mxu0 0
    %848 = vmatpush1.bf16.msra.mxu0 0
    %849 = vmatprep.subr.bf16.mxu0 0
    %850 = vmatpush1.bf16.msra.mxu0 0
    %851 = vmatprep.subr.bf16.mxu0 0
    %852 = vmatpush1.bf16.msra.mxu0 0
    %853 = vmatprep.subr.bf16.mxu0 0
    %854 = vmatpush1.bf16.msra.mxu0 0
    %855 = vmatprep.subr.bf16.mxu0 0
    %856 = vmatpush1.bf16.msra.mxu0 0
    %857 = vmatprep.subr.bf16.mxu0 0
    %858 = vmatpush1.bf16.msra.mxu0 0
    %859 = vmatprep.subr.bf16.mxu0 0
    %860 = vmatpush1.bf16.msra.mxu0 0
    %861 = vmatprep.mubr.bf16.mxu0 0
    %862 = vmatmul.mubr.bf16.gmra.mrb[0].mxu0 %v827
    %v863 = vpop.f32.mrb[0].mxu0
    %v864 = vadd.f32 0.0, %v863
    %v865 = vpop.f32.mrb[0].mxu0
    %v866 = vadd.f32 0.0, %v865
    %v867 = vpop.f32.mrb[0].mxu0
    %v868 = vpop.f32.mrb[0].mxu0
    %869 = vdwg.mxu0
    %v872 = vcombine.low %v864, %v866
    %v874 = vunpack.c.l.s4 1983009808
    %v875 = vunpack.c.0.s8 %v874
    %v876 = vlaneseq
    %v877 = vshrl.u32 %v876, 7
    %v878 = vsub.s32 %v875, %v877
    %v879 = vrot.slane %v872, %v878
    %v881 = vadd.f32 %v228, %v879
    %v882 = vxor.u32 %v881, 2147483648
    %v883 = vmul.f32 %v882, 1.442695
    %v884 = vpow.pop %v883
    %v885 = vadd.f32 %v884, 1.0
    %v886 = vrcp.pop %v885
    %v887 = vmul.f32 1.0, %v886
    %v888 = vtanh.pop %v881
    %v889 = vmul.f32 %v887, %v732
    %891 = vrot.lane.b32.xlu0 %v888, 64
    %v892 = vpop.permute.xlu0 %891
    %v894 = vmul.f32 %v887, %v892
    %896 = vrot.lane.b32.xlu0 %v894, 32
    %v897 = vpop.permute.xlu0 %896
    %v899 = vadd.f32 %v889, %v897
    %v900 = vtanh.pop %v899
    %902 = vrot.lane.b32.xlu0 %v900, 64
    %v903 = vpop.permute.xlu0 %902
    %v905 = vmul.f32 %v887, %v903
    %907 = vrot.lane.b32.xlu0 %v887, 96
    %v908 = vpop.permute.xlu0 %907
    %v909 = vrot.slane %v908, 2
    %v911 = vmul.f32 %v909, %v750
    %v912 = vrot.slane %v887, 2
    %v914 = vrot.slane %v892, 2
    %v916 = vmul.f32 %v912, %v914
    %v917 = vadd.f32 %v911, %v916
    %v918 = vtanh.pop %v917
    %919 = vrot.lane.b32.xlu0 %v887, 32
    %v920 = vpop.permute.xlu0 %919
    %v921 = vrot.slane %v920, 2
    %v923 = vmul.f32 %v921, %v918
    %v924 = vpack.c.bf16 %v905, %v905
    %v925 = vpack.c.bf16 %v923, %v923
    %v927 = vsel %vm424, %v925, 0
    %929 = vmatprep.subr.bf16.mxu0 0
    %930 = vmatpush1.bf16.msra.mxu0 %v420
    %931 = vmatprep.subr.bf16.mxu0 0
    %932 = vmatpush1.bf16.msra.mxu0 %v421
    %933 = vmatprep.subr.bf16.mxu0 0
    %934 = vmatpush1.bf16.msra.mxu0 0
    %935 = vmatprep.subr.bf16.mxu0 0
    %936 = vmatpush1.bf16.msra.mxu0 0
    %937 = vmatprep.subr.bf16.mxu0 0
    %938 = vmatpush1.bf16.msra.mxu0 0
    %939 = vmatprep.subr.bf16.mxu0 0
    %940 = vmatpush1.bf16.msra.mxu0 0
    %941 = vmatprep.subr.bf16.mxu0 0
    %942 = vmatpush1.bf16.msra.mxu0 0
    %943 = vmatprep.subr.bf16.mxu0 0
    %944 = vmatpush1.bf16.msra.mxu0 0
    %945 = vmatprep.subr.bf16.mxu0 0
    %946 = vmatpush1.bf16.msra.mxu0 0
    %947 = vmatprep.subr.bf16.mxu0 0
    %948 = vmatpush1.bf16.msra.mxu0 0
    %949 = vmatprep.subr.bf16.mxu0 0
    %950 = vmatpush1.bf16.msra.mxu0 0
    %951 = vmatprep.subr.bf16.mxu0 0
    %952 = vmatpush1.bf16.msra.mxu0 0
    %953 = vmatprep.subr.bf16.mxu0 0
    %954 = vmatpush1.bf16.msra.mxu0 0
    %955 = vmatprep.subr.bf16.mxu0 0
    %956 = vmatpush1.bf16.msra.mxu0 0
    %957 = vmatprep.subr.bf16.mxu0 0
    %958 = vmatpush1.bf16.msra.mxu0 0
    %959 = vmatprep.subr.bf16.mxu0 0
    %960 = vmatpush1.bf16.msra.mxu0 0
    %961 = vmatprep.mubr.bf16.mxu0 0
    %962 = vmatmul.mubr.bf16.gmra.mrb[0].mxu0 %v927
    %v963 = vpop.f32.mrb[0].mxu0
    %v964 = vadd.f32 0.0, %v963
    %v965 = vpop.f32.mrb[0].mxu0
    %v966 = vpop.f32.mrb[0].mxu0
    %v967 = vpop.f32.mrb[0].mxu0
    %968 = vdwg.mxu0
    %v971 = vunpack.c.l.s4 1983009808
    %v972 = vunpack.c.0.s8 %v971
    %v973 = vlaneseq
    %v974 = vshrl.u32 %v973, 7
    %v975 = vsub.s32 %v972, %v974
    %v976 = vrot.slane %v905, %v975
    %977 = vrot.lane.b32.xlu0 %v976, 32
    %v978 = vpop.permute.xlu0 %977
    %v982 = vunpack.c.l.s4 1983009808
    %v983 = vunpack.c.0.s8 %v982
    %v984 = vlaneseq
    %v985 = vshrl.u32 %v984, 7
    %v986 = vsub.s32 %v983, %v985
    %v987 = vrot.slane %v923, %v986
    %988 = vrot.lane.b32.xlu0 %v987, 32
    %v989 = vpop.permute.xlu0 %988
    %v991 = vsel %vm424, %v978, %v989
    %v992 = vpack.c.bf16 %v991, %v991
    %v994 = vsel %vm160, %v992, 0
    %996 = vmatprep.subr.bf16.mxu0 %v297
    %997 = vmatpush1.bf16.msra.mxu0 %v296
    %998 = vmatprep.subr.bf16.mxu0 %v299
    %999 = vmatpush1.bf16.msra.mxu0 %v298
    %1000 = vmatprep.subr.bf16.mxu0 %v301
    %1001 = vmatpush1.bf16.msra.mxu0 %v300
    %1002 = vmatprep.subr.bf16.mxu0 %v303
    %1003 = vmatpush1.bf16.msra.mxu0 %v302
    %1004 = vmatprep.subr.bf16.mxu0 0
    %1005 = vmatpush1.bf16.msra.mxu0 0
    %1006 = vmatprep.subr.bf16.mxu0 0
    %1007 = vmatpush1.bf16.msra.mxu0 0
    %1008 = vmatprep.subr.bf16.mxu0 0
    %1009 = vmatpush1.bf16.msra.mxu0 0
    %1010 = vmatprep.subr.bf16.mxu0 0
    %1011 = vmatpush1.bf16.msra.mxu0 0
    %1012 = vmatprep.subr.bf16.mxu0 0
    %1013 = vmatpush1.bf16.msra.mxu0 0
    %1014 = vmatprep.subr.bf16.mxu0 0
    %1015 = vmatpush1.bf16.msra.mxu0 0
    %1016 = vmatprep.subr.bf16.mxu0 0
    %1017 = vmatpush1.bf16.msra.mxu0 0
    %1018 = vmatprep.subr.bf16.mxu0 0
    %1019 = vmatpush1.bf16.msra.mxu0 0
    %1020 = vmatprep.subr.bf16.mxu0 0
    %1021 = vmatpush1.bf16.msra.mxu0 0
    %1022 = vmatprep.subr.bf16.mxu0 0
    %1023 = vmatpush1.bf16.msra.mxu0 0
    %1024 = vmatprep.subr.bf16.mxu0 0
    %1025 = vmatpush1.bf16.msra.mxu0 0
    %1026 = vmatprep.subr.bf16.mxu0 0
    %1027 = vmatpush1.bf16.msra.mxu0 0
    %1028 = vmatprep.mubr.bf16.mxu0 0
    %1029 = vmatmul.mubr.bf16.gmra.mrb[0].mxu0 %v994
    %v1030 = vpop.f32.mrb[0].mxu0
    %v1031 = vadd.f32 0.0, %v1030
    %v1032 = vpop.f32.mrb[0].mxu0
    %v1033 = vadd.f32 0.0, %v1032
    %v1034 = vpop.f32.mrb[0].mxu0
    %v1035 = vpop.f32.mrb[0].mxu0
    %1036 = vdwg.mxu0
    %v1039 = vcombine.low %v1031, %v1033
    %v1041 = vunpack.c.l.s4 1983009808
    %v1042 = vunpack.c.0.s8 %v1041
    %v1043 = vlaneseq
    %v1044 = vshrl.u32 %v1043, 7
    %v1045 = vsub.s32 %v1042, %v1044
    %v1046 = vrot.slane %v1039, %v1045
    %v1048 = vadd.f32 %v237, %v1046
    %v1049 = vxor.u32 %v1048, 2147483648
    %v1050 = vmul.f32 %v1049, 1.442695
    %v1051 = vpow.pop %v1050
    %v1052 = vadd.f32 %v1051, 1.0
    %v1053 = vrcp.pop %v1052
    %v1054 = vmul.f32 1.0, %v1053
    %v1055 = vtanh.pop %v1048
    %v1056 = vmul.f32 %v1054, %v899
    %1058 = vrot.lane.b32.xlu0 %v1055, 64
    %v1059 = vpop.permute.xlu0 %1058
    %v1061 = vmul.f32 %v1054, %v1059
    %1063 = vrot.lane.b32.xlu0 %v1061, 32
    %v1064 = vpop.permute.xlu0 %1063
    %v1066 = vadd.f32 %v1056, %v1064
    %v1067 = vtanh.pop %v1066
    %1069 = vrot.lane.b32.xlu0 %v1067, 64
    %v1070 = vpop.permute.xlu0 %1069
    %v1072 = vmul.f32 %v1054, %v1070
    %1074 = vrot.lane.b32.xlu0 %v1054, 96
    %v1075 = vpop.permute.xlu0 %1074
    %v1076 = vrot.slane %v1075, 2
    %v1078 = vmul.f32 %v1076, %v917
    %v1079 = vrot.slane %v1054, 2
    %v1081 = vrot.slane %v1059, 2
    %v1083 = vmul.f32 %v1079, %v1081
    %v1084 = vadd.f32 %v1078, %v1083
    %v1085 = vtanh.pop %v1084
    %1086 = vrot.lane.b32.xlu0 %v1054, 32
    %v1087 = vpop.permute.xlu0 %1086
    %v1088 = vrot.slane %v1087, 2
    %v1090 = vmul.f32 %v1088, %v1085
    %v1091 = vpack.c.bf16 %v1072, %v1072
    %v1092 = vpack.c.bf16 %v1090, %v1090
    %v1094 = vsel %vm424, %v1092, 0
    %1096 = vmatprep.subr.bf16.mxu0 0
    %1097 = vmatpush1.bf16.msra.mxu0 %v420
    %1098 = vmatprep.subr.bf16.mxu0 0
    %1099 = vmatpush1.bf16.msra.mxu0 %v421
    %1100 = vmatprep.subr.bf16.mxu0 0
    %1101 = vmatpush1.bf16.msra.mxu0 0
    %1102 = vmatprep.subr.bf16.mxu0 0
    %1103 = vmatpush1.bf16.msra.mxu0 0
    %1104 = vmatprep.subr.bf16.mxu0 0
    %1105 = vmatpush1.bf16.msra.mxu0 0
    %1106 = vmatprep.subr.bf16.mxu0 0
    %1107 = vmatpush1.bf16.msra.mxu0 0
    %1108 = vmatprep.subr.bf16.mxu0 0
    %1109 = vmatpush1.bf16.msra.mxu0 0
    %1110 = vmatprep.subr.bf16.mxu0 0
    %1111 = vmatpush1.bf16.msra.mxu0 0
    %1112 = vmatprep.subr.bf16.mxu0 0
    %1113 = vmatpush1.bf16.msra.mxu0 0
    %1114 = vmatprep.subr.bf16.mxu0 0
    %1115 = vmatpush1.bf16.msra.mxu0 0
    %1116 = vmatprep.subr.bf16.mxu0 0
    %1117 = vmatpush1.bf16.msra.mxu0 0
    %1118 = vmatprep.subr.bf16.mxu0 0
    %1119 = vmatpush1.bf16.msra.mxu0 0
    %1120 = vmatprep.subr.bf16.mxu0 0
    %1121 = vmatpush1.bf16.msra.mxu0 0
    %1122 = vmatprep.subr.bf16.mxu0 0
    %1123 = vmatpush1.bf16.msra.mxu0 0
    %1124 = vmatprep.subr.bf16.mxu0 0
    %1125 = vmatpush1.bf16.msra.mxu0 0
    %1126 = vmatprep.subr.bf16.mxu0 0
    %1127 = vmatpush1.bf16.msra.mxu0 0
    %1128 = vmatprep.mubr.bf16.mxu0 0
    %1129 = vmatmul.mubr.bf16.gmra.mrb[0].mxu0 %v1094
    %v1130 = vpop.f32.mrb[0].mxu0
    %v1131 = vadd.f32 0.0, %v1130
    %v1132 = vpop.f32.mrb[0].mxu0
    %v1133 = vpop.f32.mrb[0].mxu0
    %v1134 = vpop.f32.mrb[0].mxu0
    %1135 = vdwg.mxu0
    %v1138 = vunpack.c.l.s4 1983009808
    %v1139 = vunpack.c.0.s8 %v1138
    %v1140 = vlaneseq
    %v1141 = vshrl.u32 %v1140, 7
    %v1142 = vsub.s32 %v1139, %v1141
    %v1143 = vrot.slane %v1072, %v1142
    %1144 = vrot.lane.b32.xlu0 %v1143, 32
    %v1145 = vpop.permute.xlu0 %1144
    %v1149 = vunpack.c.l.s4 1983009808
    %v1150 = vunpack.c.0.s8 %v1149
    %v1151 = vlaneseq
    %v1152 = vshrl.u32 %v1151, 7
    %v1153 = vsub.s32 %v1150, %v1152
    %v1154 = vrot.slane %v1090, %v1153
    %1155 = vrot.lane.b32.xlu0 %v1154, 32
    %v1156 = vpop.permute.xlu0 %1155
    %v1158 = vsel %vm424, %v1145, %v1156
    %v1159 = vpack.c.bf16 %v1158, %v1158
    %v1161 = vsel %vm160, %v1159, 0
    %1163 = vmatprep.subr.bf16.mxu0 %v297
    %1164 = vmatpush1.bf16.msra.mxu0 %v296
    %1165 = vmatprep.subr.bf16.mxu0 %v299
    %1166 = vmatpush1.bf16.msra.mxu0 %v298
    %1167 = vmatprep.subr.bf16.mxu0 %v301
    %1168 = vmatpush1.bf16.msra.mxu0 %v300
    %1169 = vmatprep.subr.bf16.mxu0 %v303
    %1170 = vmatpush1.bf16.msra.mxu0 %v302
    %1171 = vmatprep.subr.bf16.mxu0 0
    %1172 = vmatpush1.bf16.msra.mxu0 0
    %1173 = vmatprep.subr.bf16.mxu0 0
    %1174 = vmatpush1.bf16.msra.mxu0 0
    %1175 = vmatprep.subr.bf16.mxu0 0
    %1176 = vmatpush1.bf16.msra.mxu0 0
    %1177 = vmatprep.subr.bf16.mxu0 0
    %1178 = vmatpush1.bf16.msra.mxu0 0
    %1179 = vmatprep.subr.bf16.mxu0 0
    %1180 = vmatpush1.bf16.msra.mxu0 0
    %1181 = vmatprep.subr.bf16.mxu0 0
    %1182 = vmatpush1.bf16.msra.mxu0 0
    %1183 = vmatprep.subr.bf16.mxu0 0
    %1184 = vmatpush1.bf16.msra.mxu0 0
    %1185 = vmatprep.subr.bf16.mxu0 0
    %1186 = vmatpush1.bf16.msra.mxu0 0
    %1187 = vmatprep.subr.bf16.mxu0 0
    %1188 = vmatpush1.bf16.msra.mxu0 0
    %1189 = vmatprep.subr.bf16.mxu0 0
    %1190 = vmatpush1.bf16.msra.mxu0 0
    %1191 = vmatprep.subr.bf16.mxu0 0
    %1192 = vmatpush1.bf16.msra.mxu0 0
    %1193 = vmatprep.subr.bf16.mxu0 0
    %1194 = vmatpush1.bf16.msra.mxu0 0
    %1195 = vmatprep.mubr.bf16.mxu0 0
    %1196 = vmatmul.mubr.bf16.gmra.mrb[0].mxu0 %v1161
    %v1197 = vpop.f32.mrb[0].mxu0
    %v1198 = vadd.f32 0.0, %v1197
    %v1199 = vpop.f32.mrb[0].mxu0
    %v1200 = vadd.f32 0.0, %v1199
    %v1201 = vpop.f32.mrb[0].mxu0
    %v1202 = vpop.f32.mrb[0].mxu0
    %1203 = vdwg.mxu0
    %v1206 = vcombine.low %v1198, %v1200
    %v1208 = vunpack.c.l.s4 1983009808
    %v1209 = vunpack.c.0.s8 %v1208
    %v1210 = vlaneseq
    %v1211 = vshrl.u32 %v1210, 7
    %v1212 = vsub.s32 %v1209, %v1211
    %v1213 = vrot.slane %v1206, %v1212
    %v1215 = vadd.f32 %v245, %v1213
    %v1216 = vxor.u32 %v1215, 2147483648
    %v1217 = vmul.f32 %v1216, 1.442695
    %v1218 = vpow.pop %v1217
    %v1219 = vadd.f32 %v1218, 1.0
    %v1220 = vrcp.pop %v1219
    %v1221 = vmul.f32 1.0, %v1220
    %v1222 = vtanh.pop %v1215
    %v1223 = vmul.f32 %v1221, %v1066
    %1225 = vrot.lane.b32.xlu0 %v1222, 64
    %v1226 = vpop.permute.xlu0 %1225
    %v1228 = vmul.f32 %v1221, %v1226
    %1230 = vrot.lane.b32.xlu0 %v1228, 32
    %v1231 = vpop.permute.xlu0 %1230
    %v1233 = vadd.f32 %v1223, %v1231
    %v1234 = vtanh.pop %v1233
    %1236 = vrot.lane.b32.xlu0 %v1234, 64
    %v1237 = vpop.permute.xlu0 %1236
    %v1239 = vmul.f32 %v1221, %v1237
    %1241 = vrot.lane.b32.xlu0 %v1221, 96
    %v1242 = vpop.permute.xlu0 %1241
    %v1243 = vrot.slane %v1242, 2
    %v1245 = vmul.f32 %v1243, %v1084
    %v1246 = vrot.slane %v1221, 2
    %v1248 = vrot.slane %v1226, 2
    %v1250 = vmul.f32 %v1246, %v1248
    %v1251 = vadd.f32 %v1245, %v1250
    %v1252 = vtanh.pop %v1251
    %1253 = vrot.lane.b32.xlu0 %v1221, 32
    %v1254 = vpop.permute.xlu0 %1253
    %v1255 = vrot.slane %v1254, 2
    %v1257 = vmul.f32 %v1255, %v1252
    %v1258 = vpack.c.bf16 %v1239, %v1239
    %v1259 = vpack.c.bf16 %v1257, %v1257
    %v1261 = vsel %vm424, %v1259, 0
    %1263 = vmatprep.subr.bf16.mxu0 0
    %1264 = vmatpush1.bf16.msra.mxu0 %v420
    %1265 = vmatprep.subr.bf16.mxu0 0
    %1266 = vmatpush1.bf16.msra.mxu0 %v421
    %1267 = vmatprep.subr.bf16.mxu0 0
    %1268 = vmatpush1.bf16.msra.mxu0 0
    %1269 = vmatprep.subr.bf16.mxu0 0
    %1270 = vmatpush1.bf16.msra.mxu0 0
    %1271 = vmatprep.subr.bf16.mxu0 0
    %1272 = vmatpush1.bf16.msra.mxu0 0
    %1273 = vmatprep.subr.bf16.mxu0 0
    %1274 = vmatpush1.bf16.msra.mxu0 0
    %1275 = vmatprep.subr.bf16.mxu0 0
    %1276 = vmatpush1.bf16.msra.mxu0 0
    %1277 = vmatprep.subr.bf16.mxu0 0
    %1278 = vmatpush1.bf16.msra.mxu0 0
    %1279 = vmatprep.subr.bf16.mxu0 0
    %1280 = vmatpush1.bf16.msra.mxu0 0
    %1281 = vmatprep.subr.bf16.mxu0 0
    %1282 = vmatpush1.bf16.msra.mxu0 0
    %1283 = vmatprep.subr.bf16.mxu0 0
    %1284 = vmatpush1.bf16.msra.mxu0 0
    %1285 = vmatprep.subr.bf16.mxu0 0
    %1286 = vmatpush1.bf16.msra.mxu0 0
    %1287 = vmatprep.subr.bf16.mxu0 0
    %1288 = vmatpush1.bf16.msra.mxu0 0
    %1289 = vmatprep.subr.bf16.mxu0 0
    %1290 = vmatpush1.bf16.msra.mxu0 0
    %1291 = vmatprep.subr.bf16.mxu0 0
    %1292 = vmatpush1.bf16.msra.mxu0 0
    %1293 = vmatprep.subr.bf16.mxu0 0
    %1294 = vmatpush1.bf16.msra.mxu0 0
    %1295 = vmatprep.mubr.bf16.mxu0 0
    %1296 = vmatmul.mubr.bf16.gmra.mrb[0].mxu0 %v1261
    %v1297 = vpop.f32.mrb[0].mxu0
    %v1298 = vadd.f32 0.0, %v1297
    %v1299 = vpop.f32.mrb[0].mxu0
    %v1300 = vpop.f32.mrb[0].mxu0
    %v1301 = vpop.f32.mrb[0].mxu0
    %1302 = vdwg.mxu0
    %v1305 = vunpack.c.l.s4 1983009808
    %v1306 = vunpack.c.0.s8 %v1305
    %v1307 = vlaneseq
    %v1308 = vshrl.u32 %v1307, 7
    %v1309 = vsub.s32 %v1306, %v1308
    %v1310 = vrot.slane %v1239, %v1309
    %1311 = vrot.lane.b32.xlu0 %v1310, 32
    %v1312 = vpop.permute.xlu0 %1311
    %v1316 = vunpack.c.l.s4 1983009808
    %v1317 = vunpack.c.0.s8 %v1316
    %v1318 = vlaneseq
    %v1319 = vshrl.u32 %v1318, 7
    %v1320 = vsub.s32 %v1317, %v1319
    %v1321 = vrot.slane %v1257, %v1320
    %1322 = vrot.lane.b32.xlu0 %v1321, 32
    %v1323 = vpop.permute.xlu0 %1322
    %v1325 = vsel %vm424, %v1312, %v1323
    %v1326 = vpack.c.bf16 %v1325, %v1325
    %v1328 = vsel %vm160, %v1326, 0
    %1330 = vmatprep.subr.bf16.mxu0 %v297
    %1331 = vmatpush1.bf16.msra.mxu0 %v296
    %1332 = vmatprep.subr.bf16.mxu0 %v299
    %1333 = vmatpush1.bf16.msra.mxu0 %v298
    %1334 = vmatprep.subr.bf16.mxu0 %v301
    %1335 = vmatpush1.bf16.msra.mxu0 %v300
    %1336 = vmatprep.subr.bf16.mxu0 %v303
    %1337 = vmatpush1.bf16.msra.mxu0 %v302
    %1338 = vmatprep.subr.bf16.mxu0 0
    %1339 = vmatpush1.bf16.msra.mxu0 0
    %1340 = vmatprep.subr.bf16.mxu0 0
    %1341 = vmatpush1.bf16.msra.mxu0 0
    %1342 = vmatprep.subr.bf16.mxu0 0
    %1343 = vmatpush1.bf16.msra.mxu0 0
    %1344 = vmatprep.subr.bf16.mxu0 0
    %1345 = vmatpush1.bf16.msra.mxu0 0
    %1346 = vmatprep.subr.bf16.mxu0 0
    %1347 = vmatpush1.bf16.msra.mxu0 0
    %1348 = vmatprep.subr.bf16.mxu0 0
    %1349 = vmatpush1.bf16.msra.mxu0 0
    %1350 = vmatprep.subr.bf16.mxu0 0
    %1351 = vmatpush1.bf16.msra.mxu0 0
    %1352 = vmatprep.subr.bf16.mxu0 0
    %1353 = vmatpush1.bf16.msra.mxu0 0
    %1354 = vmatprep.subr.bf16.mxu0 0
    %1355 = vmatpush1.bf16.msra.mxu0 0
    %1356 = vmatprep.subr.bf16.mxu0 0
    %1357 = vmatpush1.bf16.msra.mxu0 0
    %1358 = vmatprep.subr.bf16.mxu0 0
    %1359 = vmatpush1.bf16.msra.mxu0 0
    %1360 = vmatprep.subr.bf16.mxu0 0
    %1361 = vmatpush1.bf16.msra.mxu0 0
    %1362 = vmatprep.mubr.bf16.mxu0 0
    %1363 = vmatmul.mubr.bf16.gmra.mrb[0].mxu0 %v1328
    %v1364 = vpop.f32.mrb[0].mxu0
    %v1365 = vadd.f32 0.0, %v1364
    %v1366 = vpop.f32.mrb[0].mxu0
    %v1367 = vadd.f32 0.0, %v1366
    %v1368 = vpop.f32.mrb[0].mxu0
    %v1369 = vpop.f32.mrb[0].mxu0
    %1370 = vdwg.mxu0
    %v1373 = vcombine.low %v1365, %v1367
    %v1375 = vunpack.c.l.s4 1983009808
    %v1376 = vunpack.c.0.s8 %v1375
    %v1377 = vlaneseq
    %v1378 = vshrl.u32 %v1377, 7
    %v1379 = vsub.s32 %v1376, %v1378
    %v1380 = vrot.slane %v1373, %v1379
    %v1382 = vadd.f32 %v244, %v1380
    %v1383 = vxor.u32 %v1382, 2147483648
    %v1384 = vmul.f32 %v1383, 1.442695
    %v1385 = vpow.pop %v1384
    %v1386 = vadd.f32 %v1385, 1.0
    %v1387 = vrcp.pop %v1386
    %v1388 = vmul.f32 1.0, %v1387
    %v1389 = vtanh.pop %v1382
    %v1390 = vmul.f32 %v1388, %v1233
    %1392 = vrot.lane.b32.xlu0 %v1389, 64
    %v1393 = vpop.permute.xlu0 %1392
    %v1395 = vmul.f32 %v1388, %v1393
    %1397 = vrot.lane.b32.xlu0 %v1395, 32
    %v1398 = vpop.permute.xlu0 %1397
    %v1400 = vadd.f32 %v1390, %v1398
    %v1401 = vtanh.pop %v1400
    %1403 = vrot.lane.b32.xlu0 %v1401, 64
    %v1404 = vpop.permute.xlu0 %1403
    %v1406 = vmul.f32 %v1388, %v1404
    %1408 = vrot.lane.b32.xlu0 %v1388, 96
    %v1409 = vpop.permute.xlu0 %1408
    %v1410 = vrot.slane %v1409, 2
    %v1412 = vmul.f32 %v1410, %v1251
    %v1413 = vrot.slane %v1388, 2
    %v1415 = vrot.slane %v1393, 2
    %v1417 = vmul.f32 %v1413, %v1415
    %v1418 = vadd.f32 %v1412, %v1417
    %v1419 = vtanh.pop %v1418
    %1420 = vrot.lane.b32.xlu0 %v1388, 32
    %v1421 = vpop.permute.xlu0 %1420
    %v1422 = vrot.slane %v1421, 2
    %v1424 = vmul.f32 %v1422, %v1419
    %v1425 = vpack.c.bf16 %v1406, %v1406
    %v1426 = vpack.c.bf16 %v1424, %v1424
    %v1428 = vsel %vm424, %v1426, 0
    %1430 = vmatprep.subr.bf16.mxu0 0
    %1431 = vmatpush1.bf16.msra.mxu0 %v420
    %1432 = vmatprep.subr.bf16.mxu0 0
    %1433 = vmatpush1.bf16.msra.mxu0 %v421
    %1434 = vmatprep.subr.bf16.mxu0 0
    %1435 = vmatpush1.bf16.msra.mxu0 0
    %1436 = vmatprep.subr.bf16.mxu0 0
    %1437 = vmatpush1.bf16.msra.mxu0 0
    %1438 = vmatprep.subr.bf16.mxu0 0
    %1439 = vmatpush1.bf16.msra.mxu0 0
    %1440 = vmatprep.subr.bf16.mxu0 0
    %1441 = vmatpush1.bf16.msra.mxu0 0
    %1442 = vmatprep.subr.bf16.mxu0 0
    %1443 = vmatpush1.bf16.msra.mxu0 0
    %1444 = vmatprep.subr.bf16.mxu0 0
    %1445 = vmatpush1.bf16.msra.mxu0 0
    %1446 = vmatprep.subr.bf16.mxu0 0
    %1447 = vmatpush1.bf16.msra.mxu0 0
    %1448 = vmatprep.subr.bf16.mxu0 0
    %1449 = vmatpush1.bf16.msra.mxu0 0
    %1450 = vmatprep.subr.bf16.mxu0 0
    %1451 = vmatpush1.bf16.msra.mxu0 0
    %1452 = vmatprep.subr.bf16.mxu0 0
    %1453 = vmatpush1.bf16.msra.mxu0 0
    %1454 = vmatprep.subr.bf16.mxu0 0
    %1455 = vmatpush1.bf16.msra.mxu0 0
    %1456 = vmatprep.subr.bf16.mxu0 0
    %1457 = vmatpush1.bf16.msra.mxu0 0
    %1458 = vmatprep.subr.bf16.mxu0 0
    %1459 = vmatpush1.bf16.msra.mxu0 0
    %1460 = vmatprep.subr.bf16.mxu0 0
    %1461 = vmatpush1.bf16.msra.mxu0 0
    %1462 = vmatprep.mubr.bf16.mxu0 0
    %1463 = vmatmul.mubr.bf16.gmra.mrb[0].mxu0 %v1428
    %v1464 = vpop.f32.mrb[0].mxu0
    %v1465 = vadd.f32 0.0, %v1464
    %v1466 = vpop.f32.mrb[0].mxu0
    %v1467 = vpop.f32.mrb[0].mxu0
    %v1468 = vpop.f32.mrb[0].mxu0
    %1469 = vdwg.mxu0
    %v1472 = vunpack.c.l.s4 1983009808
    %v1473 = vunpack.c.0.s8 %v1472
    %v1474 = vlaneseq
    %v1475 = vshrl.u32 %v1474, 7
    %v1476 = vsub.s32 %v1473, %v1475
    %v1477 = vrot.slane %v1406, %v1476
    %1478 = vrot.lane.b32.xlu0 %v1477, 32
    %v1479 = vpop.permute.xlu0 %1478
    %v1483 = vunpack.c.l.s4 1983009808
    %v1484 = vunpack.c.0.s8 %v1483
    %v1485 = vlaneseq
    %v1486 = vshrl.u32 %v1485, 7
    %v1487 = vsub.s32 %v1484, %v1486
    %v1488 = vrot.slane %v1424, %v1487
    %1489 = vrot.lane.b32.xlu0 %v1488, 32
    %v1490 = vpop.permute.xlu0 %1489
    %v1492 = vsel %vm424, %v1479, %v1490
    %v1493 = vpack.c.bf16 %v1492, %v1492
    %v1495 = vsel %vm160, %v1493, 0
    %1497 = vmatprep.subr.bf16.mxu0 %v297
    %1498 = vmatpush1.bf16.msra.mxu0 %v296
    %1499 = vmatprep.subr.bf16.mxu0 %v299
    %1500 = vmatpush1.bf16.msra.mxu0 %v298
    %1501 = vmatprep.subr.bf16.mxu0 %v301
    %1502 = vmatpush1.bf16.msra.mxu0 %v300
    %1503 = vmatprep.subr.bf16.mxu0 %v303
    %1504 = vmatpush1.bf16.msra.mxu0 %v302
    %1505 = vmatprep.subr.bf16.mxu0 0
    %1506 = vmatpush1.bf16.msra.mxu0 0
    %1507 = vmatprep.subr.bf16.mxu0 0
    %1508 = vmatpush1.bf16.msra.mxu0 0
    %1509 = vmatprep.subr.bf16.mxu0 0
    %1510 = vmatpush1.bf16.msra.mxu0 0
    %1511 = vmatprep.subr.bf16.mxu0 0
    %1512 = vmatpush1.bf16.msra.mxu0 0
    %1513 = vmatprep.subr.bf16.mxu0 0
    %1514 = vmatpush1.bf16.msra.mxu0 0
    %1515 = vmatprep.subr.bf16.mxu0 0
    %1516 = vmatpush1.bf16.msra.mxu0 0
    %1517 = vmatprep.subr.bf16.mxu0 0
    %1518 = vmatpush1.bf16.msra.mxu0 0
    %1519 = vmatprep.subr.bf16.mxu0 0
    %1520 = vmatpush1.bf16.msra.mxu0 0
    %1521 = vmatprep.subr.bf16.mxu0 0
    %1522 = vmatpush1.bf16.msra.mxu0 0
    %1523 = vmatprep.subr.bf16.mxu0 0
    %1524 = vmatpush1.bf16.msra.mxu0 0
    %1525 = vmatprep.subr.bf16.mxu0 0
    %1526 = vmatpush1.bf16.msra.mxu0 0
    %1527 = vmatprep.subr.bf16.mxu0 0
    %1528 = vmatpush1.bf16.msra.mxu0 0
    %1529 = vmatprep.mubr.bf16.mxu0 0
    %1530 = vmatmul.mubr.bf16.gmra.mrb[0].mxu0 %v1495
    %v1531 = vpop.f32.mrb[0].mxu0
    %v1532 = vadd.f32 0.0, %v1531
    %v1533 = vpop.f32.mrb[0].mxu0
    %v1534 = vadd.f32 0.0, %v1533
    %v1535 = vpop.f32.mrb[0].mxu0
    %v1536 = vpop.f32.mrb[0].mxu0
    %1537 = vdwg.mxu0
    %v1540 = vcombine.low %v1532, %v1534
    %v1542 = vunpack.c.l.s4 1983009808
    %v1543 = vunpack.c.0.s8 %v1542
    %v1544 = vlaneseq
    %v1545 = vshrl.u32 %v1544, 7
    %v1546 = vsub.s32 %v1543, %v1545
    %v1547 = vrot.slane %v1540, %v1546
    %v1549 = vadd.f32 %v246, %v1547
    %v1550 = vxor.u32 %v1549, 2147483648
    %v1551 = vmul.f32 %v1550, 1.442695
    %v1552 = vpow.pop %v1551
    %v1553 = vadd.f32 %v1552, 1.0
    %v1554 = vrcp.pop %v1553
    %v1555 = vmul.f32 1.0, %v1554
    %v1556 = vtanh.pop %v1549
    %v1557 = vmul.f32 %v1555, %v1400
    %1559 = vrot.lane.b32.xlu0 %v1556, 64
    %v1560 = vpop.permute.xlu0 %1559
    %v1562 = vmul.f32 %v1555, %v1560
    %1564 = vrot.lane.b32.xlu0 %v1562, 32
    %v1565 = vpop.permute.xlu0 %1564
    %v1567 = vadd.f32 %v1557, %v1565
    %v1568 = vtanh.pop %v1567
    %1570 = vrot.lane.b32.xlu0 %v1568, 64
    %v1571 = vpop.permute.xlu0 %1570
    %v1573 = vmul.f32 %v1555, %v1571
    %1575 = vrot.lane.b32.xlu0 %v1555, 96
    %v1576 = vpop.permute.xlu0 %1575
    %v1577 = vrot.slane %v1576, 2
    %v1579 = vmul.f32 %v1577, %v1418
    %v1580 = vrot.slane %v1555, 2
    %v1582 = vrot.slane %v1560, 2
    %v1584 = vmul.f32 %v1580, %v1582
    %v1585 = vadd.f32 %v1579, %v1584
    %v1586 = vtanh.pop %v1585
    %1587 = vrot.lane.b32.xlu0 %v1555, 32
    %v1588 = vpop.permute.xlu0 %1587
    %v1589 = vrot.slane %v1588, 2
    %v1591 = vmul.f32 %v1589, %v1586
    %v1592 = vpack.c.bf16 %v1573, %v1573
    %v1593 = vpack.c.bf16 %v1591, %v1591
    %v1595 = vsel %vm424, %v1593, 0
    %1597 = vmatprep.subr.bf16.mxu0 0
    %1598 = vmatpush1.bf16.msra.mxu0 %v420
    %1599 = vmatprep.subr.bf16.mxu0 0
    %1600 = vmatpush1.bf16.msra.mxu0 %v421
    %1601 = vmatprep.subr.bf16.mxu0 0
    %1602 = vmatpush1.bf16.msra.mxu0 0
    %1603 = vmatprep.subr.bf16.mxu0 0
    %1604 = vmatpush1.bf16.msra.mxu0 0
    %1605 = vmatprep.subr.bf16.mxu0 0
    %1606 = vmatpush1.bf16.msra.mxu0 0
    %1607 = vmatprep.subr.bf16.mxu0 0
    %1608 = vmatpush1.bf16.msra.mxu0 0
    %1609 = vmatprep.subr.bf16.mxu0 0
    %1610 = vmatpush1.bf16.msra.mxu0 0
    %1611 = vmatprep.subr.bf16.mxu0 0
    %1612 = vmatpush1.bf16.msra.mxu0 0
    %1613 = vmatprep.subr.bf16.mxu0 0
    %1614 = vmatpush1.bf16.msra.mxu0 0
    %1615 = vmatprep.subr.bf16.mxu0 0
    %1616 = vmatpush1.bf16.msra.mxu0 0
    %1617 = vmatprep.subr.bf16.mxu0 0
    %1618 = vmatpush1.bf16.msra.mxu0 0
    %1619 = vmatprep.subr.bf16.mxu0 0
    %1620 = vmatpush1.bf16.msra.mxu0 0
    %1621 = vmatprep.subr.bf16.mxu0 0
    %1622 = vmatpush1.bf16.msra.mxu0 0
    %1623 = vmatprep.subr.bf16.mxu0 0
    %1624 = vmatpush1.bf16.msra.mxu0 0
    %1625 = vmatprep.subr.bf16.mxu0 0
    %1626 = vmatpush1.bf16.msra.mxu0 0
    %1627 = vmatprep.subr.bf16.mxu0 0
    %1628 = vmatpush1.bf16.msra.mxu0 0
    %1629 = vmatprep.mubr.bf16.mxu0 0
    %1630 = vmatmul.mubr.bf16.gmra.mrb[0].mxu0 %v1595
    %v1631 = vpop.f32.mrb[0].mxu0
    %v1632 = vadd.f32 0.0, %v1631
    %v1633 = vpop.f32.mrb[0].mxu0
    %v1634 = vpop.f32.mrb[0].mxu0
    %v1635 = vpop.f32.mrb[0].mxu0
    %1636 = vdwg.mxu0
    %v1637 = vld [vmem:[%s6] sm:$0xf]
    %v1638 = vld [vmem:[%s6 + $0x4] sm:$0xf]
    %v1639 = vld [vmem:[%s6 + $0x8] sm:$0xf]
    %v1640 = vld [vmem:[%s6 + $0xc] sm:$0xf]
    %v1641 = vld [vmem:[%s7] sm:$0xf]
    %v1642 = vld [vmem:[%s7 + $0x4] sm:$0xf]
    %v1643 = vld [vmem:[%s7 + $0x8] sm:$0xf]
    %v1644 = vld [vmem:[%s7 + $0xc] sm:$0xf]
    %v1649 = vunpack.c.l.b16 %v1641
    %v1650 = vunpack.c.l.b16 %v1642
    %v1651 = vunpack.c.l.b16 %v1643
    %v1652 = vunpack.c.l.b16 %v1644
    %v1653 = vpack.c.b16 %v1650, %v1649
    %v1654 = vpack.c.b16 %v1652, %v1651
    %1657 = vmatprep.subr.bf16.mxu0 0
    %1658 = vmatpush1.bf16.msra.mxu0 %v1653
    %1659 = vmatprep.subr.bf16.mxu0 0
    %1660 = vmatpush1.bf16.msra.mxu0 %v1654
    %1661 = vmatprep.subr.bf16.mxu0 0
    %1662 = vmatpush1.bf16.msra.mxu0 0
    %1663 = vmatprep.subr.bf16.mxu0 0
    %1664 = vmatpush1.bf16.msra.mxu0 0
    %1665 = vmatprep.subr.bf16.mxu0 0
    %1666 = vmatpush1.bf16.msra.mxu0 0
    %1667 = vmatprep.subr.bf16.mxu0 0
    %1668 = vmatpush1.bf16.msra.mxu0 0
    %1669 = vmatprep.subr.bf16.mxu0 0
    %1670 = vmatpush1.bf16.msra.mxu0 0
    %1671 = vmatprep.subr.bf16.mxu0 0
    %1672 = vmatpush1.bf16.msra.mxu0 0
    %1673 = vmatprep.subr.bf16.mxu0 0
    %1674 = vmatpush1.bf16.msra.mxu0 0
    %1675 = vmatprep.subr.bf16.mxu0 0
    %1676 = vmatpush1.bf16.msra.mxu0 0
    %1677 = vmatprep.subr.bf16.mxu0 0
    %1678 = vmatpush1.bf16.msra.mxu0 0
    %1679 = vmatprep.subr.bf16.mxu0 0
    %1680 = vmatpush1.bf16.msra.mxu0 0
    %1681 = vmatprep.subr.bf16.mxu0 0
    %1682 = vmatpush1.bf16.msra.mxu0 0
    %1683 = vmatprep.subr.bf16.mxu0 0
    %1684 = vmatpush1.bf16.msra.mxu0 0
    %1685 = vmatprep.subr.bf16.mxu0 0
    %1686 = vmatpush1.bf16.msra.mxu0 0
    %1687 = vmatprep.subr.bf16.mxu0 0
    %1688 = vmatpush1.bf16.msra.mxu0 0
    %1689 = vmatprep.mubr.bf16.mxu0 0
    %1690 = vmatmul.mubr.bf16.gmra.mrb[0].mxu0 %v426
    %v1691 = vpop.f32.mrb[0].mxu0
    %v1692 = vadd.f32 0.0, %v1691
    %v1693 = vpop.f32.mrb[0].mxu0
    %v1694 = vpop.f32.mrb[0].mxu0
    %v1695 = vpop.f32.mrb[0].mxu0
    %1696 = vdwg.mxu0
    %1698 = vrot.lane.b32.xlu0 %v1592, 32
    %v1699 = vpop.permute.xlu0 %1698
    %v1704 = vunpack.c.l.b16 %v1637
    %v1705 = vunpack.c.l.b16 %v1638
    %v1706 = vunpack.c.l.b16 %v1639
    %v1707 = vunpack.c.l.b16 %v1640
    %v1708 = vpack.c.b16 %v1705, %v1704
    %v1709 = vpack.c.b16 %v1707, %v1706
    %v1713 = vsel %vm424, %v1699, 0
    %1715 = vmatprep.subr.bf16.mxu0 0
    %1716 = vmatpush1.bf16.msra.mxu0 %v1708
    %1717 = vmatprep.subr.bf16.mxu0 0
    %1718 = vmatpush1.bf16.msra.mxu0 %v1709
    %1719 = vmatprep.subr.bf16.mxu0 0
    %1720 = vmatpush1.bf16.msra.mxu0 0
    %1721 = vmatprep.subr.bf16.mxu0 0
    %1722 = vmatpush1.bf16.msra.mxu0 0
    %1723 = vmatprep.subr.bf16.mxu0 0
    %1724 = vmatpush1.bf16.msra.mxu0 0
    %1725 = vmatprep.subr.bf16.mxu0 0
    %1726 = vmatpush1.bf16.msra.mxu0 0
    %1727 = vmatprep.subr.bf16.mxu0 0
    %1728 = vmatpush1.bf16.msra.mxu0 0
    %1729 = vmatprep.subr.bf16.mxu0 0
    %1730 = vmatpush1.bf16.msra.mxu0 0
    %1731 = vmatprep.subr.bf16.mxu0 0
    %1732 = vmatpush1.bf16.msra.mxu0 0
    %1733 = vmatprep.subr.bf16.mxu0 0
    %1734 = vmatpush1.bf16.msra.mxu0 0
    %1735 = vmatprep.subr.bf16.mxu0 0
    %1736 = vmatpush1.bf16.msra.mxu0 0
    %1737 = vmatprep.subr.bf16.mxu0 0
    %1738 = vmatpush1.bf16.msra.mxu0 0
    %1739 = vmatprep.subr.bf16.mxu0 0
    %1740 = vmatpush1.bf16.msra.mxu0 0
    %1741 = vmatprep.subr.bf16.mxu0 0
    %1742 = vmatpush1.bf16.msra.mxu0 0
    %1743 = vmatprep.subr.bf16.mxu0 0
    %1744 = vmatpush1.bf16.msra.mxu0 0
    %1745 = vmatprep.subr.bf16.mxu0 0
    %1746 = vmatpush1.bf16.msra.mxu0 0
    %1747 = vmatprep.mubr.bf16.mxu0 0
    %1748 = vmatmul.mubr.bf16.gmra.mrb[0].mxu0 %v1713
    %v1749 = vpop.f32.mrb[0].mxu0
    %v1750 = vadd.f32 %v1692, %v1749
    %v1751 = vpop.f32.mrb[0].mxu0
    %v1752 = vpop.f32.mrb[0].mxu0
    %v1753 = vpop.f32.mrb[0].mxu0
    %1754 = vdwg.mxu0
    %v1755 = vld [vmem:[#allocation7] sm:$0x1]
    %v1757 = vlaneseq
    %v1758 = vshrl.u32 %v1757, 7
    %v1759 = vsub.s32 0, %v1758
    %v1760 = vrot.slane %v1755, %v1759
    %v1762 = vadd.f32 %v1750, %v1760
    %v1763 = vld [vmem:[%s9] sm:$0x1]
    %1765 = vrot.lane.b32.xlu0 %v410, 32
    %v1766 = vpop.permute.xlu0 %1765
    %v1771 = vunpack.c.l.b16 %v263
    %v1772 = vunpack.c.l.b16 %v264
    %v1773 = vunpack.c.l.b16 %v265
    %v1774 = vunpack.c.l.b16 %v266
    %v1775 = vpack.c.b16 %v1772, %v1771
    %v1776 = vpack.c.b16 %v1774, %v1773
    %v1780 = vsel %vm424, %v1766, 0
    %1782 = vmatprep.subr.bf16.mxu0 0
    %1783 = vmatpush1.bf16.msra.mxu0 %v1775
    %1784 = vmatprep.subr.bf16.mxu0 0
    %1785 = vmatpush1.bf16.msra.mxu0 %v1776
    %1786 = vmatprep.subr.bf16.mxu0 0
    %1787 = vmatpush1.bf16.msra.mxu0 0
    %1788 = vmatprep.subr.bf16.mxu0 0
    %1789 = vmatpush1.bf16.msra.mxu0 0
    %1790 = vmatprep.subr.bf16.mxu0 0
    %1791 = vmatpush1.bf16.msra.mxu0 0
    %1792 = vmatprep.subr.bf16.mxu0 0
    %1793 = vmatpush1.bf16.msra.mxu0 0
    %1794 = vmatprep.subr.bf16.mxu0 0
    %1795 = vmatpush1.bf16.msra.mxu0 0
    %1796 = vmatprep.subr.bf16.mxu0 0
    %1797 = vmatpush1.bf16.msra.mxu0 0
    %1798 = vmatprep.subr.bf16.mxu0 0
    %1799 = vmatpush1.bf16.msra.mxu0 0
    %1800 = vmatprep.subr.bf16.mxu0 0
    %1801 = vmatpush1.bf16.msra.mxu0 0
    %1802 = vmatprep.subr.bf16.mxu0 0
    %1803 = vmatpush1.bf16.msra.mxu0 0
    %1804 = vmatprep.subr.bf16.mxu0 0
    %1805 = vmatpush1.bf16.msra.mxu0 0
    %1806 = vmatprep.subr.bf16.mxu0 0
    %1807 = vmatpush1.bf16.msra.mxu0 0
    %1808 = vmatprep.subr.bf16.mxu0 0
    %1809 = vmatpush1.bf16.msra.mxu0 0
    %1810 = vmatprep.subr.bf16.mxu0 0
    %1811 = vmatpush1.bf16.msra.mxu0 0
    %1812 = vmatprep.subr.bf16.mxu0 0
    %1813 = vmatpush1.bf16.msra.mxu0 0
    %1814 = vmatprep.mubr.bf16.mxu0 0
    %1815 = vmatmul.mubr.bf16.gmra.mrb[0].mxu0 %v1780
    %v1816 = vpop.f32.mrb[0].mxu0
    %v1817 = vadd.f32 %v1632, %v1816
    %v1818 = vpop.f32.mrb[0].mxu0
    %v1819 = vpop.f32.mrb[0].mxu0
    %v1820 = vpop.f32.mrb[0].mxu0
    %1821 = vdwg.mxu0
    %v1822 = vadd.f32 %v1817, %v1762
    %v1823 = vtanh.pop %v1822
    %v1825 = vlaneseq
    %v1826 = vshrl.u32 %v1825, 7
    %v1827 = vsub.s32 0, %v1826
    %v1828 = vrot.slane %v1763, %v1827
    %v1830 = vmul.f32 %v1823, %v1828
    %vm1831 = vcmask 123904
    %v1832 = vsel %vm1831, %v1830, 0.0
    %1833 = vadd.xlane.f32.xlu0 %v1832
    %v1834 = vpop.xlane.xlu0 %1833
    %1836 = vrot.lane.b32.xlu0 %v590, 32
    %v1837 = vpop.permute.xlu0 %1836
    %v1839 = vsel %vm424, %v1837, 0
    %1841 = vmatprep.subr.bf16.mxu0 0
    %1842 = vmatpush1.bf16.msra.mxu0 %v1775
    %1843 = vmatprep.subr.bf16.mxu0 0
    %1844 = vmatpush1.bf16.msra.mxu0 %v1776
    %1845 = vmatprep.subr.bf16.mxu0 0
    %1846 = vmatpush1.bf16.msra.mxu0 0
    %1847 = vmatprep.subr.bf16.mxu0 0
    %1848 = vmatpush1.bf16.msra.mxu0 0
    %1849 = vmatprep.subr.bf16.mxu0 0
    %1850 = vmatpush1.bf16.msra.mxu0 0
    %1851 = vmatprep.subr.bf16.mxu0 0
    %1852 = vmatpush1.bf16.msra.mxu0 0
    %1853 = vmatprep.subr.bf16.mxu0 0
    %1854 = vmatpush1.bf16.msra.mxu0 0
    %1855 = vmatprep.subr.bf16.mxu0 0
    %1856 = vmatpush1.bf16.msra.mxu0 0
    %1857 = vmatprep.subr.bf16.mxu0 0
    %1858 = vmatpush1.bf16.msra.mxu0 0
    %1859 = vmatprep.subr.bf16.mxu0 0
    %1860 = vmatpush1.bf16.msra.mxu0 0
    %1861 = vmatprep.subr.bf16.mxu0 0
    %1862 = vmatpush1.bf16.msra.mxu0 0
    %1863 = vmatprep.subr.bf16.mxu0 0
    %1864 = vmatpush1.bf16.msra.mxu0 0
    %1865 = vmatprep.subr.bf16.mxu0 0
    %1866 = vmatpush1.bf16.msra.mxu0 0
    %1867 = vmatprep.subr.bf16.mxu0 0
    %1868 = vmatpush1.bf16.msra.mxu0 0
    %1869 = vmatprep.subr.bf16.mxu0 0
    %1870 = vmatpush1.bf16.msra.mxu0 0
    %1871 = vmatprep.subr.bf16.mxu0 0
    %1872 = vmatpush1.bf16.msra.mxu0 0
    %1873 = vmatprep.mubr.bf16.mxu0 0
    %1874 = vmatmul.mubr.bf16.gmra.mrb[0].mxu0 %v1839
    %v1875 = vpop.f32.mrb[0].mxu0
    %v1876 = vadd.f32 %v1465, %v1875
    %v1877 = vpop.f32.mrb[0].mxu0
    %v1878 = vpop.f32.mrb[0].mxu0
    %v1879 = vpop.f32.mrb[0].mxu0
    %1880 = vdwg.mxu0
    %v1881 = vadd.f32 %v1876, %v1762
    %v1882 = vtanh.pop %v1881
    %v1883 = vmul.f32 %v1882, %v1828
    %v1884 = vsel %vm1831, %v1883, 0.0
    %1885 = vadd.xlane.f32.xlu0 %v1884
    %v1886 = vpop.xlane.xlu0 %1885
    %1888 = vrot.lane.b32.xlu0 %v757, 32
    %v1889 = vpop.permute.xlu0 %1888
    %v1891 = vsel %vm424, %v1889, 0
    %1893 = vmatprep.subr.bf16.mxu0 0
    %1894 = vmatpush1.bf16.msra.mxu0 %v1775
    %1895 = vmatprep.subr.bf16.mxu0 0
    %1896 = vmatpush1.bf16.msra.mxu0 %v1776
    %1897 = vmatprep.subr.bf16.mxu0 0
    %1898 = vmatpush1.bf16.msra.mxu0 0
    %1899 = vmatprep.subr.bf16.mxu0 0
    %1900 = vmatpush1.bf16.msra.mxu0 0
    %1901 = vmatprep.subr.bf16.mxu0 0
    %1902 = vmatpush1.bf16.msra.mxu0 0
    %1903 = vmatprep.subr.bf16.mxu0 0
    %1904 = vmatpush1.bf16.msra.mxu0 0
    %1905 = vmatprep.subr.bf16.mxu0 0
    %1906 = vmatpush1.bf16.msra.mxu0 0
    %1907 = vmatprep.subr.bf16.mxu0 0
    %1908 = vmatpush1.bf16.msra.mxu0 0
    %1909 = vmatprep.subr.bf16.mxu0 0
    %1910 = vmatpush1.bf16.msra.mxu0 0
    %1911 = vmatprep.subr.bf16.mxu0 0
    %1912 = vmatpush1.bf16.msra.mxu0 0
    %1913 = vmatprep.subr.bf16.mxu0 0
    %1914 = vmatpush1.bf16.msra.mxu0 0
    %1915 = vmatprep.subr.bf16.mxu0 0
    %1916 = vmatpush1.bf16.msra.mxu0 0
    %1917 = vmatprep.subr.bf16.mxu0 0
    %1918 = vmatpush1.bf16.msra.mxu0 0
    %1919 = vmatprep.subr.bf16.mxu0 0
    %1920 = vmatpush1.bf16.msra.mxu0 0
    %1921 = vmatprep.subr.bf16.mxu0 0
    %1922 = vmatpush1.bf16.msra.mxu0 0
    %1923 = vmatprep.subr.bf16.mxu0 0
    %1924 = vmatpush1.bf16.msra.mxu0 0
    %1925 = vmatprep.mubr.bf16.mxu0 0
    %1926 = vmatmul.mubr.bf16.gmra.mrb[0].mxu0 %v1891
    %v1927 = vpop.f32.mrb[0].mxu0
    %v1928 = vadd.f32 %v1298, %v1927
    %v1929 = vpop.f32.mrb[0].mxu0
    %v1930 = vpop.f32.mrb[0].mxu0
    %v1931 = vpop.f32.mrb[0].mxu0
    %1932 = vdwg.mxu0
    %v1933 = vadd.f32 %v1928, %v1762
    %v1934 = vtanh.pop %v1933
    %v1935 = vmul.f32 %v1934, %v1828
    %v1936 = vsel %vm1831, %v1935, 0.0
    %1937 = vadd.xlane.f32.xlu0 %v1936
    %v1938 = vpop.xlane.xlu0 %1937
    %1940 = vrot.lane.b32.xlu0 %v924, 32
    %v1941 = vpop.permute.xlu0 %1940
    %v1943 = vsel %vm424, %v1941, 0
    %1945 = vmatprep.subr.bf16.mxu0 0
    %1946 = vmatpush1.bf16.msra.mxu0 %v1775
    %1947 = vmatprep.subr.bf16.mxu0 0
    %1948 = vmatpush1.bf16.msra.mxu0 %v1776
    %1949 = vmatprep.subr.bf16.mxu0 0
    %1950 = vmatpush1.bf16.msra.mxu0 0
    %1951 = vmatprep.subr.bf16.mxu0 0
    %1952 = vmatpush1.bf16.msra.mxu0 0
    %1953 = vmatprep.subr.bf16.mxu0 0
    %1954 = vmatpush1.bf16.msra.mxu0 0
    %1955 = vmatprep.subr.bf16.mxu0 0
    %1956 = vmatpush1.bf16.msra.mxu0 0
    %1957 = vmatprep.subr.bf16.mxu0 0
    %1958 = vmatpush1.bf16.msra.mxu0 0
    %1959 = vmatprep.subr.bf16.mxu0 0
    %1960 = vmatpush1.bf16.msra.mxu0 0
    %1961 = vmatprep.subr.bf16.mxu0 0
    %1962 = vmatpush1.bf16.msra.mxu0 0
    %1963 = vmatprep.subr.bf16.mxu0 0
    %1964 = vmatpush1.bf16.msra.mxu0 0
    %1965 = vmatprep.subr.bf16.mxu0 0
    %1966 = vmatpush1.bf16.msra.mxu0 0
    %1967 = vmatprep.subr.bf16.mxu0 0
    %1968 = vmatpush1.bf16.msra.mxu0 0
    %1969 = vmatprep.subr.bf16.mxu0 0
    %1970 = vmatpush1.bf16.msra.mxu0 0
    %1971 = vmatprep.subr.bf16.mxu0 0
    %1972 = vmatpush1.bf16.msra.mxu0 0
    %1973 = vmatprep.subr.bf16.mxu0 0
    %1974 = vmatpush1.bf16.msra.mxu0 0
    %1975 = vmatprep.subr.bf16.mxu0 0
    %1976 = vmatpush1.bf16.msra.mxu0 0
    %1977 = vmatprep.mubr.bf16.mxu0 0
    %1978 = vmatmul.mubr.bf16.gmra.mrb[0].mxu0 %v1943
    %v1979 = vpop.f32.mrb[0].mxu0
    %v1980 = vadd.f32 %v1131, %v1979
    %v1981 = vpop.f32.mrb[0].mxu0
    %v1982 = vpop.f32.mrb[0].mxu0
    %v1983 = vpop.f32.mrb[0].mxu0
    %1984 = vdwg.mxu0
    %v1985 = vadd.f32 %v1980, %v1762
    %v1986 = vtanh.pop %v1985
    %v1987 = vmul.f32 %v1986, %v1828
    %v1988 = vsel %vm1831, %v1987, 0.0
    %1989 = vadd.xlane.f32.xlu0 %v1988
    %v1990 = vpop.xlane.xlu0 %1989
    %1992 = vrot.lane.b32.xlu0 %v1091, 32
    %v1993 = vpop.permute.xlu0 %1992
    %v1995 = vsel %vm424, %v1993, 0
    %1997 = vmatprep.subr.bf16.mxu0 0
    %1998 = vmatpush1.bf16.msra.mxu0 %v1775
    %1999 = vmatprep.subr.bf16.mxu0 0
    %2000 = vmatpush1.bf16.msra.mxu0 %v1776
    %2001 = vmatprep.subr.bf16.mxu0 0
    %2002 = vmatpush1.bf16.msra.mxu0 0
    %2003 = vmatprep.subr.bf16.mxu0 0
    %2004 = vmatpush1.bf16.msra.mxu0 0
    %2005 = vmatprep.subr.bf16.mxu0 0
    %2006 = vmatpush1.bf16.msra.mxu0 0
    %2007 = vmatprep.subr.bf16.mxu0 0
    %2008 = vmatpush1.bf16.msra.mxu0 0
    %2009 = vmatprep.subr.bf16.mxu0 0
    %2010 = vmatpush1.bf16.msra.mxu0 0
    %2011 = vmatprep.subr.bf16.mxu0 0
    %2012 = vmatpush1.bf16.msra.mxu0 0
    %2013 = vmatprep.subr.bf16.mxu0 0
    %2014 = vmatpush1.bf16.msra.mxu0 0
    %2015 = vmatprep.subr.bf16.mxu0 0
    %2016 = vmatpush1.bf16.msra.mxu0 0
    %2017 = vmatprep.subr.bf16.mxu0 0
    %2018 = vmatpush1.bf16.msra.mxu0 0
    %2019 = vmatprep.subr.bf16.mxu0 0
    %2020 = vmatpush1.bf16.msra.mxu0 0
    %2021 = vmatprep.subr.bf16.mxu0 0
    %2022 = vmatpush1.bf16.msra.mxu0 0
    %2023 = vmatprep.subr.bf16.mxu0 0
    %2024 = vmatpush1.bf16.msra.mxu0 0
    %2025 = vmatprep.subr.bf16.mxu0 0
    %2026 = vmatpush1.bf16.msra.mxu0 0
    %2027 = vmatprep.subr.bf16.mxu0 0
    %2028 = vmatpush1.bf16.msra.mxu0 0
    %2029 = vmatprep.mubr.bf16.mxu0 0
    %2030 = vmatmul.mubr.bf16.gmra.mrb[0].mxu0 %v1995
    %v2031 = vpop.f32.mrb[0].mxu0
    %v2032 = vadd.f32 %v964, %v2031
    %v2033 = vpop.f32.mrb[0].mxu0
    %v2034 = vpop.f32.mrb[0].mxu0
    %v2035 = vpop.f32.mrb[0].mxu0
    %2036 = vdwg.mxu0
    %v2037 = vadd.f32 %v2032, %v1762
    %v2038 = vtanh.pop %v2037
    %v2039 = vmul.f32 %v2038, %v1828
    %v2040 = vsel %vm1831, %v2039, 0.0
    %2041 = vadd.xlane.f32.xlu0 %v2040
    %v2042 = vpop.xlane.xlu0 %2041
    %2044 = vrot.lane.b32.xlu0 %v1258, 32
    %v2045 = vpop.permute.xlu0 %2044
    %v2047 = vsel %vm424, %v2045, 0
    %2049 = vmatprep.subr.bf16.mxu0 0
    %2050 = vmatpush1.bf16.msra.mxu0 %v1775
    %2051 = vmatprep.subr.bf16.mxu0 0
    %2052 = vmatpush1.bf16.msra.mxu0 %v1776
    %2053 = vmatprep.subr.bf16.mxu0 0
    %2054 = vmatpush1.bf16.msra.mxu0 0
    %2055 = vmatprep.subr.bf16.mxu0 0
    %2056 = vmatpush1.bf16.msra.mxu0 0
    %2057 = vmatprep.subr.bf16.mxu0 0
    %2058 = vmatpush1.bf16.msra.mxu0 0
    %2059 = vmatprep.subr.bf16.mxu0 0
    %2060 = vmatpush1.bf16.msra.mxu0 0
    %2061 = vmatprep.subr.bf16.mxu0 0
    %2062 = vmatpush1.bf16.msra.mxu0 0
    %2063 = vmatprep.subr.bf16.mxu0 0
    %2064 = vmatpush1.bf16.msra.mxu0 0
    %2065 = vmatprep.subr.bf16.mxu0 0
    %2066 = vmatpush1.bf16.msra.mxu0 0
    %2067 = vmatprep.subr.bf16.mxu0 0
    %2068 = vmatpush1.bf16.msra.mxu0 0
    %2069 = vmatprep.subr.bf16.mxu0 0
    %2070 = vmatpush1.bf16.msra.mxu0 0
    %2071 = vmatprep.subr.bf16.mxu0 0
    %2072 = vmatpush1.bf16.msra.mxu0 0
    %2073 = vmatprep.subr.bf16.mxu0 0
    %2074 = vmatpush1.bf16.msra.mxu0 0
    %2075 = vmatprep.subr.bf16.mxu0 0
    %2076 = vmatpush1.bf16.msra.mxu0 0
    %2077 = vmatprep.subr.bf16.mxu0 0
    %2078 = vmatpush1.bf16.msra.mxu0 0
    %2079 = vmatprep.subr.bf16.mxu0 0
    %2080 = vmatpush1.bf16.msra.mxu0 0
    %2081 = vmatprep.mubr.bf16.mxu0 0
    %2082 = vmatmul.mubr.bf16.gmra.mrb[0].mxu0 %v2047
    %v2083 = vpop.f32.mrb[0].mxu0
    %v2084 = vadd.f32 %v797, %v2083
    %v2085 = vpop.f32.mrb[0].mxu0
    %v2086 = vpop.f32.mrb[0].mxu0
    %v2087 = vpop.f32.mrb[0].mxu0
    %2088 = vdwg.mxu0
    %v2089 = vadd.f32 %v2084, %v1762
    %v2090 = vtanh.pop %v2089
    %v2091 = vmul.f32 %v2090, %v1828
    %v2092 = vsel %vm1831, %v2091, 0.0
    %2093 = vadd.xlane.f32.xlu0 %v2092
    %v2094 = vpop.xlane.xlu0 %2093
    %2096 = vrot.lane.b32.xlu0 %v1425, 32
    %v2097 = vpop.permute.xlu0 %2096
    %v2099 = vsel %vm424, %v2097, 0
    %2101 = vmatprep.subr.bf16.mxu0 0
    %2102 = vmatpush1.bf16.msra.mxu0 %v1775
    %2103 = vmatprep.subr.bf16.mxu0 0
    %2104 = vmatpush1.bf16.msra.mxu0 %v1776
    %2105 = vmatprep.subr.bf16.mxu0 0
    %2106 = vmatpush1.bf16.msra.mxu0 0
    %2107 = vmatprep.subr.bf16.mxu0 0
    %2108 = vmatpush1.bf16.msra.mxu0 0
    %2109 = vmatprep.subr.bf16.mxu0 0
    %2110 = vmatpush1.bf16.msra.mxu0 0
    %2111 = vmatprep.subr.bf16.mxu0 0
    %2112 = vmatpush1.bf16.msra.mxu0 0
    %2113 = vmatprep.subr.bf16.mxu0 0
    %2114 = vmatpush1.bf16.msra.mxu0 0
    %2115 = vmatprep.subr.bf16.mxu0 0
    %2116 = vmatpush1.bf16.msra.mxu0 0
    %2117 = vmatprep.subr.bf16.mxu0 0
    %2118 = vmatpush1.bf16.msra.mxu0 0
    %2119 = vmatprep.subr.bf16.mxu0 0
    %2120 = vmatpush1.bf16.msra.mxu0 0
    %2121 = vmatprep.subr.bf16.mxu0 0
    %2122 = vmatpush1.bf16.msra.mxu0 0
    %2123 = vmatprep.subr.bf16.mxu0 0
    %2124 = vmatpush1.bf16.msra.mxu0 0
    %2125 = vmatprep.subr.bf16.mxu0 0
    %2126 = vmatpush1.bf16.msra.mxu0 0
    %2127 = vmatprep.subr.bf16.mxu0 0
    %2128 = vmatpush1.bf16.msra.mxu0 0
    %2129 = vmatprep.subr.bf16.mxu0 0
    %2130 = vmatpush1.bf16.msra.mxu0 0
    %2131 = vmatprep.subr.bf16.mxu0 0
    %2132 = vmatpush1.bf16.msra.mxu0 0
    %2133 = vmatprep.mubr.bf16.mxu0 0
    %2134 = vmatmul.mubr.bf16.gmra.mrb[0].mxu0 %v2099
    %v2135 = vpop.f32.mrb[0].mxu0
    %v2136 = vadd.f32 %v630, %v2135
    %v2137 = vpop.f32.mrb[0].mxu0
    %v2138 = vpop.f32.mrb[0].mxu0
    %v2139 = vpop.f32.mrb[0].mxu0
    %2140 = vdwg.mxu0
    %v2141 = vadd.f32 %v2136, %v1762
    %v2142 = vtanh.pop %v2141
    %v2143 = vmul.f32 %v2142, %v1828
    %v2144 = vsel %vm1831, %v2143, 0.0
    %2145 = vadd.xlane.f32.xlu0 %v2144
    %v2146 = vpop.xlane.xlu0 %2145
    %2147 = vmatprep.subr.bf16.mxu0 0
    %2148 = vmatpush1.bf16.msra.mxu0 %v1775
    %2149 = vmatprep.subr.bf16.mxu0 0
    %2150 = vmatpush1.bf16.msra.mxu0 %v1776
    %2151 = vmatprep.subr.bf16.mxu0 0
    %2152 = vmatpush1.bf16.msra.mxu0 0
    %2153 = vmatprep.subr.bf16.mxu0 0
    %2154 = vmatpush1.bf16.msra.mxu0 0
    %2155 = vmatprep.subr.bf16.mxu0 0
    %2156 = vmatpush1.bf16.msra.mxu0 0
    %2157 = vmatprep.subr.bf16.mxu0 0
    %2158 = vmatpush1.bf16.msra.mxu0 0
    %2159 = vmatprep.subr.bf16.mxu0 0
    %2160 = vmatpush1.bf16.msra.mxu0 0
    %2161 = vmatprep.subr.bf16.mxu0 0
    %2162 = vmatpush1.bf16.msra.mxu0 0
    %2163 = vmatprep.subr.bf16.mxu0 0
    %2164 = vmatpush1.bf16.msra.mxu0 0
    %2165 = vmatprep.subr.bf16.mxu0 0
    %2166 = vmatpush1.bf16.msra.mxu0 0
    %2167 = vmatprep.subr.bf16.mxu0 0
    %2168 = vmatpush1.bf16.msra.mxu0 0
    %2169 = vmatprep.subr.bf16.mxu0 0
    %2170 = vmatpush1.bf16.msra.mxu0 0
    %2171 = vmatprep.subr.bf16.mxu0 0
    %2172 = vmatpush1.bf16.msra.mxu0 0
    %2173 = vmatprep.subr.bf16.mxu0 0
    %2174 = vmatpush1.bf16.msra.mxu0 0
    %2175 = vmatprep.subr.bf16.mxu0 0
    %2176 = vmatpush1.bf16.msra.mxu0 0
    %2177 = vmatprep.subr.bf16.mxu0 0
    %2178 = vmatpush1.bf16.msra.mxu0 0
    %2179 = vmatprep.mubr.bf16.mxu0 0
    %2180 = vmatmul.mubr.bf16.gmra.mrb[0].mxu0 %v1713
    %v2181 = vpop.f32.mrb[0].mxu0
    %v2182 = vadd.f32 %v463, %v2181
    %v2183 = vpop.f32.mrb[0].mxu0
    %v2184 = vpop.f32.mrb[0].mxu0
    %v2185 = vpop.f32.mrb[0].mxu0
    %2186 = vdwg.mxu0
    %v2187 = vadd.f32 %v2182, %v1762
    %v2188 = vtanh.pop %v2187
    %v2189 = vmul.f32 %v2188, %v1828
    %v2190 = vsel %vm1831, %v2189, 0.0
    %2191 = vadd.xlane.f32.xlu0 %v2190
    %v2192 = vpop.xlane.xlu0 %2191
    %v2193 = vmax.f32 %v1834, %v1886
    %v2194 = vmax.f32 %v2193, %v1938
    %v2195 = vmax.f32 %v2194, %v1990
    %v2196 = vmax.f32 %v2195, %v2042
    %v2197 = vmax.f32 %v2196, %v2094
    %v2198 = vmax.f32 %v2197, %v2146
    %v2199 = vmax.f32 %v2198, %v2192
    %v2200 = vsub.f32 %v1834, %v2199
    %v2201 = vmul.f32 %v2200, 1.442695
    %v2202 = vpow.pop %v2201
    %v2203 = vsub.f32 %v1886, %v2199
    %v2204 = vmul.f32 %v2203, 1.442695
    %v2205 = vpow.pop %v2204
    %v2206 = vsub.f32 %v1938, %v2199
    %v2207 = vmul.f32 %v2206, 1.442695
    %v2208 = vpow.pop %v2207
    %v2209 = vsub.f32 %v1990, %v2199
    %v2210 = vmul.f32 %v2209, 1.442695
    %v2211 = vpow.pop %v2210
    %v2212 = vsub.f32 %v2042, %v2199
    %v2213 = vmul.f32 %v2212, 1.442695
    %v2214 = vpow.pop %v2213
    %v2215 = vsub.f32 %v2094, %v2199
    %v2216 = vmul.f32 %v2215, 1.442695
    %v2217 = vpow.pop %v2216
    %v2218 = vsub.f32 %v2146, %v2199
    %v2219 = vmul.f32 %v2218, 1.442695
    %v2220 = vpow.pop %v2219
    %v2221 = vsub.f32 %v2192, %v2199
    %v2222 = vmul.f32 %v2221, 1.442695
    %v2223 = vpow.pop %v2222
    %v2224 = vadd.f32 %v2202, %v2205
    %v2225 = vadd.f32 %v2224, %v2208
    %v2226 = vadd.f32 %v2225, %v2211
    %v2227 = vadd.f32 %v2226, %v2214
    %v2228 = vadd.f32 %v2227, %v2217
    %v2229 = vadd.f32 %v2228, %v2220
    %v2230 = vadd.f32 %v2229, %v2223
    %v2231 = vrcp.pop %v2230
    %v2232 = vmul.f32 1.0, %v2231
    %v2233 = vmul.f32 %v2202, %v477
    %v2234 = vmul.f32 %v2202, %v1591
    %v2235 = vmul.f32 %v2205, %v644
    %v2236 = vadd.f32 %v2233, %v2235
    %v2237 = vmul.f32 %v2205, %v1424
    %v2238 = vadd.f32 %v2234, %v2237
    %v2239 = vmul.f32 %v2208, %v811
    %v2240 = vadd.f32 %v2236, %v2239
    %v2241 = vmul.f32 %v2208, %v1257
    %v2242 = vadd.f32 %v2238, %v2241
    %v2243 = vmul.f32 %v2211, %v978
    %v2244 = vadd.f32 %v2240, %v2243
    %v2245 = vmul.f32 %v2211, %v1090
    %v2246 = vadd.f32 %v2242, %v2245
    %v2247 = vmul.f32 %v2214, %v1145
    %v2248 = vadd.f32 %v2244, %v2247
    %v2249 = vmul.f32 %v2214, %v923
    %v2250 = vadd.f32 %v2246, %v2249
    %v2251 = vmul.f32 %v2217, %v1312
    %v2252 = vadd.f32 %v2248, %v2251
    %v2253 = vmul.f32 %v2217, %v756
    %v2254 = vadd.f32 %v2250, %v2253
    %v2255 = vmul.f32 %v2220, %v1479
    %v2256 = vadd.f32 %v2252, %v2255
    %v2257 = vmul.f32 %v2220, %v589
    %v2258 = vadd.f32 %v2254, %v2257
    %v2261 = vunpack.c.l.s4 1983009808
    %v2262 = vunpack.c.0.s8 %v2261
    %v2263 = vlaneseq
    %v2264 = vshrl.u32 %v2263, 7
    %v2265 = vsub.s32 %v2262, %v2264
    %v2266 = vrot.slane %v1573, %v2265
    %2267 = vrot.lane.b32.xlu0 %v2266, 32
    %v2268 = vpop.permute.xlu0 %2267
    %v2270 = vmul.f32 %v2223, %v2268
    %v2271 = vadd.f32 %v2256, %v2270
    %v2272 = vmul.f32 %v2223, %v409
    %v2273 = vadd.f32 %v2258, %v2272
    %v2274 = vmul.f32 %v2271, %v2232
    %v2275 = vmul.f32 %v2273, %v2232
    %vm2276 = vcmask 7168
    %v2277 = vsel %vm2276, %v2202, %v2205
    %vm2278 = vcmask 15360
    %v2279 = vsel %vm2278, %v2277, %v2208
    %vm2280 = vcmask 23552
    %v2281 = vsel %vm2280, %v2279, %v2211
    %vm2282 = vcmask 31744
    %v2283 = vsel %vm2282, %v2281, %v2214
    %vm2284 = vcmask 39936
    %v2285 = vsel %vm2284, %v2283, %v2217
    %vm2286 = vcmask 48128
    %v2287 = vsel %vm2286, %v2285, %v2220
    %vm2288 = vcmask 56320
    %v2289 = vsel %vm2288, %v2287, %v2223
    %v2290 = vmul.f32 %v2289, %v2232
    %vm2291 = vcmask 58368
    %2292 = vst.msk [vmem:[#allocation8] sm:$0x3] %vm2291, %v2290
    %v2293 = vpack.c.bf16 %v2274, %v2274
    %v2294 = vld [vmem:[%s10] sm:$0xf]
    %v2295 = vld [vmem:[%s10 + $0x4] sm:$0xf]
    %v2296 = vld [vmem:[%s10 + $0x8] sm:$0xf]
    %v2297 = vld [vmem:[%s10 + $0xc] sm:$0xf]
    %v2298 = vpack.c.bf16 %v2275, %v2275
    %v2299 = vld [vmem:[%s11] sm:$0xf]
    %v2300 = vld [vmem:[%s11 + $0x4] sm:$0xf]
    %v2301 = vld [vmem:[%s11 + $0x8] sm:$0xf]
    %v2302 = vld [vmem:[%s11 + $0xc] sm:$0xf]
    %v2307 = vunpack.c.l.b16 %v2299
    %v2308 = vunpack.c.l.b16 %v2300
    %v2309 = vunpack.c.l.b16 %v2301
    %v2310 = vunpack.c.l.b16 %v2302
    %v2311 = vpack.c.b16 %v2308, %v2307
    %v2312 = vpack.c.b16 %v2310, %v2309
    %v2316 = vsel %vm424, %v2298, 0
    %2318 = vmatprep.subr.bf16.mxu0 0
    %2319 = vmatpush1.bf16.msra.mxu0 %v2311
    %2320 = vmatprep.subr.bf16.mxu0 0
    %2321 = vmatpush1.bf16.msra.mxu0 %v2312
    %2322 = vmatprep.subr.bf16.mxu0 0
    %2323 = vmatpush1.bf16.msra.mxu0 0
    %2324 = vmatprep.subr.bf16.mxu0 0
    %2325 = vmatpush1.bf16.msra.mxu0 0
    %2326 = vmatprep.subr.bf16.mxu0 0
    %2327 = vmatpush1.bf16.msra.mxu0 0
    %2328 = vmatprep.subr.bf16.mxu0 0
    %2329 = vmatpush1.bf16.msra.mxu0 0
    %2330 = vmatprep.subr.bf16.mxu0 0
    %2331 = vmatpush1.bf16.msra.mxu0 0
    %2332 = vmatprep.subr.bf16.mxu0 0
    %2333 = vmatpush1.bf16.msra.mxu0 0
    %2334 = vmatprep.subr.bf16.mxu0 0
    %2335 = vmatpush1.bf16.msra.mxu0 0
    %2336 = vmatprep.subr.bf16.mxu0 0
    %2337 = vmatpush1.bf16.msra.mxu0 0
    %2338 = vmatprep.subr.bf16.mxu0 0
    %2339 = vmatpush1.bf16.msra.mxu0 0
    %2340 = vmatprep.subr.bf16.mxu0 0
    %2341 = vmatpush1.bf16.msra.mxu0 0
    %2342 = vmatprep.subr.bf16.mxu0 0
    %2343 = vmatpush1.bf16.msra.mxu0 0
    %2344 = vmatprep.subr.bf16.mxu0 0
    %2345 = vmatpush1.bf16.msra.mxu0 0
    %2346 = vmatprep.subr.bf16.mxu0 0
    %2347 = vmatpush1.bf16.msra.mxu0 0
    %2348 = vmatprep.subr.bf16.mxu0 0
    %2349 = vmatpush1.bf16.msra.mxu0 0
    %2350 = vmatprep.mubr.bf16.mxu0 0
    %2351 = vmatmul.mubr.bf16.gmra.mrb[0].mxu0 %v2316
    %v2352 = vpop.f32.mrb[0].mxu0
    %v2353 = vadd.f32 0.0, %v2352
    %v2354 = vpop.f32.mrb[0].mxu0
    %v2355 = vpop.f32.mrb[0].mxu0
    %v2356 = vpop.f32.mrb[0].mxu0
    %2357 = vdwg.mxu0
    %v2362 = vunpack.c.l.b16 %v2294
    %v2363 = vunpack.c.l.b16 %v2295
    %v2364 = vunpack.c.l.b16 %v2296
    %v2365 = vunpack.c.l.b16 %v2297
    %v2366 = vpack.c.b16 %v2363, %v2362
    %v2367 = vpack.c.b16 %v2365, %v2364
    %v2371 = vsel %vm424, %v2293, 0
    %2373 = vmatprep.subr.bf16.mxu0 0
    %2374 = vmatpush1.bf16.msra.mxu0 %v2366
    %2375 = vmatprep.subr.bf16.mxu0 0
    %2376 = vmatpush1.bf16.msra.mxu0 %v2367
    %2377 = vmatprep.subr.bf16.mxu0 0
    %2378 = vmatpush1.bf16.msra.mxu0 0
    %2379 = vmatprep.subr.bf16.mxu0 0
    %2380 = vmatpush1.bf16.msra.mxu0 0
    %2381 = vmatprep.subr.bf16.mxu0 0
    %2382 = vmatpush1.bf16.msra.mxu0 0
    %2383 = vmatprep.subr.bf16.mxu0 0
    %2384 = vmatpush1.bf16.msra.mxu0 0
    %2385 = vmatprep.subr.bf16.mxu0 0
    %2386 = vmatpush1.bf16.msra.mxu0 0
    %2387 = vmatprep.subr.bf16.mxu0 0
    %2388 = vmatpush1.bf16.msra.mxu0 0
    %2389 = vmatprep.subr.bf16.mxu0 0
    %2390 = vmatpush1.bf16.msra.mxu0 0
    %2391 = vmatprep.subr.bf16.mxu0 0
    %2392 = vmatpush1.bf16.msra.mxu0 0
    %2393 = vmatprep.subr.bf16.mxu0 0
    %2394 = vmatpush1.bf16.msra.mxu0 0
    %2395 = vmatprep.subr.bf16.mxu0 0
    %2396 = vmatpush1.bf16.msra.mxu0 0
    %2397 = vmatprep.subr.bf16.mxu0 0
    %2398 = vmatpush1.bf16.msra.mxu0 0
    %2399 = vmatprep.subr.bf16.mxu0 0
    %2400 = vmatpush1.bf16.msra.mxu0 0
    %2401 = vmatprep.subr.bf16.mxu0 0
    %2402 = vmatpush1.bf16.msra.mxu0 0
    %2403 = vmatprep.subr.bf16.mxu0 0
    %2404 = vmatpush1.bf16.msra.mxu0 0
    %2405 = vmatprep.mubr.bf16.mxu0 0
    %2406 = vmatmul.mubr.bf16.gmra.mrb[0].mxu0 %v2371
    %v2407 = vpop.f32.mrb[0].mxu0
    %v2408 = vadd.f32 %v2353, %v2407
    %v2409 = vpop.f32.mrb[0].mxu0
    %v2410 = vpop.f32.mrb[0].mxu0
    %v2411 = vpop.f32.mrb[0].mxu0
    %2412 = vdwg.mxu0
    %v2413 = vld [vmem:[%s12] sm:$0x1]
    %v2415 = vlaneseq
    %v2416 = vshrl.u32 %v2415, 7
    %v2417 = vsub.s32 0, %v2416
    %v2418 = vrot.slane %v2413, %v2417
    %v2420 = vadd.f32 %v2408, %v2418
    %vm2421 = vcmask 517120
    %2422 = vst.msk [vmem:[#allocation9] sm:$0x3] %vm2421, %v2420
    %v2423 = vpack.c.bf16 %v2420, %v2420
    %v2424 = vld [vmem:[%s13] sm:$0xf]
    %v2425 = vld [vmem:[%s13 + $0x4] sm:$0xf]
    %v2426 = vld [vmem:[%s13 + $0x8] sm:$0xf]
    %v2427 = vld [vmem:[%s13 + $0xc] sm:$0xf]
    %v2428 = vld [vmem:[%s13 + $0x10] sm:$0xf]
    %v2429 = vld [vmem:[%s13 + $0x14] sm:$0xf]
    %v2430 = vld [vmem:[%s13 + $0x18] sm:$0xf]
    %v2431 = vld [vmem:[%s13 + $0x1c] sm:$0xf]
    %v2432 = vld [vmem:[%s14] sm:$0x1]
    %v2434 = vlaneseq
    %v2435 = vshrl.u32 %v2434, 7
    %v2436 = vsub.s32 0, %v2435
    %v2437 = vrot.slane %v2432, %v2436
    %v2447 = vunpack.c.l.b16 %v2424
    %v2448 = vunpack.c.l.b16 %v2425
    %v2449 = vunpack.c.l.b16 %v2426
    %v2450 = vunpack.c.l.b16 %v2427
    %v2451 = vunpack.c.l.b16 %v2428
    %v2452 = vunpack.c.l.b16 %v2429
    %v2453 = vunpack.c.l.b16 %v2430
    %v2454 = vunpack.c.l.b16 %v2431
    %v2455 = vpack.c.b16 %v2448, %v2447
    %v2456 = vpack.c.b16 %v2450, %v2449
    %v2457 = vpack.c.b16 %v2452, %v2451
    %v2458 = vpack.c.b16 %v2454, %v2453
    %v2464 = vsel %vm160, %v2423, 0
    %2466 = vmatprep.subr.bf16.mxu0 0
    %2467 = vmatpush1.bf16.msra.mxu0 %v2455
    %2468 = vmatprep.subr.bf16.mxu0 0
    %2469 = vmatpush1.bf16.msra.mxu0 %v2456
    %2470 = vmatprep.subr.bf16.mxu0 0
    %2471 = vmatpush1.bf16.msra.mxu0 %v2457
    %2472 = vmatprep.subr.bf16.mxu0 0
    %2473 = vmatpush1.bf16.msra.mxu0 %v2458
    %2474 = vmatprep.subr.bf16.mxu0 0
    %2475 = vmatpush1.bf16.msra.mxu0 0
    %2476 = vmatprep.subr.bf16.mxu0 0
    %2477 = vmatpush1.bf16.msra.mxu0 0
    %2478 = vmatprep.subr.bf16.mxu0 0
    %2479 = vmatpush1.bf16.msra.mxu0 0
    %2480 = vmatprep.subr.bf16.mxu0 0
    %2481 = vmatpush1.bf16.msra.mxu0 0
    %2482 = vmatprep.subr.bf16.mxu0 0
    %2483 = vmatpush1.bf16.msra.mxu0 0
    %2484 = vmatprep.subr.bf16.mxu0 0
    %2485 = vmatpush1.bf16.msra.mxu0 0
    %2486 = vmatprep.subr.bf16.mxu0 0
    %2487 = vmatpush1.bf16.msra.mxu0 0
    %2488 = vmatprep.subr.bf16.mxu0 0
    %2489 = vmatpush1.bf16.msra.mxu0 0
    %2490 = vmatprep.subr.bf16.mxu0 0
    %2491 = vmatpush1.bf16.msra.mxu0 0
    %2492 = vmatprep.subr.bf16.mxu0 0
    %2493 = vmatpush1.bf16.msra.mxu0 0
    %2494 = vmatprep.subr.bf16.mxu0 0
    %2495 = vmatpush1.bf16.msra.mxu0 0
    %2496 = vmatprep.subr.bf16.mxu0 0
    %2497 = vmatpush1.bf16.msra.mxu0 0
    %2498 = vmatprep.mubr.bf16.mxu0 0
    %2499 = vmatmul.mubr.bf16.gmra.mrb[0].mxu0 %v2464
    %v2500 = vpop.f32.mrb[0].mxu0
    %v2501 = vadd.f32 %v2437, %v2500
    %v2502 = vpop.f32.mrb[0].mxu0
    %v2503 = vpop.f32.mrb[0].mxu0
    %v2504 = vpop.f32.mrb[0].mxu0
    %2505 = vdwg.mxu0
    %vm2506 = vcmask 25600
    %v2507 = vsel %vm2506, %v2501, -inf
    %2508 = vmax.xlane.f32.xlu0 %v2507
    %v2509 = vpop.xlane.xlu0 %2508
    %v2510 = vsub.f32 %v2501, %v2509
    %v2511 = vmul.f32 %v2510, 1.442695
    %v2512 = vpow.pop %v2511
    %v2513 = vsel %vm2506, %v2512, 0.0
    %2514 = vadd.xlane.f32.xlu0 %v2513
    %v2515 = vpop.xlane.xlu0 %2514
    %v2516 = vrcp.pop %v2515
    %v2517 = vmul.f32 %v2512, %v2516
    %2518 = vst.msk [vmem:[#allocation11] sm:$0x3] %vm2506, %v2517
    // Predicated region
    $region74: #{tpu_custom_call.1} parent=1 // pred_check
      _
    $region75: #{tpu_custom_call.1} parent=1 // pred_check_branch
      %2520 = sbr.rel (0) target = $region77
    $region76: #{tpu_custom_call.1} parent=1 // pred_region
      %s2522 = ssub.s32 32, 32
      %2523 = vsyncadd [#allocation4], %s2522
      %s2525 = sshll.u32 [#allocation8], 4
      %s2526 = int_to_ptr.vmem [resolvable:$true] %s2525
      %2528 = dma.vmem_to_hbm [thread:$0]  %s2526, 32, %s15, [#allocation4]
    $region77: #{tpu_custom_call.1} parent=1 // pred_fallthru
      _
    // Predicated region
    $region78: #{tpu_custom_call.1} parent=1 // pred_check
      _
    $region79: #{tpu_custom_call.1} parent=1 // pred_check_branch
      %2530 = sbr.rel (0) target = $region81
    $region80: #{tpu_custom_call.1} parent=1 // pred_region
      %s2532 = ssub.s32 32, 32
      %2533 = vsyncadd [#allocation10], %s2532
      %s2535 = sshll.u32 [#allocation9], 4
      %s2536 = int_to_ptr.vmem [resolvable:$true] %s2535
      %2538 = dma.vmem_to_hbm [thread:$0]  %s2536, 32, %s16, [#allocation10]
    $region81: #{tpu_custom_call.1} parent=1 // pred_fallthru
      _
    // Predicated region
    $region82: #{tpu_custom_call.1} parent=1 // pred_check
      _
    $region83: #{tpu_custom_call.1} parent=1 // pred_check_branch
      %2540 = sbr.rel (0) target = $region85
    $region84: #{tpu_custom_call.1} parent=1 // pred_region
      %s2542 = ssub.s32 32, 32
      %2543 = vsyncadd [#allocation10], %s2542
      %s2545 = sshll.u32 [#allocation11], 4
      %s2546 = int_to_ptr.vmem [resolvable:$true] %s2545
      %2548 = dma.vmem_to_hbm [thread:$0]  %s2546, 32, %s17, [#allocation10]
    $region85: #{tpu_custom_call.1} parent=1 // pred_fallthru
      _
    // Predicated region
    $region86: #{tpu_custom_call.1} parent=1 // pred_check
      _
    $region87: #{tpu_custom_call.1} parent=1 // pred_check_branch
      %2550 = sbr.rel (0) target = $region89
    $region88: #{tpu_custom_call.1} parent=1 // pred_region
      %2551 = dma.done [#allocation4], 32
    $region89: #{tpu_custom_call.1} parent=1 // pred_fallthru
      _
    // Predicated region
    $region90: #{tpu_custom_call.1} parent=1 // pred_check
      _
    $region91: #{tpu_custom_call.1} parent=1 // pred_check_branch
      %2553 = sbr.rel (0) target = $region93
    $region92: #{tpu_custom_call.1} parent=1 // pred_region
      %2554 = dma.done [#allocation10], 32
    $region93: #{tpu_custom_call.1} parent=1 // pred_fallthru
      _
    // Predicated region
    $region94: #{tpu_custom_call.1} parent=1 // pred_check
      _
    $region95: #{tpu_custom_call.1} parent=1 // pred_check_branch
      %2556 = sbr.rel (0) target = $region97
    $region96: #{tpu_custom_call.1} parent=1 // pred_region
      %2557 = dma.done [#allocation10], 32
    $region97: #{tpu_custom_call.1} parent=1 // pred_fallthru
      _
    %2558 = vsyncpa [#allocation3], 1
    %2559 = vsyncpa [#allocation6], 1
    %2560 = vsyncpa [#allocation4], 1
    %2561 = vsyncpa [#allocation10], 1

</llo_original>
